<compile_context>
chip_gen: v7x
topology: tpu7x:2x2x1
jax: 0.10.0
libtpu: 0.0.40
codegen_flags: <defaults>
</compile_context>

<pallas_src>
import jax
import jax.numpy as jnp
from jax.experimental import pallas as pl
from jax.experimental.pallas import tpu as pltpu


# ---------------------------------------------------------------------------
# Pallas kernels
# ---------------------------------------------------------------------------
def _conv_tanh_pool_kernel(p0_ref, p1_ref, p2_ref, p3_ref, w_ref, b_ref, o_ref):
    """o = 0.25 * sum_pos tanh(P_pos @ W + b)   (conv + tanh + 2x2 avgpool)."""
    w = w_ref[...]
    b = b_ref[...]  # (1, N), broadcasts over rows
    acc = jnp.tanh(jnp.dot(p0_ref[...], w, preferred_element_type=jnp.float32) + b)
    acc = acc + jnp.tanh(jnp.dot(p1_ref[...], w, preferred_element_type=jnp.float32) + b)
    acc = acc + jnp.tanh(jnp.dot(p2_ref[...], w, preferred_element_type=jnp.float32) + b)
    acc = acc + jnp.tanh(jnp.dot(p3_ref[...], w, preferred_element_type=jnp.float32) + b)
    o_ref[...] = (acc * 0.25).astype(o_ref.dtype)


def _fc_stack_kernel(x_ref, w1_ref, b1_ref, w2_ref, b2_ref, w3_ref, b3_ref, o_ref):
    """o = softmax(tanh(tanh(x@W1+b1) @ W2 + b2) @ W3 + b3)."""
    h = jnp.tanh(jnp.dot(x_ref[...], w1_ref[...],
                         preferred_element_type=jnp.float32) + b1_ref[...])
    h = jnp.tanh(jnp.dot(h, w2_ref[...],
                         preferred_element_type=jnp.float32) + b2_ref[...])
    logits = jnp.dot(h, w3_ref[...],
                     preferred_element_type=jnp.float32) + b3_ref[...]
    logits = logits - jnp.max(logits, axis=-1, keepdims=True)
    e = jnp.exp(logits)
    denom = jnp.sum(e, axis=-1, keepdims=True)
    o_ref[...] = (e * pl.reciprocal(denom, approx=False)).astype(o_ref.dtype)


# ---------------------------------------------------------------------------
# Pallas wrappers
# ---------------------------------------------------------------------------
def _conv_tanh_pool(p_mats, w, b, rows_per_tile):
    M, K = p_mats[0].shape
    N = w.shape[1]
    grid = (M // rows_per_tile,)
    p_spec = pl.BlockSpec((rows_per_tile, K), lambda i: (i, 0))
    w_spec = pl.BlockSpec((K, N), lambda i: (0, 0))      # resident across grid
    b_spec = pl.BlockSpec((1, N), lambda i: (0, 0))
    return pl.pallas_call(
        _conv_tanh_pool_kernel,
        out_shape=jax.ShapeDtypeStruct((M, N), jnp.float32),
        grid=grid,
        in_specs=[p_spec, p_spec, p_spec, p_spec, w_spec, b_spec],
        out_specs=pl.BlockSpec((rows_per_tile, N), lambda i: (i, 0)),
        compiler_params=pltpu.CompilerParams(dimension_semantics=("parallel",)),
    )(*p_mats, w, b.reshape(1, N))


def _fc_stack(x, w1, b1, w2, b2, w3, b3, rows_per_tile):
    M, K = x.shape
    H1, H2, N = w1.shape[1], w2.shape[1], w3.shape[1]
    grid = (M // rows_per_tile,)
    return pl.pallas_call(
        _fc_stack_kernel,
        out_shape=jax.ShapeDtypeStruct((M, N), jnp.float32),
        grid=grid,
        in_specs=[
            pl.BlockSpec((rows_per_tile, K), lambda i: (i, 0)),
            pl.BlockSpec((K, H1), lambda i: (0, 0)),   # weights: VMEM-resident
            pl.BlockSpec((1, H1), lambda i: (0, 0)),
            pl.BlockSpec((H1, H2), lambda i: (0, 0)),
            pl.BlockSpec((1, H2), lambda i: (0, 0)),
            pl.BlockSpec((H2, N), lambda i: (0, 0)),
            pl.BlockSpec((1, N), lambda i: (0, 0)),
        ],
        out_specs=pl.BlockSpec((rows_per_tile, N), lambda i: (i, 0)),
        compiler_params=pltpu.CompilerParams(dimension_semantics=("parallel",)),
    )(x, w1, b1.reshape(1, H1), w2, b2.reshape(1, H2), w3, b3.reshape(1, N))


# ---------------------------------------------------------------------------
# Glue (patch extraction / parameter plumbing) in plain JAX
# ---------------------------------------------------------------------------
def _im2col_pool_split(x_nhwc, k, pad):
    """4 patch matrices (one per 2x2-pool-window position), each [B*Hp*Wp, k*k*C].

    P[py*2+px] row (b, oh, ow) holds the kxk patch at conv-output position
    (2*oh+py, 2*ow+px); column order is (dh, dw, cin), matching the
    (kH, kW, Cin, Cout) weight matrix layout.
    """
    B, H, W, C = x_nhwc.shape
    xp = jnp.pad(x_nhwc, ((0, 0), (pad, pad), (pad, pad), (0, 0)))
    Ho = H + 2 * pad - k + 1
    Wo = W + 2 * pad - k + 1
    Hp, Wp = Ho // 2, Wo // 2
    mats = []
    for py in range(2):
        for px in range(2):
            cols = []
            for dh in range(k):
                for dw in range(k):
                    h0, w0 = py + dh, px + dw
                    cols.append(xp[:, h0:h0 + 2 * Hp:2, w0:w0 + 2 * Wp:2, :])
            pm = jnp.stack(cols, axis=3)                 # (B, Hp, Wp, k*k, C)
            mats.append(pm.reshape(B * Hp * Wp, k * k * C))
    return mats, Hp, Wp


def _conv_w_to_matrix(w_oihw):
    """torch conv weight (Cout,Cin,kH,kW) -> matmul weight (kH*kW*Cin, Cout)."""
    Cout, Cin, kH, kW = w_oihw.shape
    return jnp.transpose(w_oihw, (2, 3, 1, 0)).reshape(kH * kW * Cin, Cout)


def _pad_cols(w, n):
    return jnp.pad(w, ((0, 0), (0, n - w.shape[1])))


def _pad_rows(w, n):
    return jnp.pad(w, ((0, n - w.shape[0]), (0, 0)))


_FC_PAD = 128  # lane-dense hidden widths inside the fused FC kernel


def lenet5_forward(x_nchw, params, batch_tile=32):
    B = x_nchw.shape[0]
    if B <= batch_tile:
        bt, b_pad = B, B                     # single grid step, full blocks
    else:
        bt = batch_tile                      # multiple of 8 keeps blocks legal
        b_pad = pl.cdiv(B, bt) * bt
    x = jnp.pad(x_nchw, ((0, b_pad - B), (0, 0), (0, 0), (0, 0)))
    x = jnp.transpose(x, (0, 2, 3, 1))       # NHWC

    # conv1 (1->6, k=5, pad=2) + tanh + avgpool2x2, fused in one kernel
    p_mats, hp1, wp1 = _im2col_pool_split(x, k=5, pad=2)     # 4 x [B*14*14, 25]
    w1 = _conv_w_to_matrix(params["conv1_w"])
    y = _conv_tanh_pool(p_mats, w1, params["conv1_b"], bt * hp1 * wp1)
    y = y.reshape(b_pad, hp1, wp1, 6)                        # [B,14,14,6]

    # conv2 (6->16, k=5, pad=0) + tanh + avgpool2x2, fused in one kernel
    p_mats, hp2, wp2 = _im2col_pool_split(y, k=5, pad=0)     # 4 x [B*5*5, 150]
    w2 = _conv_w_to_matrix(params["conv2_w"])
    y = _conv_tanh_pool(p_mats, w2, params["conv2_b"], bt * hp2 * wp2)
    # rows are (b, oh, ow) with channel minor -> NHWC flatten [B, 5*5*16]
    y = y.reshape(b_pad, hp2 * wp2 * 16)

    # fc1 + tanh + fc2 + tanh + fc3 + softmax, fused in one kernel.
    # Fold torch's NCHW flatten (view(-1, 16*5*5)) into a row permutation of
    # fc1's weight so the NHWC-flat activation is used directly.
    fc1_w = params["fc1_w"].reshape(16, hp2, wp2, -1)
    fc1_w = jnp.transpose(fc1_w, (1, 2, 0, 3)).reshape(16 * hp2 * wp2, -1)
    # zero-pad hidden widths to 128 lanes (exact: tanh(0)=0, zero weights)
    w1p = _pad_cols(fc1_w, _FC_PAD)
    b1p = jnp.pad(params["fc1_b"], (0, _FC_PAD - params["fc1_b"].shape[0]))
    w2p = _pad_cols(_pad_rows(params["fc2_w"], _FC_PAD), _FC_PAD)
    b2p = jnp.pad(params["fc2_b"], (0, _FC_PAD - params["fc2_b"].shape[0]))
    w3p = _pad_rows(params["fc3_w"], _FC_PAD)
    out = _fc_stack(y, w1p, b1p, w2p, b2p, w3p, params["fc3_b"], bt)
    return out[:B]


# ---------------------------------------------------------------------------
# Reference (plain JAX / XLA) and parameter init
# ---------------------------------------------------------------------------
def reference_forward(x_nchw, params):
    """Plain-JAX reference of the PyTorch module (validation only)."""
    dn = ("NCHW", "OIHW", "NCHW")
    y = jax.lax.conv_general_dilated(x_nchw, params["conv1_w"], (1, 1),
                                     [(2, 2), (2, 2)], dimension_numbers=dn)
    y = jnp.tanh(y + params["conv1_b"][None, :, None, None])
    y = jax.lax.reduce_window(y, 0.0, jax.lax.add, (1, 1, 2, 2), (1, 1, 2, 2),
                              "VALID") * 0.25
    y = jax.lax.conv_general_dilated(y, params["conv2_w"], (1, 1),
                                     [(0, 0), (0, 0)], dimension_numbers=dn)
    y = jnp.tanh(y + params["conv2_b"][None, :, None, None])
    y = jax.lax.reduce_window(y, 0.0, jax.lax.add, (1, 1, 2, 2), (1, 1, 2, 2),
                              "VALID") * 0.25
    y = y.reshape(y.shape[0], -1)
    y = jnp.tanh(y @ params["fc1_w"] + params["fc1_b"])
    y = jnp.tanh(y @ params["fc2_w"] + params["fc2_b"])
    y = y @ params["fc3_w"] + params["fc3_b"]
    return jax.nn.softmax(y, axis=1)


def init_params(key, num_classes=10):
    """Deterministic synthetic params, PyTorch-style uniform(-1/sqrt(fan_in))."""
    ks = jax.random.split(key, 10)

    def u(k, shape, fan_in):
        bound = 1.0 / jnp.sqrt(jnp.float32(fan_in))
        return jax.random.uniform(k, shape, jnp.float32, -bound, bound)

    return {
        "conv1_w": u(ks[0], (6, 1, 5, 5), 1 * 5 * 5),
        "conv1_b": u(ks[1], (6,), 1 * 5 * 5),
        "conv2_w": u(ks[2], (16, 6, 5, 5), 6 * 5 * 5),
        "conv2_b": u(ks[3], (16,), 6 * 5 * 5),
        "fc1_w": u(ks[4], (400, 120), 400),
        "fc1_b": u(ks[5], (120,), 400),
        "fc2_w": u(ks[6], (120, 84), 120),
        "fc2_b": u(ks[7], (84,), 120),
        "fc3_w": u(ks[8], (84, num_classes), 84),
        "fc3_b": u(ks[9], (num_classes,), 84),
    }


if __name__ == "__main__":
    key = jax.random.PRNGKey(0)
    k_x, k_p = jax.random.split(key)

    # LeNet-5 hard-codes 16*5*5 after two conv/pool stages => input is 28x28.
    x = jax.random.normal(k_x, (2, 1, 28, 28), dtype=jnp.float32)
    params = init_params(k_p, num_classes=10)

    fwd = jax.jit(lenet5_forward)
    out = jax.block_until_ready(fwd(x, params))

    assert out.shape == (2, 10), out.shape
    # softmax rows sum to 1
    assert bool(jnp.all(jnp.abs(jnp.sum(out, axis=1) - 1.0) < 1e-4))
    # matches the plain-JAX reference of the PyTorch module (loose tol covers
    # MXU vs XLA conv accumulation-order differences)
    ref = jax.block_until_ready(reference_forward(x, params))
    assert bool(jnp.max(jnp.abs(out - ref)) < 5e-2), float(jnp.max(jnp.abs(out - ref)))

    print("KERNEL_OK")
</pallas_src>

<mosaic_0001>
module attributes {stable_mosaic.version = 11 : i64} {
  func.func @_conv_tanh_pool_kernel(%arg0: i32, %arg1: memref<392x25xf32, #tpu.memory_space<vmem>>, %arg2: memref<392x25xf32, #tpu.memory_space<vmem>>, %arg3: memref<392x25xf32, #tpu.memory_space<vmem>>, %arg4: memref<392x25xf32, #tpu.memory_space<vmem>>, %arg5: memref<25x6xf32, #tpu.memory_space<vmem>>, %arg6: memref<1x6xf32, #tpu.memory_space<vmem>>, %arg7: memref<392x6xf32, #tpu.memory_space<vmem>>) attributes {dimension_semantics = [#tpu.dimension_semantics<parallel>], iteration_bounds = array<i64: 1>, scalar_prefetch = 0 : i64, scratch_operands = 0 : i64, tpu.core_type = #tpu.core_type<tc>, window_params = [{transform_indices = @transform_0, window_bounds = array<i64: 392, 25>}, {transform_indices = @transform_1, window_bounds = array<i64: 392, 25>}, {transform_indices = @transform_2, window_bounds = array<i64: 392, 25>}, {transform_indices = @transform_3, window_bounds = array<i64: 392, 25>}, {pipeline_mode = #tpu.pipeline_mode<synchronous>, transform_indices = @transform_4, window_bounds = array<i64: 25, 6>}, {pipeline_mode = #tpu.pipeline_mode<synchronous>, transform_indices = @transform_5, window_bounds = array<i64: 1, 6>}, {transform_indices = @transform_6, window_bounds = array<i64: 392, 6>}]} {
    %c0 = arith.constant 0 : index
    %c0_0 = arith.constant 0 : index
    %0 = vector.load %arg5[%c0, %c0_0] : memref<25x6xf32, #tpu.memory_space<vmem>>, vector<25x6xf32>
    %c0_1 = arith.constant 0 : index
    %c0_2 = arith.constant 0 : index
    %1 = vector.load %arg6[%c0_1, %c0_2] : memref<1x6xf32, #tpu.memory_space<vmem>>, vector<1x6xf32>
    %c0_3 = arith.constant 0 : index
    %c0_4 = arith.constant 0 : index
    %2 = vector.load %arg1[%c0_3, %c0_4] : memref<392x25xf32, #tpu.memory_space<vmem>>, vector<392x25xf32>
    %cst = arith.constant dense<0.000000e+00> : vector<392x6xf32>
    %3 = tpu.matmul %2, %0, %cst {dimension_numbers = #tpu.dot_dimension_numbers<[1], [0], [0], [1], [0, 0, 1, 1], [], []>} : vector<392x25xf32>, vector<25x6xf32>, vector<392x6xf32> -> vector<392x6xf32>
    %4 = vector.broadcast %1 : vector<1x6xf32> to vector<392x6xf32>
    %5 = arith.addf %3, %4 : vector<392x6xf32>
    %6 = math.tanh %5 : vector<392x6xf32>
    %c0_5 = arith.constant 0 : index
    %c0_6 = arith.constant 0 : index
    %7 = vector.load %arg2[%c0_5, %c0_6] : memref<392x25xf32, #tpu.memory_space<vmem>>, vector<392x25xf32>
    %cst_7 = arith.constant dense<0.000000e+00> : vector<392x6xf32>
    %8 = tpu.matmul %7, %0, %cst_7 {dimension_numbers = #tpu.dot_dimension_numbers<[1], [0], [0], [1], [0, 0, 1, 1], [], []>} : vector<392x25xf32>, vector<25x6xf32>, vector<392x6xf32> -> vector<392x6xf32>
    %9 = vector.broadcast %1 : vector<1x6xf32> to vector<392x6xf32>
    %10 = arith.addf %8, %9 : vector<392x6xf32>
    %11 = math.tanh %10 : vector<392x6xf32>
    %12 = arith.addf %6, %11 : vector<392x6xf32>
    %c0_8 = arith.constant 0 : index
    %c0_9 = arith.constant 0 : index
    %13 = vector.load %arg3[%c0_8, %c0_9] : memref<392x25xf32, #tpu.memory_space<vmem>>, vector<392x25xf32>
    %cst_10 = arith.constant dense<0.000000e+00> : vector<392x6xf32>
    %14 = tpu.matmul %13, %0, %cst_10 {dimension_numbers = #tpu.dot_dimension_numbers<[1], [0], [0], [1], [0, 0, 1, 1], [], []>} : vector<392x25xf32>, vector<25x6xf32>, vector<392x6xf32> -> vector<392x6xf32>
    %15 = vector.broadcast %1 : vector<1x6xf32> to vector<392x6xf32>
    %16 = arith.addf %14, %15 : vector<392x6xf32>
    %17 = math.tanh %16 : vector<392x6xf32>
    %18 = arith.addf %12, %17 : vector<392x6xf32>
    %c0_11 = arith.constant 0 : index
    %c0_12 = arith.constant 0 : index
    %19 = vector.load %arg4[%c0_11, %c0_12] : memref<392x25xf32, #tpu.memory_space<vmem>>, vector<392x25xf32>
    %cst_13 = arith.constant dense<0.000000e+00> : vector<392x6xf32>
    %20 = tpu.matmul %19, %0, %cst_13 {dimension_numbers = #tpu.dot_dimension_numbers<[1], [0], [0], [1], [0, 0, 1, 1], [], []>} : vector<392x25xf32>, vector<25x6xf32>, vector<392x6xf32> -> vector<392x6xf32>
    %21 = vector.broadcast %1 : vector<1x6xf32> to vector<392x6xf32>
    %22 = arith.addf %20, %21 : vector<392x6xf32>
    %23 = math.tanh %22 : vector<392x6xf32>
    %24 = arith.addf %18, %23 : vector<392x6xf32>
    %cst_14 = arith.constant 2.500000e-01 : f32
    %25 = vector.broadcast %cst_14 : f32 to vector<392x6xf32>
    %26 = arith.mulf %24, %25 : vector<392x6xf32>
    %c0_15 = arith.constant 0 : index
    %c0_16 = arith.constant 0 : index
    %27 = vector.load %arg7[%c0_15, %c0_16] : memref<392x6xf32, #tpu.memory_space<vmem>>, vector<392x6xf32>
    tpu.vector_store %arg7[%c0_15, %c0_16], %26 {strides = array<i32>} : memref<392x6xf32, #tpu.memory_space<vmem>>, vector<392x6xf32>,
    return
  }
  func.func @transform_0(%arg0: i32) -> (i32, i32) {
    %c0_i32 = arith.constant 0 : i32
    %c0_i32_0 = arith.constant 0 : i32
    return %arg0, %c0_i32 : i32, i32
  }
  func.func @transform_1(%arg0: i32) -> (i32, i32) {
    %c0_i32 = arith.constant 0 : i32
    %c0_i32_0 = arith.constant 0 : i32
    return %arg0, %c0_i32 : i32, i32
  }
  func.func @transform_2(%arg0: i32) -> (i32, i32) {
    %c0_i32 = arith.constant 0 : i32
    %c0_i32_0 = arith.constant 0 : i32
    return %arg0, %c0_i32 : i32, i32
  }
  func.func @transform_3(%arg0: i32) -> (i32, i32) {
    %c0_i32 = arith.constant 0 : i32
    %c0_i32_0 = arith.constant 0 : i32
    return %arg0, %c0_i32 : i32, i32
  }
  func.func @transform_4(%arg0: i32) -> (i32, i32) {
    %c0_i32 = arith.constant 0 : i32
    %c0_i32_0 = arith.constant 0 : i32
    %c0_i32_1 = arith.constant 0 : i32
    return %c0_i32, %c0_i32_0 : i32, i32
  }
  func.func @transform_5(%arg0: i32) -> (i32, i32) {
    %c0_i32 = arith.constant 0 : i32
    %c0_i32_0 = arith.constant 0 : i32
    %c0_i32_1 = arith.constant 0 : i32
    return %c0_i32, %c0_i32_0 : i32, i32
  }
  func.func @transform_6(%arg0: i32) -> (i32, i32) {
    %c0_i32 = arith.constant 0 : i32
    %c0_i32_0 = arith.constant 0 : i32
    return %arg0, %c0_i32 : i32, i32
  }
}

module attributes {stable_mosaic.version = 11 : i64} {
  func.func @_conv_tanh_pool_kernel(%arg0: i32, %arg1: memref<50x150xf32, #tpu.memory_space<vmem>>, %arg2: memref<50x150xf32, #tpu.memory_space<vmem>>, %arg3: memref<50x150xf32, #tpu.memory_space<vmem>>, %arg4: memref<50x150xf32, #tpu.memory_space<vmem>>, %arg5: memref<150x16xf32, #tpu.memory_space<vmem>>, %arg6: memref<1x16xf32, #tpu.memory_space<vmem>>, %arg7: memref<50x16xf32, #tpu.memory_space<vmem>>) attributes {dimension_semantics = [#tpu.dimension_semantics<parallel>], iteration_bounds = array<i64: 1>, scalar_prefetch = 0 : i64, scratch_operands = 0 : i64, tpu.core_type = #tpu.core_type<tc>, window_params = [{transform_indices = @transform_0, window_bounds = array<i64: 50, 150>}, {transform_indices = @transform_1, window_bounds = array<i64: 50, 150>}, {transform_indices = @transform_2, window_bounds = array<i64: 50, 150>}, {transform_indices = @transform_3, window_bounds = array<i64: 50, 150>}, {pipeline_mode = #tpu.pipeline_mode<synchronous>, transform_indices = @transform_4, window_bounds = array<i64: 150, 16>}, {pipeline_mode = #tpu.pipeline_mode<synchronous>, transform_indices = @transform_5, window_bounds = array<i64: 1, 16>}, {transform_indices = @transform_6, window_bounds = array<i64: 50, 16>}]} {
    %c0 = arith.constant 0 : index
    %c0_0 = arith.constant 0 : index
    %0 = vector.load %arg5[%c0, %c0_0] : memref<150x16xf32, #tpu.memory_space<vmem>>, vector<150x16xf32>
    %c0_1 = arith.constant 0 : index
    %c0_2 = arith.constant 0 : index
    %1 = vector.load %arg6[%c0_1, %c0_2] : memref<1x16xf32, #tpu.memory_space<vmem>>, vector<1x16xf32>
    %c0_3 = arith.constant 0 : index
    %c0_4 = arith.constant 0 : index
    %2 = vector.load %arg1[%c0_3, %c0_4] : memref<50x150xf32, #tpu.memory_space<vmem>>, vector<50x150xf32>
    %cst = arith.constant dense<0.000000e+00> : vector<50x16xf32>
    %3 = tpu.matmul %2, %0, %cst {dimension_numbers = #tpu.dot_dimension_numbers<[1], [0], [0], [1], [0, 0, 1, 1], [], []>} : vector<50x150xf32>, vector<150x16xf32>, vector<50x16xf32> -> vector<50x16xf32>
    %4 = vector.broadcast %1 : vector<1x16xf32> to vector<50x16xf32>
    %5 = arith.addf %3, %4 : vector<50x16xf32>
    %6 = math.tanh %5 : vector<50x16xf32>
    %c0_5 = arith.constant 0 : index
    %c0_6 = arith.constant 0 : index
    %7 = vector.load %arg2[%c0_5, %c0_6] : memref<50x150xf32, #tpu.memory_space<vmem>>, vector<50x150xf32>
    %cst_7 = arith.constant dense<0.000000e+00> : vector<50x16xf32>
    %8 = tpu.matmul %7, %0, %cst_7 {dimension_numbers = #tpu.dot_dimension_numbers<[1], [0], [0], [1], [0, 0, 1, 1], [], []>} : vector<50x150xf32>, vector<150x16xf32>, vector<50x16xf32> -> vector<50x16xf32>
    %9 = vector.broadcast %1 : vector<1x16xf32> to vector<50x16xf32>
    %10 = arith.addf %8, %9 : vector<50x16xf32>
    %11 = math.tanh %10 : vector<50x16xf32>
    %12 = arith.addf %6, %11 : vector<50x16xf32>
    %c0_8 = arith.constant 0 : index
    %c0_9 = arith.constant 0 : index
    %13 = vector.load %arg3[%c0_8, %c0_9] : memref<50x150xf32, #tpu.memory_space<vmem>>, vector<50x150xf32>
    %cst_10 = arith.constant dense<0.000000e+00> : vector<50x16xf32>
    %14 = tpu.matmul %13, %0, %cst_10 {dimension_numbers = #tpu.dot_dimension_numbers<[1], [0], [0], [1], [0, 0, 1, 1], [], []>} : vector<50x150xf32>, vector<150x16xf32>, vector<50x16xf32> -> vector<50x16xf32>
    %15 = vector.broadcast %1 : vector<1x16xf32> to vector<50x16xf32>
    %16 = arith.addf %14, %15 : vector<50x16xf32>
    %17 = math.tanh %16 : vector<50x16xf32>
    %18 = arith.addf %12, %17 : vector<50x16xf32>
    %c0_11 = arith.constant 0 : index
    %c0_12 = arith.constant 0 : index
    %19 = vector.load %arg4[%c0_11, %c0_12] : memref<50x150xf32, #tpu.memory_space<vmem>>, vector<50x150xf32>
    %cst_13 = arith.constant dense<0.000000e+00> : vector<50x16xf32>
    %20 = tpu.matmul %19, %0, %cst_13 {dimension_numbers = #tpu.dot_dimension_numbers<[1], [0], [0], [1], [0, 0, 1, 1], [], []>} : vector<50x150xf32>, vector<150x16xf32>, vector<50x16xf32> -> vector<50x16xf32>
    %21 = vector.broadcast %1 : vector<1x16xf32> to vector<50x16xf32>
    %22 = arith.addf %20, %21 : vector<50x16xf32>
    %23 = math.tanh %22 : vector<50x16xf32>
    %24 = arith.addf %18, %23 : vector<50x16xf32>
    %cst_14 = arith.constant 2.500000e-01 : f32
    %25 = vector.broadcast %cst_14 : f32 to vector<50x16xf32>
    %26 = arith.mulf %24, %25 : vector<50x16xf32>
    %c0_15 = arith.constant 0 : index
    %c0_16 = arith.constant 0 : index
    %27 = vector.load %arg7[%c0_15, %c0_16] : memref<50x16xf32, #tpu.memory_space<vmem>>, vector<50x16xf32>
    tpu.vector_store %arg7[%c0_15, %c0_16], %26 {strides = array<i32>} : memref<50x16xf32, #tpu.memory_space<vmem>>, vector<50x16xf32>,
    return
  }
  func.func @transform_0(%arg0: i32) -> (i32, i32) {
    %c0_i32 = arith.constant 0 : i32
    %c0_i32_0 = arith.constant 0 : i32
    return %arg0, %c0_i32 : i32, i32
  }
  func.func @transform_1(%arg0: i32) -> (i32, i32) {
    %c0_i32 = arith.constant 0 : i32
    %c0_i32_0 = arith.constant 0 : i32
    return %arg0, %c0_i32 : i32, i32
  }
  func.func @transform_2(%arg0: i32) -> (i32, i32) {
    %c0_i32 = arith.constant 0 : i32
    %c0_i32_0 = arith.constant 0 : i32
    return %arg0, %c0_i32 : i32, i32
  }
  func.func @transform_3(%arg0: i32) -> (i32, i32) {
    %c0_i32 = arith.constant 0 : i32
    %c0_i32_0 = arith.constant 0 : i32
    return %arg0, %c0_i32 : i32, i32
  }
  func.func @transform_4(%arg0: i32) -> (i32, i32) {
    %c0_i32 = arith.constant 0 : i32
    %c0_i32_0 = arith.constant 0 : i32
    %c0_i32_1 = arith.constant 0 : i32
    return %c0_i32, %c0_i32_0 : i32, i32
  }
  func.func @transform_5(%arg0: i32) -> (i32, i32) {
    %c0_i32 = arith.constant 0 : i32
    %c0_i32_0 = arith.constant 0 : i32
    %c0_i32_1 = arith.constant 0 : i32
    return %c0_i32, %c0_i32_0 : i32, i32
  }
  func.func @transform_6(%arg0: i32) -> (i32, i32) {
    %c0_i32 = arith.constant 0 : i32
    %c0_i32_0 = arith.constant 0 : i32
    return %arg0, %c0_i32 : i32, i32
  }
}

module attributes {stable_mosaic.version = 11 : i64} {
  func.func @_fc_stack_kernel(%arg0: i32, %arg1: memref<2x400xf32, #tpu.memory_space<vmem>>, %arg2: memref<400x128xf32, #tpu.memory_space<vmem>>, %arg3: memref<1x128xf32, #tpu.memory_space<vmem>>, %arg4: memref<128x128xf32, #tpu.memory_space<vmem>>, %arg5: memref<1x128xf32, #tpu.memory_space<vmem>>, %arg6: memref<128x10xf32, #tpu.memory_space<vmem>>, %arg7: memref<1x10xf32, #tpu.memory_space<vmem>>, %arg8: memref<2x10xf32, #tpu.memory_space<vmem>>) attributes {dimension_semantics = [#tpu.dimension_semantics<parallel>], iteration_bounds = array<i64: 1>, scalar_prefetch = 0 : i64, scratch_operands = 0 : i64, tpu.core_type = #tpu.core_type<tc>, window_params = [{transform_indices = @transform_0, window_bounds = array<i64: 2, 400>}, {pipeline_mode = #tpu.pipeline_mode<synchronous>, transform_indices = @transform_1, window_bounds = array<i64: 400, 128>}, {pipeline_mode = #tpu.pipeline_mode<synchronous>, transform_indices = @transform_2, window_bounds = array<i64: 1, 128>}, {pipeline_mode = #tpu.pipeline_mode<synchronous>, transform_indices = @transform_3, window_bounds = array<i64: 128, 128>}, {pipeline_mode = #tpu.pipeline_mode<synchronous>, transform_indices = @transform_4, window_bounds = array<i64: 1, 128>}, {pipeline_mode = #tpu.pipeline_mode<synchronous>, transform_indices = @transform_5, window_bounds = array<i64: 128, 10>}, {pipeline_mode = #tpu.pipeline_mode<synchronous>, transform_indices = @transform_6, window_bounds = array<i64: 1, 10>}, {transform_indices = @transform_7, window_bounds = array<i64: 2, 10>}]} {
    %c0 = arith.constant 0 : index
    %c0_0 = arith.constant 0 : index
    %0 = vector.load %arg1[%c0, %c0_0] : memref<2x400xf32, #tpu.memory_space<vmem>>, vector<2x400xf32>
    %c0_1 = arith.constant 0 : index
    %c0_2 = arith.constant 0 : index
    %1 = vector.load %arg2[%c0_1, %c0_2] : memref<400x128xf32, #tpu.memory_space<vmem>>, vector<400x128xf32>
    %cst = arith.constant dense<0.000000e+00> : vector<2x128xf32>
    %2 = tpu.matmul %0, %1, %cst {dimension_numbers = #tpu.dot_dimension_numbers<[1], [0], [0], [1], [0, 0, 1, 1], [], []>} : vector<2x400xf32>, vector<400x128xf32>, vector<2x128xf32> -> vector<2x128xf32>
    %c0_3 = arith.constant 0 : index
    %c0_4 = arith.constant 0 : index
    %3 = vector.load %arg3[%c0_3, %c0_4] : memref<1x128xf32, #tpu.memory_space<vmem>>, vector<1x128xf32>
    %4 = vector.broadcast %3 : vector<1x128xf32> to vector<2x128xf32>
    %5 = arith.addf %2, %4 : vector<2x128xf32>
    %6 = math.tanh %5 : vector<2x128xf32>
    %c0_5 = arith.constant 0 : index
    %c0_6 = arith.constant 0 : index
    %7 = vector.load %arg4[%c0_5, %c0_6] : memref<128x128xf32, #tpu.memory_space<vmem>>, vector<128x128xf32>
    %cst_7 = arith.constant dense<0.000000e+00> : vector<2x128xf32>
    %8 = tpu.matmul %6, %7, %cst_7 {dimension_numbers = #tpu.dot_dimension_numbers<[1], [0], [0], [1], [0, 0, 1, 1], [], []>} : vector<2x128xf32>, vector<128x128xf32>, vector<2x128xf32> -> vector<2x128xf32>
    %c0_8 = arith.constant 0 : index
    %c0_9 = arith.constant 0 : index
    %9 = vector.load %arg5[%c0_8, %c0_9] : memref<1x128xf32, #tpu.memory_space<vmem>>, vector<1x128xf32>
    %10 = vector.broadcast %9 : vector<1x128xf32> to vector<2x128xf32>
    %11 = arith.addf %8, %10 : vector<2x128xf32>
    %12 = math.tanh %11 : vector<2x128xf32>
    %c0_10 = arith.constant 0 : index
    %c0_11 = arith.constant 0 : index
    %13 = vector.load %arg6[%c0_10, %c0_11] : memref<128x10xf32, #tpu.memory_space<vmem>>, vector<128x10xf32>
    %cst_12 = arith.constant dense<0.000000e+00> : vector<2x10xf32>
    %14 = tpu.matmul %12, %13, %cst_12 {dimension_numbers = #tpu.dot_dimension_numbers<[1], [0], [0], [1], [0, 0, 1, 1], [], []>} : vector<2x128xf32>, vector<128x10xf32>, vector<2x10xf32> -> vector<2x10xf32>
    %c0_13 = arith.constant 0 : index
    %c0_14 = arith.constant 0 : index
    %15 = vector.load %arg7[%c0_13, %c0_14] : memref<1x10xf32, #tpu.memory_space<vmem>>, vector<1x10xf32>
    %16 = vector.broadcast %15 : vector<1x10xf32> to vector<2x10xf32>
    %17 = arith.addf %14, %16 : vector<2x10xf32>
    %cst_15 = arith.constant dense<0xFF800000> : vector<2xf32>
    %18 = vector.multi_reduction <maximumf>, %17, %cst_15 [1] : vector<2x10xf32> to vector<2xf32>
    %19 = vector.shape_cast %18 : vector<2xf32> to vector<2x1xf32>
    %20 = vector.broadcast %19 : vector<2x1xf32> to vector<2x10xf32>
    %21 = arith.subf %17, %20 : vector<2x10xf32>
    %22 = math.exp %21 : vector<2x10xf32>
    %cst_16 = arith.constant dense<0.000000e+00> : vector<2xf32>
    %23 = vector.multi_reduction <add>, %22, %cst_16 [1] : vector<2x10xf32> to vector<2xf32>
    %24 = vector.shape_cast %23 : vector<2xf32> to vector<2x1xf32>
    %25 = tpu.reciprocal %24 : vector<2x1xf32> -> vector<2x1xf32>
    %26 = vector.broadcast %25 : vector<2x1xf32> to vector<2x10xf32>
    %27 = arith.mulf %22, %26 : vector<2x10xf32>
    %c0_17 = arith.constant 0 : index
    %c0_18 = arith.constant 0 : index
    %28 = vector.load %arg8[%c0_17, %c0_18] : memref<2x10xf32, #tpu.memory_space<vmem>>, vector<2x10xf32>
    tpu.vector_store %arg8[%c0_17, %c0_18], %27 {strides = array<i32>} : memref<2x10xf32, #tpu.memory_space<vmem>>, vector<2x10xf32>,
    return
  }
  func.func @transform_0(%arg0: i32) -> (i32, i32) {
    %c0_i32 = arith.constant 0 : i32
    %c0_i32_0 = arith.constant 0 : i32
    return %arg0, %c0_i32 : i32, i32
  }
  func.func @transform_1(%arg0: i32) -> (i32, i32) {
    %c0_i32 = arith.constant 0 : i32
    %c0_i32_0 = arith.constant 0 : i32
    %c0_i32_1 = arith.constant 0 : i32
    return %c0_i32, %c0_i32_0 : i32, i32
  }
  func.func @transform_2(%arg0: i32) -> (i32, i32) {
    %c0_i32 = arith.constant 0 : i32
    %c0_i32_0 = arith.constant 0 : i32
    %c0_i32_1 = arith.constant 0 : i32
    return %c0_i32, %c0_i32_0 : i32, i32
  }
  func.func @transform_3(%arg0: i32) -> (i32, i32) {
    %c0_i32 = arith.constant 0 : i32
    %c0_i32_0 = arith.constant 0 : i32
    %c0_i32_1 = arith.constant 0 : i32
    return %c0_i32, %c0_i32_0 : i32, i32
  }
  func.func @transform_4(%arg0: i32) -> (i32, i32) {
    %c0_i32 = arith.constant 0 : i32
    %c0_i32_0 = arith.constant 0 : i32
    %c0_i32_1 = arith.constant 0 : i32
    return %c0_i32, %c0_i32_0 : i32, i32
  }
  func.func @transform_5(%arg0: i32) -> (i32, i32) {
    %c0_i32 = arith.constant 0 : i32
    %c0_i32_0 = arith.constant 0 : i32
    %c0_i32_1 = arith.constant 0 : i32
    return %c0_i32, %c0_i32_0 : i32, i32
  }
  func.func @transform_6(%arg0: i32) -> (i32, i32) {
    %c0_i32 = arith.constant 0 : i32
    %c0_i32_0 = arith.constant 0 : i32
    %c0_i32_1 = arith.constant 0 : i32
    return %c0_i32, %c0_i32_0 : i32, i32
  }
  func.func @transform_7(%arg0: i32) -> (i32, i32) {
    %c0_i32 = arith.constant 0 : i32
    %c0_i32_0 = arith.constant 0 : i32
    return %arg0, %c0_i32 : i32, i32
  }
}

</mosaic_0001>

<llo_original>
// kernel: lenet5_forward.3
$region0: #{lenet5_forward.3}
  #allocation0 [shape = 'u32[]', space=smem, size = 0x4, offset = 0x4, fixed_abs, tag = 'smem constant byte address 0x4 - core index']
  #allocation1 [shape = 'u32[144,128]{1,0:T(1,128)}', space=vmem, size = 0x12000, scoped, tag = 'internal scratch']
  %s0 = inlined_call_operand.vmem [shape: f32[392,25], index: 0, kind: input, shape index: {}]
  %s1 = inlined_call_operand.vmem [shape: f32[392,25], index: 1, kind: input, shape index: {}]
  %s2 = inlined_call_operand.vmem [shape: f32[392,25], index: 2, kind: input, shape index: {}]
  %s3 = inlined_call_operand.vmem [shape: f32[392,25], index: 3, kind: input, shape index: {}]
  %s4 = inlined_call_operand.vmem [shape: f32[25,6], index: 4, kind: input, shape index: {}]
  %s5 = inlined_call_operand.vmem [shape: f32[1,6], index: 5, kind: input, shape index: {}]
  %s6 = inlined_call_operand.vmem [shape: f32[392,6], index: 6, kind: output, shape index: {}]
  %s7 = sld [smem:[#allocation0]]
  $region34: #{lenet5_forward.3} parent=0
    _
  %s9 = ssub.s32 1, %s7
  %s10 = scalar_select 0, %s9, %s7
  // Predicated region
  $region2: #{lenet5_forward.3} parent=0 // pred_check
    _
  $region3: #{lenet5_forward.3} parent=0 // pred_check_branch
    %12 = sbr.rel (0) target = $region5
  $region4: #{lenet5_forward.3} parent=0 // pred_region
    _
  $region5: #{lenet5_forward.3} parent=0 // pred_fallthru
    _
  // Predicated region
  $region6: #{lenet5_forward.3} parent=0 // pred_check
    _
  $region7: #{lenet5_forward.3} parent=0 // pred_check_branch
    %14 = sbr.rel (0) target = $region9
  $region8: #{lenet5_forward.3} parent=0 // pred_region
    _
  $region9: #{lenet5_forward.3} parent=0 // pred_fallthru
    _
  // Predicated region
  $region10: #{lenet5_forward.3} parent=0 // pred_check
    _
  $region11: #{lenet5_forward.3} parent=0 // pred_check_branch
    %16 = sbr.rel (0) target = $region13
  $region12: #{lenet5_forward.3} parent=0 // pred_region
    _
  $region13: #{lenet5_forward.3} parent=0 // pred_fallthru
    _
  // Predicated region
  $region14: #{lenet5_forward.3} parent=0 // pred_check
    _
  $region15: #{lenet5_forward.3} parent=0 // pred_check_branch
    %18 = sbr.rel (0) target = $region17
  $region16: #{lenet5_forward.3} parent=0 // pred_region
    _
  $region17: #{lenet5_forward.3} parent=0 // pred_fallthru
    _
  // Predicated region
  $region18: #{lenet5_forward.3} parent=0 // pred_check
    _
  $region19: #{lenet5_forward.3} parent=0 // pred_check_branch
    %20 = sbr.rel (0) target = $region21
  $region20: #{lenet5_forward.3} parent=0 // pred_region
    _
  $region21: #{lenet5_forward.3} parent=0 // pred_fallthru
    _
  // Predicated region
  $region22: #{lenet5_forward.3} parent=0 // pred_check
    _
  $region23: #{lenet5_forward.3} parent=0 // pred_check_branch
    %22 = sbr.rel (0) target = $region25
  $region24: #{lenet5_forward.3} parent=0 // pred_region
    _
  $region25: #{lenet5_forward.3} parent=0 // pred_fallthru
    _
  %v23 = vld [vmem:[%s4] sm:$0xff]
  %v24 = vld [vmem:[%s4 + $0x8] sm:$0xff]
  %v25 = vld [vmem:[%s4 + $0x10] sm:$0xff]
  %v26 = vld [vmem:[%s4 + $0x18] sm:$0x1]
  %v27 = vld [vmem:[%s5] sm:$0x1]
  %v28 = vld [vmem:[%s0] sm:$0xff]
  %v29 = vld [vmem:[%s0 + $0x8] sm:$0xff]
  %v30 = vld [vmem:[%s0 + $0x10] sm:$0xff]
  %v31 = vld [vmem:[%s0 + $0x18] sm:$0xff]
  %v32 = vld [vmem:[%s0 + $0x20] sm:$0xff]
  %v33 = vld [vmem:[%s0 + $0x28] sm:$0xff]
  %v34 = vld [vmem:[%s0 + $0x30] sm:$0xff]
  %v35 = vld [vmem:[%s0 + $0x38] sm:$0xff]
  %v36 = vld [vmem:[%s0 + $0x40] sm:$0xff]
  %v37 = vld [vmem:[%s0 + $0x48] sm:$0xff]
  %v38 = vld [vmem:[%s0 + $0x50] sm:$0xff]
  %v39 = vld [vmem:[%s0 + $0x58] sm:$0xff]
  %v40 = vld [vmem:[%s0 + $0x60] sm:$0xff]
  %v41 = vld [vmem:[%s0 + $0x68] sm:$0xff]
  %v42 = vld [vmem:[%s0 + $0x70] sm:$0xff]
  %v43 = vld [vmem:[%s0 + $0x78] sm:$0xff]
  %v44 = vld [vmem:[%s0 + $0x80] sm:$0xff]
  %v45 = vld [vmem:[%s0 + $0x88] sm:$0xff]
  %v46 = vld [vmem:[%s0 + $0x90] sm:$0xff]
  %v47 = vld [vmem:[%s0 + $0x98] sm:$0xff]
  %v48 = vld [vmem:[%s0 + $0xa0] sm:$0xff]
  %v49 = vld [vmem:[%s0 + $0xa8] sm:$0xff]
  %v50 = vld [vmem:[%s0 + $0xb0] sm:$0xff]
  %v51 = vld [vmem:[%s0 + $0xb8] sm:$0xff]
  %v52 = vld [vmem:[%s0 + $0xc0] sm:$0xff]
  %v53 = vld [vmem:[%s0 + $0xc8] sm:$0xff]
  %v54 = vld [vmem:[%s0 + $0xd0] sm:$0xff]
  %v55 = vld [vmem:[%s0 + $0xd8] sm:$0xff]
  %v56 = vld [vmem:[%s0 + $0xe0] sm:$0xff]
  %v57 = vld [vmem:[%s0 + $0xe8] sm:$0xff]
  %v58 = vld [vmem:[%s0 + $0xf0] sm:$0xff]
  %v59 = vld [vmem:[%s0 + $0xf8] sm:$0xff]
  %v60 = vld [vmem:[%s0 + $0x100] sm:$0xff]
  %v61 = vld [vmem:[%s0 + $0x108] sm:$0xff]
  %v62 = vld [vmem:[%s0 + $0x110] sm:$0xff]
  %v63 = vld [vmem:[%s0 + $0x118] sm:$0xff]
  %v64 = vld [vmem:[%s0 + $0x120] sm:$0xff]
  %v65 = vld [vmem:[%s0 + $0x128] sm:$0xff]
  %v66 = vld [vmem:[%s0 + $0x130] sm:$0xff]
  %v67 = vld [vmem:[%s0 + $0x138] sm:$0xff]
  %v68 = vld [vmem:[%s0 + $0x140] sm:$0xff]
  %v69 = vld [vmem:[%s0 + $0x148] sm:$0xff]
  %v70 = vld [vmem:[%s0 + $0x150] sm:$0xff]
  %v71 = vld [vmem:[%s0 + $0x158] sm:$0xff]
  %v72 = vld [vmem:[%s0 + $0x160] sm:$0xff]
  %v73 = vld [vmem:[%s0 + $0x168] sm:$0xff]
  %v74 = vld [vmem:[%s0 + $0x170] sm:$0xff]
  %v75 = vld [vmem:[%s0 + $0x178] sm:$0xff]
  %v76 = vld [vmem:[%s0 + $0x180] sm:$0xff]
  %v78 = vlaneseq
  %v79 = vshrl.u32 %v78, 7
  %v80 = vsub.s32 0, %v79
  %v81 = vrot.slane %v27, %v80
  %vm83 = vcmask 203776
  %v85 = vsel %vm83, %v28, 0
  %v88 = vsel %vm83, %v29, 0
  %v91 = vsel %vm83, %v30, 0
  %v94 = vsel %vm83, %v31, 0
  %v97 = vsel %vm83, %v32, 0
  %v100 = vsel %vm83, %v33, 0
  %v103 = vsel %vm83, %v34, 0
  %v106 = vsel %vm83, %v35, 0
  %v109 = vsel %vm83, %v36, 0
  %v112 = vsel %vm83, %v37, 0
  %v115 = vsel %vm83, %v38, 0
  %v118 = vsel %vm83, %v39, 0
  %v121 = vsel %vm83, %v40, 0
  %v124 = vsel %vm83, %v41, 0
  %v127 = vsel %vm83, %v42, 0
  %v130 = vsel %vm83, %v43, 0
  %v133 = vsel %vm83, %v44, 0
  %v136 = vsel %vm83, %v45, 0
  %v139 = vsel %vm83, %v46, 0
  %v142 = vsel %vm83, %v47, 0
  %v145 = vsel %vm83, %v48, 0
  %v148 = vsel %vm83, %v49, 0
  %v151 = vsel %vm83, %v50, 0
  %v154 = vsel %vm83, %v51, 0
  %v157 = vsel %vm83, %v52, 0
  %v160 = vsel %vm83, %v53, 0
  %v163 = vsel %vm83, %v54, 0
  %v166 = vsel %vm83, %v55, 0
  %v169 = vsel %vm83, %v56, 0
  %v172 = vsel %vm83, %v57, 0
  %v175 = vsel %vm83, %v58, 0
  %v178 = vsel %vm83, %v59, 0
  %v181 = vsel %vm83, %v60, 0
  %v184 = vsel %vm83, %v61, 0
  %v187 = vsel %vm83, %v62, 0
  %v190 = vsel %vm83, %v63, 0
  %v193 = vsel %vm83, %v64, 0
  %v196 = vsel %vm83, %v65, 0
  %v199 = vsel %vm83, %v66, 0
  %v202 = vsel %vm83, %v67, 0
  %v205 = vsel %vm83, %v68, 0
  %v208 = vsel %vm83, %v69, 0
  %v211 = vsel %vm83, %v70, 0
  %v214 = vsel %vm83, %v71, 0
  %v217 = vsel %vm83, %v72, 0
  %v220 = vsel %vm83, %v73, 0
  %v223 = vsel %vm83, %v74, 0
  %v226 = vsel %vm83, %v75, 0
  %v229 = vsel %vm83, %v76, 0
  %vm231 = vcmask 1040384
  %v233 = vsel %vm231, %v26, 0
  %235 = vmatprep.subr.mxu0 0.0
  %236 = vmatpush1.msra.mxu0 %v23
  %237 = vmatprep.subr.mxu0 0.0
  %238 = vmatpush1.msra.mxu0 %v24
  %239 = vmatprep.subr.mxu0 0.0
  %240 = vmatpush1.msra.mxu0 %v25
  %241 = vmatprep.subr.mxu0 0.0
  %242 = vmatpush1.msra.mxu0 %v233
  %243 = vmatprep.subr.mxu0 0.0
  %244 = vmatpush1.msra.mxu0 0.0
  %245 = vmatprep.subr.mxu0 0.0
  %246 = vmatpush1.msra.mxu0 0.0
  %247 = vmatprep.subr.mxu0 0.0
  %248 = vmatpush1.msra.mxu0 0.0
  %249 = vmatprep.subr.mxu0 0.0
  %250 = vmatpush1.msra.mxu0 0.0
  %251 = vmatprep.subr.mxu0 0.0
  %252 = vmatpush1.msra.mxu0 0.0
  %253 = vmatprep.subr.mxu0 0.0
  %254 = vmatpush1.msra.mxu0 0.0
  %255 = vmatprep.subr.mxu0 0.0
  %256 = vmatpush1.msra.mxu0 0.0
  %257 = vmatprep.subr.mxu0 0.0
  %258 = vmatpush1.msra.mxu0 0.0
  %259 = vmatprep.subr.mxu0 0.0
  %260 = vmatpush1.msra.mxu0 0.0
  %261 = vmatprep.subr.mxu0 0.0
  %262 = vmatpush1.msra.mxu0 0.0
  %263 = vmatprep.subr.mxu0 0.0
  %264 = vmatpush1.msra.mxu0 0.0
  %265 = vmatprep.subr.mxu0 0.0
  %266 = vmatpush1.msra.mxu0 0.0
  %267 = vmatprep.subr.mxu0 0.0
  %268 = vmatpush1.msra.mxu0 0.0
  %269 = vmatprep.subr.mxu0 0.0
  %270 = vmatpush1.msra.mxu0 0.0
  %271 = vmatprep.subr.mxu0 0.0
  %272 = vmatpush1.msra.mxu0 0.0
  %273 = vmatprep.subr.mxu0 0.0
  %274 = vmatpush1.msra.mxu0 0.0
  %275 = vmatprep.subr.mxu0 0.0
  %276 = vmatpush1.msra.mxu0 0.0
  %277 = vmatprep.subr.mxu0 0.0
  %278 = vmatpush1.msra.mxu0 0.0
  %279 = vmatprep.subr.mxu0 0.0
  %280 = vmatpush1.msra.mxu0 0.0
  %281 = vmatprep.subr.mxu0 0.0
  %282 = vmatpush1.msra.mxu0 0.0
  %283 = vmatprep.subr.mxu0 0.0
  %284 = vmatpush1.msra.mxu0 0.0
  %285 = vmatprep.subr.mxu0 0.0
  %286 = vmatpush1.msra.mxu0 0.0
  %287 = vmatprep.subr.mxu0 0.0
  %288 = vmatpush1.msra.mxu0 0.0
  %289 = vmatprep.subr.mxu0 0.0
  %290 = vmatpush1.msra.mxu0 0.0
  %291 = vmatprep.subr.mxu0 0.0
  %292 = vmatpush1.msra.mxu0 0.0
  %293 = vmatprep.subr.mxu0 0.0
  %294 = vmatpush1.msra.mxu0 0.0
  %295 = vmatprep.subr.mxu0 0.0
  %296 = vmatpush1.msra.mxu0 0.0
  %297 = vmatprep.subr.mxu0 0.0
  %298 = vmatpush1.msra.mxu0 0.0
  %299 = vmatprep.mubr.f32.mxu0 0.0
  %300 = vmatmul.mubr.f32.gmra.mrb[0].mxu0 %v85
  %v301 = vpop.f32.mrb[0].mxu0
  %v302 = vadd.f32 %v81, %v301
  %v303 = vpop.f32.mrb[0].mxu0
  %304 = vmatprep.mubr.f32.mxu0 0.0
  %305 = vmatmul.mubr.f32.gmra.mrb[0].mxu0 %v88
  %v306 = vpop.f32.mrb[0].mxu0
  %v307 = vadd.f32 %v81, %v306
  %v308 = vpop.f32.mrb[0].mxu0
  %309 = vmatprep.mubr.f32.mxu0 0.0
  %310 = vmatmul.mubr.f32.gmra.mrb[0].mxu0 %v91
  %v311 = vpop.f32.mrb[0].mxu0
  %v312 = vadd.f32 %v81, %v311
  %v313 = vpop.f32.mrb[0].mxu0
  %314 = vmatprep.mubr.f32.mxu0 0.0
  %315 = vmatmul.mubr.f32.gmra.mrb[0].mxu0 %v94
  %v316 = vpop.f32.mrb[0].mxu0
  %v317 = vadd.f32 %v81, %v316
  %v318 = vpop.f32.mrb[0].mxu0
  %319 = vmatprep.mubr.f32.mxu0 0.0
  %320 = vmatmul.mubr.f32.gmra.mrb[0].mxu0 %v97
  %v321 = vpop.f32.mrb[0].mxu0
  %v322 = vadd.f32 %v81, %v321
  %v323 = vpop.f32.mrb[0].mxu0
  %324 = vmatprep.mubr.f32.mxu0 0.0
  %325 = vmatmul.mubr.f32.gmra.mrb[0].mxu0 %v100
  %v326 = vpop.f32.mrb[0].mxu0
  %v327 = vadd.f32 %v81, %v326
  %v328 = vpop.f32.mrb[0].mxu0
  %329 = vmatprep.mubr.f32.mxu0 0.0
  %330 = vmatmul.mubr.f32.gmra.mrb[0].mxu0 %v103
  %v331 = vpop.f32.mrb[0].mxu0
  %v332 = vadd.f32 %v81, %v331
  %v333 = vpop.f32.mrb[0].mxu0
  %334 = vmatprep.mubr.f32.mxu0 0.0
  %335 = vmatmul.mubr.f32.gmra.mrb[0].mxu0 %v106
  %v336 = vpop.f32.mrb[0].mxu0
  %v337 = vadd.f32 %v81, %v336
  %v338 = vpop.f32.mrb[0].mxu0
  %339 = vmatprep.mubr.f32.mxu0 0.0
  %340 = vmatmul.mubr.f32.gmra.mrb[0].mxu0 %v109
  %v341 = vpop.f32.mrb[0].mxu0
  %v342 = vadd.f32 %v81, %v341
  %v343 = vpop.f32.mrb[0].mxu0
  %344 = vmatprep.mubr.f32.mxu0 0.0
  %345 = vmatmul.mubr.f32.gmra.mrb[0].mxu0 %v112
  %v346 = vpop.f32.mrb[0].mxu0
  %v347 = vadd.f32 %v81, %v346
  %v348 = vpop.f32.mrb[0].mxu0
  %349 = vmatprep.mubr.f32.mxu0 0.0
  %350 = vmatmul.mubr.f32.gmra.mrb[0].mxu0 %v115
  %v351 = vpop.f32.mrb[0].mxu0
  %v352 = vadd.f32 %v81, %v351
  %v353 = vpop.f32.mrb[0].mxu0
  %354 = vmatprep.mubr.f32.mxu0 0.0
  %355 = vmatmul.mubr.f32.gmra.mrb[0].mxu0 %v118
  %v356 = vpop.f32.mrb[0].mxu0
  %v357 = vadd.f32 %v81, %v356
  %v358 = vpop.f32.mrb[0].mxu0
  %359 = vmatprep.mubr.f32.mxu0 0.0
  %360 = vmatmul.mubr.f32.gmra.mrb[0].mxu0 %v121
  %v361 = vpop.f32.mrb[0].mxu0
  %v362 = vadd.f32 %v81, %v361
  %v363 = vpop.f32.mrb[0].mxu0
  %364 = vmatprep.mubr.f32.mxu0 0.0
  %365 = vmatmul.mubr.f32.gmra.mrb[0].mxu0 %v124
  %v366 = vpop.f32.mrb[0].mxu0
  %v367 = vadd.f32 %v81, %v366
  %v368 = vpop.f32.mrb[0].mxu0
  %369 = vmatprep.mubr.f32.mxu0 0.0
  %370 = vmatmul.mubr.f32.gmra.mrb[0].mxu0 %v127
  %v371 = vpop.f32.mrb[0].mxu0
  %v372 = vadd.f32 %v81, %v371
  %v373 = vpop.f32.mrb[0].mxu0
  %374 = vmatprep.mubr.f32.mxu0 0.0
  %375 = vmatmul.mubr.f32.gmra.mrb[0].mxu0 %v130
  %v376 = vpop.f32.mrb[0].mxu0
  %v377 = vadd.f32 %v81, %v376
  %v378 = vpop.f32.mrb[0].mxu0
  %379 = vmatprep.mubr.f32.mxu0 0.0
  %380 = vmatmul.mubr.f32.gmra.mrb[0].mxu0 %v133
  %v381 = vpop.f32.mrb[0].mxu0
  %v382 = vadd.f32 %v81, %v381
  %v383 = vpop.f32.mrb[0].mxu0
  %384 = vmatprep.mubr.f32.mxu0 0.0
  %385 = vmatmul.mubr.f32.gmra.mrb[0].mxu0 %v136
  %v386 = vpop.f32.mrb[0].mxu0
  %v387 = vadd.f32 %v81, %v386
  %v388 = vpop.f32.mrb[0].mxu0
  %389 = vmatprep.mubr.f32.mxu0 0.0
  %390 = vmatmul.mubr.f32.gmra.mrb[0].mxu0 %v139
  %v391 = vpop.f32.mrb[0].mxu0
  %v392 = vadd.f32 %v81, %v391
  %v393 = vpop.f32.mrb[0].mxu0
  %394 = vmatprep.mubr.f32.mxu0 0.0
  %395 = vmatmul.mubr.f32.gmra.mrb[0].mxu0 %v142
  %v396 = vpop.f32.mrb[0].mxu0
  %v397 = vadd.f32 %v81, %v396
  %v398 = vpop.f32.mrb[0].mxu0
  %399 = vmatprep.mubr.f32.mxu0 0.0
  %400 = vmatmul.mubr.f32.gmra.mrb[0].mxu0 %v145
  %v401 = vpop.f32.mrb[0].mxu0
  %v402 = vadd.f32 %v81, %v401
  %v403 = vpop.f32.mrb[0].mxu0
  %404 = vmatprep.mubr.f32.mxu0 0.0
  %405 = vmatmul.mubr.f32.gmra.mrb[0].mxu0 %v148
  %v406 = vpop.f32.mrb[0].mxu0
  %v407 = vadd.f32 %v81, %v406
  %v408 = vpop.f32.mrb[0].mxu0
  %409 = vmatprep.mubr.f32.mxu0 0.0
  %410 = vmatmul.mubr.f32.gmra.mrb[0].mxu0 %v151
  %v411 = vpop.f32.mrb[0].mxu0
  %v412 = vadd.f32 %v81, %v411
  %v413 = vpop.f32.mrb[0].mxu0
  %414 = vmatprep.mubr.f32.mxu0 0.0
  %415 = vmatmul.mubr.f32.gmra.mrb[0].mxu0 %v154
  %v416 = vpop.f32.mrb[0].mxu0
  %v417 = vadd.f32 %v81, %v416
  %v418 = vpop.f32.mrb[0].mxu0
  %419 = vmatprep.mubr.f32.mxu0 0.0
  %420 = vmatmul.mubr.f32.gmra.mrb[0].mxu0 %v157
  %v421 = vpop.f32.mrb[0].mxu0
  %v422 = vadd.f32 %v81, %v421
  %v423 = vpop.f32.mrb[0].mxu0
  %424 = vmatprep.mubr.f32.mxu0 0.0
  %425 = vmatmul.mubr.f32.gmra.mrb[0].mxu0 %v160
  %v426 = vpop.f32.mrb[0].mxu0
  %v427 = vadd.f32 %v81, %v426
  %v428 = vpop.f32.mrb[0].mxu0
  %429 = vmatprep.mubr.f32.mxu0 0.0
  %430 = vmatmul.mubr.f32.gmra.mrb[0].mxu0 %v163
  %v431 = vpop.f32.mrb[0].mxu0
  %v432 = vadd.f32 %v81, %v431
  %v433 = vpop.f32.mrb[0].mxu0
  %434 = vmatprep.mubr.f32.mxu0 0.0
  %435 = vmatmul.mubr.f32.gmra.mrb[0].mxu0 %v166
  %v436 = vpop.f32.mrb[0].mxu0
  %v437 = vadd.f32 %v81, %v436
  %v438 = vpop.f32.mrb[0].mxu0
  %439 = vmatprep.mubr.f32.mxu0 0.0
  %440 = vmatmul.mubr.f32.gmra.mrb[0].mxu0 %v169
  %v441 = vpop.f32.mrb[0].mxu0
  %v442 = vadd.f32 %v81, %v441
  %v443 = vpop.f32.mrb[0].mxu0
  %444 = vmatprep.mubr.f32.mxu0 0.0
  %445 = vmatmul.mubr.f32.gmra.mrb[0].mxu0 %v172
  %v446 = vpop.f32.mrb[0].mxu0
  %v447 = vadd.f32 %v81, %v446
  %v448 = vpop.f32.mrb[0].mxu0
  %449 = vmatprep.mubr.f32.mxu0 0.0
  %450 = vmatmul.mubr.f32.gmra.mrb[0].mxu0 %v175
  %v451 = vpop.f32.mrb[0].mxu0
  %v452 = vadd.f32 %v81, %v451
  %v453 = vpop.f32.mrb[0].mxu0
  %454 = vmatprep.mubr.f32.mxu0 0.0
  %455 = vmatmul.mubr.f32.gmra.mrb[0].mxu0 %v178
  %v456 = vpop.f32.mrb[0].mxu0
  %v457 = vadd.f32 %v81, %v456
  %v458 = vpop.f32.mrb[0].mxu0
  %459 = vmatprep.mubr.f32.mxu0 0.0
  %460 = vmatmul.mubr.f32.gmra.mrb[0].mxu0 %v181
  %v461 = vpop.f32.mrb[0].mxu0
  %v462 = vadd.f32 %v81, %v461
  %v463 = vpop.f32.mrb[0].mxu0
  %464 = vmatprep.mubr.f32.mxu0 0.0
  %465 = vmatmul.mubr.f32.gmra.mrb[0].mxu0 %v184
  %v466 = vpop.f32.mrb[0].mxu0
  %v467 = vadd.f32 %v81, %v466
  %v468 = vpop.f32.mrb[0].mxu0
  %469 = vmatprep.mubr.f32.mxu0 0.0
  %470 = vmatmul.mubr.f32.gmra.mrb[0].mxu0 %v187
  %v471 = vpop.f32.mrb[0].mxu0
  %v472 = vadd.f32 %v81, %v471
  %v473 = vpop.f32.mrb[0].mxu0
  %474 = vmatprep.mubr.f32.mxu0 0.0
  %475 = vmatmul.mubr.f32.gmra.mrb[0].mxu0 %v190
  %v476 = vpop.f32.mrb[0].mxu0
  %v477 = vadd.f32 %v81, %v476
  %v478 = vpop.f32.mrb[0].mxu0
  %479 = vmatprep.mubr.f32.mxu0 0.0
  %480 = vmatmul.mubr.f32.gmra.mrb[0].mxu0 %v193
  %v481 = vpop.f32.mrb[0].mxu0
  %v482 = vadd.f32 %v81, %v481
  %v483 = vpop.f32.mrb[0].mxu0
  %484 = vmatprep.mubr.f32.mxu0 0.0
  %485 = vmatmul.mubr.f32.gmra.mrb[0].mxu0 %v196
  %v486 = vpop.f32.mrb[0].mxu0
  %v487 = vadd.f32 %v81, %v486
  %v488 = vpop.f32.mrb[0].mxu0
  %489 = vmatprep.mubr.f32.mxu0 0.0
  %490 = vmatmul.mubr.f32.gmra.mrb[0].mxu0 %v199
  %v491 = vpop.f32.mrb[0].mxu0
  %v492 = vadd.f32 %v81, %v491
  %v493 = vpop.f32.mrb[0].mxu0
  %494 = vmatprep.mubr.f32.mxu0 0.0
  %495 = vmatmul.mubr.f32.gmra.mrb[0].mxu0 %v202
  %v496 = vpop.f32.mrb[0].mxu0
  %v497 = vadd.f32 %v81, %v496
  %v498 = vpop.f32.mrb[0].mxu0
  %499 = vmatprep.mubr.f32.mxu0 0.0
  %500 = vmatmul.mubr.f32.gmra.mrb[0].mxu0 %v205
  %v501 = vpop.f32.mrb[0].mxu0
  %v502 = vadd.f32 %v81, %v501
  %v503 = vpop.f32.mrb[0].mxu0
  %504 = vmatprep.mubr.f32.mxu0 0.0
  %505 = vmatmul.mubr.f32.gmra.mrb[0].mxu0 %v208
  %v506 = vpop.f32.mrb[0].mxu0
  %v507 = vadd.f32 %v81, %v506
  %v508 = vpop.f32.mrb[0].mxu0
  %509 = vmatprep.mubr.f32.mxu0 0.0
  %510 = vmatmul.mubr.f32.gmra.mrb[0].mxu0 %v211
  %v511 = vpop.f32.mrb[0].mxu0
  %v512 = vadd.f32 %v81, %v511
  %v513 = vpop.f32.mrb[0].mxu0
  %514 = vmatprep.mubr.f32.mxu0 0.0
  %515 = vmatmul.mubr.f32.gmra.mrb[0].mxu0 %v214
  %v516 = vpop.f32.mrb[0].mxu0
  %v517 = vadd.f32 %v81, %v516
  %v518 = vpop.f32.mrb[0].mxu0
  %519 = vmatprep.mubr.f32.mxu0 0.0
  %520 = vmatmul.mubr.f32.gmra.mrb[0].mxu0 %v217
  %v521 = vpop.f32.mrb[0].mxu0
  %v522 = vadd.f32 %v81, %v521
  %v523 = vpop.f32.mrb[0].mxu0
  %524 = vmatprep.mubr.f32.mxu0 0.0
  %525 = vmatmul.mubr.f32.gmra.mrb[0].mxu0 %v220
  %v526 = vpop.f32.mrb[0].mxu0
  %v527 = vadd.f32 %v81, %v526
  %v528 = vpop.f32.mrb[0].mxu0
  %529 = vmatprep.mubr.f32.mxu0 0.0
  %530 = vmatmul.mubr.f32.gmra.mrb[0].mxu0 %v223
  %v531 = vpop.f32.mrb[0].mxu0
  %v532 = vadd.f32 %v81, %v531
  %v533 = vpop.f32.mrb[0].mxu0
  %534 = vmatprep.mubr.f32.mxu0 0.0
  %535 = vmatmul.mubr.f32.gmra.mrb[0].mxu0 %v226
  %v536 = vpop.f32.mrb[0].mxu0
  %v537 = vadd.f32 %v81, %v536
  %v538 = vpop.f32.mrb[0].mxu0
  %539 = vmatprep.mubr.f32.mxu0 0.0
  %540 = vmatmul.mubr.f32.gmra.mrb[0].mxu0 %v229
  %v541 = vpop.f32.mrb[0].mxu0
  %v542 = vadd.f32 %v81, %v541
  %v543 = vpop.f32.mrb[0].mxu0
  %544 = vdwg.mxu0
  %v545 = vtanh.pop %v302
  %v546 = vtanh.pop %v307
  %v547 = vtanh.pop %v312
  %v548 = vtanh.pop %v317
  %v549 = vtanh.pop %v322
  %v550 = vtanh.pop %v327
  %v551 = vtanh.pop %v332
  %v552 = vtanh.pop %v337
  %v553 = vtanh.pop %v342
  %v554 = vtanh.pop %v347
  %v555 = vtanh.pop %v352
  %v556 = vtanh.pop %v357
  %v557 = vtanh.pop %v362
  %v558 = vtanh.pop %v367
  %v559 = vtanh.pop %v372
  %v560 = vtanh.pop %v377
  %v561 = vtanh.pop %v382
  %v562 = vtanh.pop %v387
  %v563 = vtanh.pop %v392
  %v564 = vtanh.pop %v397
  %v565 = vtanh.pop %v402
  %v566 = vtanh.pop %v407
  %v567 = vtanh.pop %v412
  %v568 = vtanh.pop %v417
  %v569 = vtanh.pop %v422
  %v570 = vtanh.pop %v427
  %v571 = vtanh.pop %v432
  %v572 = vtanh.pop %v437
  %v573 = vtanh.pop %v442
  %v574 = vtanh.pop %v447
  %v575 = vtanh.pop %v452
  %v576 = vtanh.pop %v457
  %v577 = vtanh.pop %v462
  %v578 = vtanh.pop %v467
  %v579 = vtanh.pop %v472
  %v580 = vtanh.pop %v477
  %v581 = vtanh.pop %v482
  %v582 = vtanh.pop %v487
  %v583 = vtanh.pop %v492
  %v584 = vtanh.pop %v497
  %v585 = vtanh.pop %v502
  %v586 = vtanh.pop %v507
  %v587 = vtanh.pop %v512
  %v588 = vtanh.pop %v517
  %v589 = vtanh.pop %v522
  %v590 = vtanh.pop %v527
  %v591 = vtanh.pop %v532
  %v592 = vtanh.pop %v537
  %v593 = vtanh.pop %v542
  %v594 = vld [vmem:[%s1] sm:$0xff]
  %v595 = vld [vmem:[%s1 + $0x8] sm:$0xff]
  %v596 = vld [vmem:[%s1 + $0x10] sm:$0xff]
  %v597 = vld [vmem:[%s1 + $0x18] sm:$0xff]
  %v598 = vld [vmem:[%s1 + $0x20] sm:$0xff]
  %v599 = vld [vmem:[%s1 + $0x28] sm:$0xff]
  %v600 = vld [vmem:[%s1 + $0x30] sm:$0xff]
  %v601 = vld [vmem:[%s1 + $0x38] sm:$0xff]
  %v602 = vld [vmem:[%s1 + $0x40] sm:$0xff]
  %v603 = vld [vmem:[%s1 + $0x48] sm:$0xff]
  %v604 = vld [vmem:[%s1 + $0x50] sm:$0xff]
  %v605 = vld [vmem:[%s1 + $0x58] sm:$0xff]
  %v606 = vld [vmem:[%s1 + $0x60] sm:$0xff]
  %v607 = vld [vmem:[%s1 + $0x68] sm:$0xff]
  %v608 = vld [vmem:[%s1 + $0x70] sm:$0xff]
  %v609 = vld [vmem:[%s1 + $0x78] sm:$0xff]
  %v610 = vld [vmem:[%s1 + $0x80] sm:$0xff]
  %v611 = vld [vmem:[%s1 + $0x88] sm:$0xff]
  %v612 = vld [vmem:[%s1 + $0x90] sm:$0xff]
  %v613 = vld [vmem:[%s1 + $0x98] sm:$0xff]
  %v614 = vld [vmem:[%s1 + $0xa0] sm:$0xff]
  %v615 = vld [vmem:[%s1 + $0xa8] sm:$0xff]
  %v616 = vld [vmem:[%s1 + $0xb0] sm:$0xff]
  %v617 = vld [vmem:[%s1 + $0xb8] sm:$0xff]
  %v618 = vld [vmem:[%s1 + $0xc0] sm:$0xff]
  %v619 = vld [vmem:[%s1 + $0xc8] sm:$0xff]
  %v620 = vld [vmem:[%s1 + $0xd0] sm:$0xff]
  %v621 = vld [vmem:[%s1 + $0xd8] sm:$0xff]
  %v622 = vld [vmem:[%s1 + $0xe0] sm:$0xff]
  %v623 = vld [vmem:[%s1 + $0xe8] sm:$0xff]
  %v624 = vld [vmem:[%s1 + $0xf0] sm:$0xff]
  %v625 = vld [vmem:[%s1 + $0xf8] sm:$0xff]
  %v626 = vld [vmem:[%s1 + $0x100] sm:$0xff]
  %v627 = vld [vmem:[%s1 + $0x108] sm:$0xff]
  %v628 = vld [vmem:[%s1 + $0x110] sm:$0xff]
  %v629 = vld [vmem:[%s1 + $0x118] sm:$0xff]
  %v630 = vld [vmem:[%s1 + $0x120] sm:$0xff]
  %v631 = vld [vmem:[%s1 + $0x128] sm:$0xff]
  %v632 = vld [vmem:[%s1 + $0x130] sm:$0xff]
  %v633 = vld [vmem:[%s1 + $0x138] sm:$0xff]
  %v634 = vld [vmem:[%s1 + $0x140] sm:$0xff]
  %v635 = vld [vmem:[%s1 + $0x148] sm:$0xff]
  %v636 = vld [vmem:[%s1 + $0x150] sm:$0xff]
  %v637 = vld [vmem:[%s1 + $0x158] sm:$0xff]
  %v638 = vld [vmem:[%s1 + $0x160] sm:$0xff]
  %v639 = vld [vmem:[%s1 + $0x168] sm:$0xff]
  %v640 = vld [vmem:[%s1 + $0x170] sm:$0xff]
  %v641 = vld [vmem:[%s1 + $0x178] sm:$0xff]
  %v642 = vld [vmem:[%s1 + $0x180] sm:$0xff]
  %v644 = vsel %vm83, %v594, 0
  %v647 = vsel %vm83, %v595, 0
  %v650 = vsel %vm83, %v596, 0
  %v653 = vsel %vm83, %v597, 0
  %v656 = vsel %vm83, %v598, 0
  %v659 = vsel %vm83, %v599, 0
  %v662 = vsel %vm83, %v600, 0
  %v665 = vsel %vm83, %v601, 0
  %v668 = vsel %vm83, %v602, 0
  %v671 = vsel %vm83, %v603, 0
  %v674 = vsel %vm83, %v604, 0
  %v677 = vsel %vm83, %v605, 0
  %v680 = vsel %vm83, %v606, 0
  %v683 = vsel %vm83, %v607, 0
  %v686 = vsel %vm83, %v608, 0
  %v689 = vsel %vm83, %v609, 0
  %v692 = vsel %vm83, %v610, 0
  %v695 = vsel %vm83, %v611, 0
  %v698 = vsel %vm83, %v612, 0
  %v701 = vsel %vm83, %v613, 0
  %v704 = vsel %vm83, %v614, 0
  %v707 = vsel %vm83, %v615, 0
  %v710 = vsel %vm83, %v616, 0
  %v713 = vsel %vm83, %v617, 0
  %v716 = vsel %vm83, %v618, 0
  %v719 = vsel %vm83, %v619, 0
  %v722 = vsel %vm83, %v620, 0
  %v725 = vsel %vm83, %v621, 0
  %v728 = vsel %vm83, %v622, 0
  %v731 = vsel %vm83, %v623, 0
  %v734 = vsel %vm83, %v624, 0
  %v737 = vsel %vm83, %v625, 0
  %v740 = vsel %vm83, %v626, 0
  %v743 = vsel %vm83, %v627, 0
  %v746 = vsel %vm83, %v628, 0
  %v749 = vsel %vm83, %v629, 0
  %v752 = vsel %vm83, %v630, 0
  %v755 = vsel %vm83, %v631, 0
  %v758 = vsel %vm83, %v632, 0
  %v761 = vsel %vm83, %v633, 0
  %v764 = vsel %vm83, %v634, 0
  %v767 = vsel %vm83, %v635, 0
  %v770 = vsel %vm83, %v636, 0
  %v773 = vsel %vm83, %v637, 0
  %v776 = vsel %vm83, %v638, 0
  %v779 = vsel %vm83, %v639, 0
  %v782 = vsel %vm83, %v640, 0
  %v785 = vsel %vm83, %v641, 0
  %v788 = vsel %vm83, %v642, 0
  %790 = vmatprep.subr.mxu0 0.0
  %791 = vmatpush1.msra.mxu0 %v23
  %792 = vmatprep.subr.mxu0 0.0
  %793 = vmatpush1.msra.mxu0 %v24
  %794 = vmatprep.subr.mxu0 0.0
  %795 = vmatpush1.msra.mxu0 %v25
  %796 = vmatprep.subr.mxu0 0.0
  %797 = vmatpush1.msra.mxu0 %v233
  %798 = vmatprep.subr.mxu0 0.0
  %799 = vmatpush1.msra.mxu0 0.0
  %800 = vmatprep.subr.mxu0 0.0
  %801 = vmatpush1.msra.mxu0 0.0
  %802 = vmatprep.subr.mxu0 0.0
  %803 = vmatpush1.msra.mxu0 0.0
  %804 = vmatprep.subr.mxu0 0.0
  %805 = vmatpush1.msra.mxu0 0.0
  %806 = vmatprep.subr.mxu0 0.0
  %807 = vmatpush1.msra.mxu0 0.0
  %808 = vmatprep.subr.mxu0 0.0
  %809 = vmatpush1.msra.mxu0 0.0
  %810 = vmatprep.subr.mxu0 0.0
  %811 = vmatpush1.msra.mxu0 0.0
  %812 = vmatprep.subr.mxu0 0.0
  %813 = vmatpush1.msra.mxu0 0.0
  %814 = vmatprep.subr.mxu0 0.0
  %815 = vmatpush1.msra.mxu0 0.0
  %816 = vmatprep.subr.mxu0 0.0
  %817 = vmatpush1.msra.mxu0 0.0
  %818 = vmatprep.subr.mxu0 0.0
  %819 = vmatpush1.msra.mxu0 0.0
  %820 = vmatprep.subr.mxu0 0.0
  %821 = vmatpush1.msra.mxu0 0.0
  %822 = vmatprep.subr.mxu0 0.0
  %823 = vmatpush1.msra.mxu0 0.0
  %824 = vmatprep.subr.mxu0 0.0
  %825 = vmatpush1.msra.mxu0 0.0
  %826 = vmatprep.subr.mxu0 0.0
  %827 = vmatpush1.msra.mxu0 0.0
  %828 = vmatprep.subr.mxu0 0.0
  %829 = vmatpush1.msra.mxu0 0.0
  %830 = vmatprep.subr.mxu0 0.0
  %831 = vmatpush1.msra.mxu0 0.0
  %832 = vmatprep.subr.mxu0 0.0
  %833 = vmatpush1.msra.mxu0 0.0
  %834 = vmatprep.subr.mxu0 0.0
  %835 = vmatpush1.msra.mxu0 0.0
  %836 = vmatprep.subr.mxu0 0.0
  %837 = vmatpush1.msra.mxu0 0.0
  %838 = vmatprep.subr.mxu0 0.0
  %839 = vmatpush1.msra.mxu0 0.0
  %840 = vmatprep.subr.mxu0 0.0
  %841 = vmatpush1.msra.mxu0 0.0
  %842 = vmatprep.subr.mxu0 0.0
  %843 = vmatpush1.msra.mxu0 0.0
  %844 = vmatprep.subr.mxu0 0.0
  %845 = vmatpush1.msra.mxu0 0.0
  %846 = vmatprep.subr.mxu0 0.0
  %847 = vmatpush1.msra.mxu0 0.0
  %848 = vmatprep.subr.mxu0 0.0
  %849 = vmatpush1.msra.mxu0 0.0
  %850 = vmatprep.subr.mxu0 0.0
  %851 = vmatpush1.msra.mxu0 0.0
  %852 = vmatprep.subr.mxu0 0.0
  %853 = vmatpush1.msra.mxu0 0.0
  %854 = vmatprep.mubr.f32.mxu0 0.0
  %855 = vmatmul.mubr.f32.gmra.mrb[0].mxu0 %v644
  %v856 = vpop.f32.mrb[0].mxu0
  %v857 = vadd.f32 %v81, %v856
  %v858 = vpop.f32.mrb[0].mxu0
  %859 = vmatprep.mubr.f32.mxu0 0.0
  %860 = vmatmul.mubr.f32.gmra.mrb[0].mxu0 %v647
  %v861 = vpop.f32.mrb[0].mxu0
  %v862 = vadd.f32 %v81, %v861
  %v863 = vpop.f32.mrb[0].mxu0
  %864 = vmatprep.mubr.f32.mxu0 0.0
  %865 = vmatmul.mubr.f32.gmra.mrb[0].mxu0 %v650
  %v866 = vpop.f32.mrb[0].mxu0
  %v867 = vadd.f32 %v81, %v866
  %v868 = vpop.f32.mrb[0].mxu0
  %869 = vmatprep.mubr.f32.mxu0 0.0
  %870 = vmatmul.mubr.f32.gmra.mrb[0].mxu0 %v653
  %v871 = vpop.f32.mrb[0].mxu0
  %v872 = vadd.f32 %v81, %v871
  %v873 = vpop.f32.mrb[0].mxu0
  %874 = vmatprep.mubr.f32.mxu0 0.0
  %875 = vmatmul.mubr.f32.gmra.mrb[0].mxu0 %v656
  %v876 = vpop.f32.mrb[0].mxu0
  %v877 = vadd.f32 %v81, %v876
  %v878 = vpop.f32.mrb[0].mxu0
  %879 = vmatprep.mubr.f32.mxu0 0.0
  %880 = vmatmul.mubr.f32.gmra.mrb[0].mxu0 %v659
  %v881 = vpop.f32.mrb[0].mxu0
  %v882 = vadd.f32 %v81, %v881
  %v883 = vpop.f32.mrb[0].mxu0
  %884 = vmatprep.mubr.f32.mxu0 0.0
  %885 = vmatmul.mubr.f32.gmra.mrb[0].mxu0 %v662
  %v886 = vpop.f32.mrb[0].mxu0
  %v887 = vadd.f32 %v81, %v886
  %v888 = vpop.f32.mrb[0].mxu0
  %889 = vmatprep.mubr.f32.mxu0 0.0
  %890 = vmatmul.mubr.f32.gmra.mrb[0].mxu0 %v665
  %v891 = vpop.f32.mrb[0].mxu0
  %v892 = vadd.f32 %v81, %v891
  %v893 = vpop.f32.mrb[0].mxu0
  %894 = vmatprep.mubr.f32.mxu0 0.0
  %895 = vmatmul.mubr.f32.gmra.mrb[0].mxu0 %v668
  %v896 = vpop.f32.mrb[0].mxu0
  %v897 = vadd.f32 %v81, %v896
  %v898 = vpop.f32.mrb[0].mxu0
  %899 = vmatprep.mubr.f32.mxu0 0.0
  %900 = vmatmul.mubr.f32.gmra.mrb[0].mxu0 %v671
  %v901 = vpop.f32.mrb[0].mxu0
  %v902 = vadd.f32 %v81, %v901
  %v903 = vpop.f32.mrb[0].mxu0
  %904 = vmatprep.mubr.f32.mxu0 0.0
  %905 = vmatmul.mubr.f32.gmra.mrb[0].mxu0 %v674
  %v906 = vpop.f32.mrb[0].mxu0
  %v907 = vadd.f32 %v81, %v906
  %v908 = vpop.f32.mrb[0].mxu0
  %909 = vmatprep.mubr.f32.mxu0 0.0
  %910 = vmatmul.mubr.f32.gmra.mrb[0].mxu0 %v677
  %v911 = vpop.f32.mrb[0].mxu0
  %v912 = vadd.f32 %v81, %v911
  %v913 = vpop.f32.mrb[0].mxu0
  %914 = vmatprep.mubr.f32.mxu0 0.0
  %915 = vmatmul.mubr.f32.gmra.mrb[0].mxu0 %v680
  %v916 = vpop.f32.mrb[0].mxu0
  %v917 = vadd.f32 %v81, %v916
  %v918 = vpop.f32.mrb[0].mxu0
  %919 = vmatprep.mubr.f32.mxu0 0.0
  %920 = vmatmul.mubr.f32.gmra.mrb[0].mxu0 %v683
  %v921 = vpop.f32.mrb[0].mxu0
  %v922 = vadd.f32 %v81, %v921
  %v923 = vpop.f32.mrb[0].mxu0
  %924 = vmatprep.mubr.f32.mxu0 0.0
  %925 = vmatmul.mubr.f32.gmra.mrb[0].mxu0 %v686
  %v926 = vpop.f32.mrb[0].mxu0
  %v927 = vadd.f32 %v81, %v926
  %v928 = vpop.f32.mrb[0].mxu0
  %929 = vmatprep.mubr.f32.mxu0 0.0
  %930 = vmatmul.mubr.f32.gmra.mrb[0].mxu0 %v689
  %v931 = vpop.f32.mrb[0].mxu0
  %v932 = vadd.f32 %v81, %v931
  %v933 = vpop.f32.mrb[0].mxu0
  %934 = vmatprep.mubr.f32.mxu0 0.0
  %935 = vmatmul.mubr.f32.gmra.mrb[0].mxu0 %v692
  %v936 = vpop.f32.mrb[0].mxu0
  %v937 = vadd.f32 %v81, %v936
  %v938 = vpop.f32.mrb[0].mxu0
  %939 = vmatprep.mubr.f32.mxu0 0.0
  %940 = vmatmul.mubr.f32.gmra.mrb[0].mxu0 %v695
  %v941 = vpop.f32.mrb[0].mxu0
  %v942 = vadd.f32 %v81, %v941
  %v943 = vpop.f32.mrb[0].mxu0
  %944 = vmatprep.mubr.f32.mxu0 0.0
  %945 = vmatmul.mubr.f32.gmra.mrb[0].mxu0 %v698
  %v946 = vpop.f32.mrb[0].mxu0
  %v947 = vadd.f32 %v81, %v946
  %v948 = vpop.f32.mrb[0].mxu0
  %949 = vmatprep.mubr.f32.mxu0 0.0
  %950 = vmatmul.mubr.f32.gmra.mrb[0].mxu0 %v701
  %v951 = vpop.f32.mrb[0].mxu0
  %v952 = vadd.f32 %v81, %v951
  %v953 = vpop.f32.mrb[0].mxu0
  %954 = vmatprep.mubr.f32.mxu0 0.0
  %955 = vmatmul.mubr.f32.gmra.mrb[0].mxu0 %v704
  %v956 = vpop.f32.mrb[0].mxu0
  %v957 = vadd.f32 %v81, %v956
  %v958 = vpop.f32.mrb[0].mxu0
  %959 = vmatprep.mubr.f32.mxu0 0.0
  %960 = vmatmul.mubr.f32.gmra.mrb[0].mxu0 %v707
  %v961 = vpop.f32.mrb[0].mxu0
  %v962 = vadd.f32 %v81, %v961
  %v963 = vpop.f32.mrb[0].mxu0
  %964 = vmatprep.mubr.f32.mxu0 0.0
  %965 = vmatmul.mubr.f32.gmra.mrb[0].mxu0 %v710
  %v966 = vpop.f32.mrb[0].mxu0
  %v967 = vadd.f32 %v81, %v966
  %v968 = vpop.f32.mrb[0].mxu0
  %969 = vmatprep.mubr.f32.mxu0 0.0
  %970 = vmatmul.mubr.f32.gmra.mrb[0].mxu0 %v713
  %v971 = vpop.f32.mrb[0].mxu0
  %v972 = vadd.f32 %v81, %v971
  %v973 = vpop.f32.mrb[0].mxu0
  %974 = vmatprep.mubr.f32.mxu0 0.0
  %975 = vmatmul.mubr.f32.gmra.mrb[0].mxu0 %v716
  %v976 = vpop.f32.mrb[0].mxu0
  %v977 = vadd.f32 %v81, %v976
  %v978 = vpop.f32.mrb[0].mxu0
  %979 = vmatprep.mubr.f32.mxu0 0.0
  %980 = vmatmul.mubr.f32.gmra.mrb[0].mxu0 %v719
  %v981 = vpop.f32.mrb[0].mxu0
  %v982 = vadd.f32 %v81, %v981
  %v983 = vpop.f32.mrb[0].mxu0
  %984 = vmatprep.mubr.f32.mxu0 0.0
  %985 = vmatmul.mubr.f32.gmra.mrb[0].mxu0 %v722
  %v986 = vpop.f32.mrb[0].mxu0
  %v987 = vadd.f32 %v81, %v986
  %v988 = vpop.f32.mrb[0].mxu0
  %989 = vmatprep.mubr.f32.mxu0 0.0
  %990 = vmatmul.mubr.f32.gmra.mrb[0].mxu0 %v725
  %v991 = vpop.f32.mrb[0].mxu0
  %v992 = vadd.f32 %v81, %v991
  %v993 = vpop.f32.mrb[0].mxu0
  %994 = vmatprep.mubr.f32.mxu0 0.0
  %995 = vmatmul.mubr.f32.gmra.mrb[0].mxu0 %v728
  %v996 = vpop.f32.mrb[0].mxu0
  %v997 = vadd.f32 %v81, %v996
  %v998 = vpop.f32.mrb[0].mxu0
  %999 = vmatprep.mubr.f32.mxu0 0.0
  %1000 = vmatmul.mubr.f32.gmra.mrb[0].mxu0 %v731
  %v1001 = vpop.f32.mrb[0].mxu0
  %v1002 = vadd.f32 %v81, %v1001
  %v1003 = vpop.f32.mrb[0].mxu0
  %1004 = vmatprep.mubr.f32.mxu0 0.0
  %1005 = vmatmul.mubr.f32.gmra.mrb[0].mxu0 %v734
  %v1006 = vpop.f32.mrb[0].mxu0
  %v1007 = vadd.f32 %v81, %v1006
  %v1008 = vpop.f32.mrb[0].mxu0
  %1009 = vmatprep.mubr.f32.mxu0 0.0
  %1010 = vmatmul.mubr.f32.gmra.mrb[0].mxu0 %v737
  %v1011 = vpop.f32.mrb[0].mxu0
  %v1012 = vadd.f32 %v81, %v1011
  %v1013 = vpop.f32.mrb[0].mxu0
  %1014 = vmatprep.mubr.f32.mxu0 0.0
  %1015 = vmatmul.mubr.f32.gmra.mrb[0].mxu0 %v740
  %v1016 = vpop.f32.mrb[0].mxu0
  %v1017 = vadd.f32 %v81, %v1016
  %v1018 = vpop.f32.mrb[0].mxu0
  %1019 = vmatprep.mubr.f32.mxu0 0.0
  %1020 = vmatmul.mubr.f32.gmra.mrb[0].mxu0 %v743
  %v1021 = vpop.f32.mrb[0].mxu0
  %v1022 = vadd.f32 %v81, %v1021
  %v1023 = vpop.f32.mrb[0].mxu0
  %1024 = vmatprep.mubr.f32.mxu0 0.0
  %1025 = vmatmul.mubr.f32.gmra.mrb[0].mxu0 %v746
  %v1026 = vpop.f32.mrb[0].mxu0
  %v1027 = vadd.f32 %v81, %v1026
  %v1028 = vpop.f32.mrb[0].mxu0
  %1029 = vmatprep.mubr.f32.mxu0 0.0
  %1030 = vmatmul.mubr.f32.gmra.mrb[0].mxu0 %v749
  %v1031 = vpop.f32.mrb[0].mxu0
  %v1032 = vadd.f32 %v81, %v1031
  %v1033 = vpop.f32.mrb[0].mxu0
  %1034 = vmatprep.mubr.f32.mxu0 0.0
  %1035 = vmatmul.mubr.f32.gmra.mrb[0].mxu0 %v752
  %v1036 = vpop.f32.mrb[0].mxu0
  %v1037 = vadd.f32 %v81, %v1036
  %v1038 = vpop.f32.mrb[0].mxu0
  %1039 = vmatprep.mubr.f32.mxu0 0.0
  %1040 = vmatmul.mubr.f32.gmra.mrb[0].mxu0 %v755
  %v1041 = vpop.f32.mrb[0].mxu0
  %v1042 = vadd.f32 %v81, %v1041
  %v1043 = vpop.f32.mrb[0].mxu0
  %1044 = vmatprep.mubr.f32.mxu0 0.0
  %1045 = vmatmul.mubr.f32.gmra.mrb[0].mxu0 %v758
  %v1046 = vpop.f32.mrb[0].mxu0
  %v1047 = vadd.f32 %v81, %v1046
  %v1048 = vpop.f32.mrb[0].mxu0
  %1049 = vmatprep.mubr.f32.mxu0 0.0
  %1050 = vmatmul.mubr.f32.gmra.mrb[0].mxu0 %v761
  %v1051 = vpop.f32.mrb[0].mxu0
  %v1052 = vadd.f32 %v81, %v1051
  %v1053 = vpop.f32.mrb[0].mxu0
  %1054 = vmatprep.mubr.f32.mxu0 0.0
  %1055 = vmatmul.mubr.f32.gmra.mrb[0].mxu0 %v764
  %v1056 = vpop.f32.mrb[0].mxu0
  %v1057 = vadd.f32 %v81, %v1056
  %v1058 = vpop.f32.mrb[0].mxu0
  %1059 = vmatprep.mubr.f32.mxu0 0.0
  %1060 = vmatmul.mubr.f32.gmra.mrb[0].mxu0 %v767
  %v1061 = vpop.f32.mrb[0].mxu0
  %v1062 = vadd.f32 %v81, %v1061
  %v1063 = vpop.f32.mrb[0].mxu0
  %1064 = vmatprep.mubr.f32.mxu0 0.0
  %1065 = vmatmul.mubr.f32.gmra.mrb[0].mxu0 %v770
  %v1066 = vpop.f32.mrb[0].mxu0
  %v1067 = vadd.f32 %v81, %v1066
  %v1068 = vpop.f32.mrb[0].mxu0
  %1069 = vmatprep.mubr.f32.mxu0 0.0
  %1070 = vmatmul.mubr.f32.gmra.mrb[0].mxu0 %v773
  %v1071 = vpop.f32.mrb[0].mxu0
  %v1072 = vadd.f32 %v81, %v1071
  %v1073 = vpop.f32.mrb[0].mxu0
  %1074 = vmatprep.mubr.f32.mxu0 0.0
  %1075 = vmatmul.mubr.f32.gmra.mrb[0].mxu0 %v776
  %v1076 = vpop.f32.mrb[0].mxu0
  %v1077 = vadd.f32 %v81, %v1076
  %v1078 = vpop.f32.mrb[0].mxu0
  %1079 = vmatprep.mubr.f32.mxu0 0.0
  %1080 = vmatmul.mubr.f32.gmra.mrb[0].mxu0 %v779
  %v1081 = vpop.f32.mrb[0].mxu0
  %v1082 = vadd.f32 %v81, %v1081
  %v1083 = vpop.f32.mrb[0].mxu0
  %1084 = vmatprep.mubr.f32.mxu0 0.0
  %1085 = vmatmul.mubr.f32.gmra.mrb[0].mxu0 %v782
  %v1086 = vpop.f32.mrb[0].mxu0
  %v1087 = vadd.f32 %v81, %v1086
  %v1088 = vpop.f32.mrb[0].mxu0
  %1089 = vmatprep.mubr.f32.mxu0 0.0
  %1090 = vmatmul.mubr.f32.gmra.mrb[0].mxu0 %v785
  %v1091 = vpop.f32.mrb[0].mxu0
  %v1092 = vadd.f32 %v81, %v1091
  %v1093 = vpop.f32.mrb[0].mxu0
  %1094 = vmatprep.mubr.f32.mxu0 0.0
  %1095 = vmatmul.mubr.f32.gmra.mrb[0].mxu0 %v788
  %v1096 = vpop.f32.mrb[0].mxu0
  %v1097 = vadd.f32 %v81, %v1096
  %v1098 = vpop.f32.mrb[0].mxu0
  %1099 = vdwg.mxu0
  %v1100 = vtanh.pop %v857
  %v1101 = vtanh.pop %v862
  %v1102 = vtanh.pop %v867
  %v1103 = vtanh.pop %v872
  %v1104 = vtanh.pop %v877
  %v1105 = vtanh.pop %v882
  %v1106 = vtanh.pop %v887
  %v1107 = vtanh.pop %v892
  %v1108 = vtanh.pop %v897
  %v1109 = vtanh.pop %v902
  %v1110 = vtanh.pop %v907
  %v1111 = vtanh.pop %v912
  %v1112 = vtanh.pop %v917
  %v1113 = vtanh.pop %v922
  %v1114 = vtanh.pop %v927
  %v1115 = vtanh.pop %v932
  %v1116 = vtanh.pop %v937
  %v1117 = vtanh.pop %v942
  %v1118 = vtanh.pop %v947
  %v1119 = vtanh.pop %v952
  %v1120 = vtanh.pop %v957
  %v1121 = vtanh.pop %v962
  %v1122 = vtanh.pop %v967
  %v1123 = vtanh.pop %v972
  %v1124 = vtanh.pop %v977
  %v1125 = vtanh.pop %v982
  %v1126 = vtanh.pop %v987
  %v1127 = vtanh.pop %v992
  %v1128 = vtanh.pop %v997
  %v1129 = vtanh.pop %v1002
  %v1130 = vtanh.pop %v1007
  %v1131 = vtanh.pop %v1012
  %v1132 = vtanh.pop %v1017
  %v1133 = vtanh.pop %v1022
  %v1134 = vtanh.pop %v1027
  %v1135 = vtanh.pop %v1032
  %v1136 = vtanh.pop %v1037
  %v1137 = vtanh.pop %v1042
  %v1138 = vtanh.pop %v1047
  %v1139 = vtanh.pop %v1052
  %v1140 = vtanh.pop %v1057
  %v1141 = vtanh.pop %v1062
  %v1142 = vtanh.pop %v1067
  %v1143 = vtanh.pop %v1072
  %v1144 = vtanh.pop %v1077
  %v1145 = vtanh.pop %v1082
  %v1146 = vtanh.pop %v1087
  %v1147 = vtanh.pop %v1092
  %v1148 = vtanh.pop %v1097
  %v1149 = vadd.f32 %v545, %v1100
  %v1150 = vadd.f32 %v546, %v1101
  %v1151 = vadd.f32 %v547, %v1102
  %v1152 = vadd.f32 %v548, %v1103
  %v1153 = vadd.f32 %v549, %v1104
  %v1154 = vadd.f32 %v550, %v1105
  %v1155 = vadd.f32 %v551, %v1106
  %v1156 = vadd.f32 %v552, %v1107
  %v1157 = vadd.f32 %v553, %v1108
  %v1158 = vadd.f32 %v554, %v1109
  %v1159 = vadd.f32 %v555, %v1110
  %v1160 = vadd.f32 %v556, %v1111
  %v1161 = vadd.f32 %v557, %v1112
  %v1162 = vadd.f32 %v558, %v1113
  %v1163 = vadd.f32 %v559, %v1114
  %v1164 = vadd.f32 %v560, %v1115
  %v1165 = vadd.f32 %v561, %v1116
  %v1166 = vadd.f32 %v562, %v1117
  %v1167 = vadd.f32 %v563, %v1118
  %v1168 = vadd.f32 %v564, %v1119
  %v1169 = vadd.f32 %v565, %v1120
  %v1170 = vadd.f32 %v566, %v1121
  %v1171 = vadd.f32 %v567, %v1122
  %v1172 = vadd.f32 %v568, %v1123
  %v1173 = vadd.f32 %v569, %v1124
  %v1174 = vadd.f32 %v570, %v1125
  %v1175 = vadd.f32 %v571, %v1126
  %v1176 = vadd.f32 %v572, %v1127
  %v1177 = vadd.f32 %v573, %v1128
  %v1178 = vadd.f32 %v574, %v1129
  %v1179 = vadd.f32 %v575, %v1130
  %v1180 = vadd.f32 %v576, %v1131
  %v1181 = vadd.f32 %v577, %v1132
  %v1182 = vadd.f32 %v578, %v1133
  %v1183 = vadd.f32 %v579, %v1134
  %v1184 = vadd.f32 %v580, %v1135
  %v1185 = vadd.f32 %v581, %v1136
  %v1186 = vadd.f32 %v582, %v1137
  %v1187 = vadd.f32 %v583, %v1138
  %v1188 = vadd.f32 %v584, %v1139
  %v1189 = vadd.f32 %v585, %v1140
  %v1190 = vadd.f32 %v586, %v1141
  %v1191 = vadd.f32 %v587, %v1142
  %v1192 = vadd.f32 %v588, %v1143
  %v1193 = vadd.f32 %v589, %v1144
  %v1194 = vadd.f32 %v590, %v1145
  %v1195 = vadd.f32 %v591, %v1146
  %v1196 = vadd.f32 %v592, %v1147
  %v1197 = vadd.f32 %v593, %v1148
  %v1198 = vld [vmem:[%s2] sm:$0xff]
  %v1199 = vld [vmem:[%s2 + $0x8] sm:$0xff]
  %v1200 = vld [vmem:[%s2 + $0x10] sm:$0xff]
  %v1201 = vld [vmem:[%s2 + $0x18] sm:$0xff]
  %v1202 = vld [vmem:[%s2 + $0x20] sm:$0xff]
  %v1203 = vld [vmem:[%s2 + $0x28] sm:$0xff]
  %v1204 = vld [vmem:[%s2 + $0x30] sm:$0xff]
  %v1205 = vld [vmem:[%s2 + $0x38] sm:$0xff]
  %v1206 = vld [vmem:[%s2 + $0x40] sm:$0xff]
  %v1207 = vld [vmem:[%s2 + $0x48] sm:$0xff]
  %v1208 = vld [vmem:[%s2 + $0x50] sm:$0xff]
  %v1209 = vld [vmem:[%s2 + $0x58] sm:$0xff]
  %v1210 = vld [vmem:[%s2 + $0x60] sm:$0xff]
  %v1211 = vld [vmem:[%s2 + $0x68] sm:$0xff]
  %v1212 = vld [vmem:[%s2 + $0x70] sm:$0xff]
  %v1213 = vld [vmem:[%s2 + $0x78] sm:$0xff]
  %v1214 = vld [vmem:[%s2 + $0x80] sm:$0xff]
  %v1215 = vld [vmem:[%s2 + $0x88] sm:$0xff]
  %v1216 = vld [vmem:[%s2 + $0x90] sm:$0xff]
  %v1217 = vld [vmem:[%s2 + $0x98] sm:$0xff]
  %v1218 = vld [vmem:[%s2 + $0xa0] sm:$0xff]
  %v1219 = vld [vmem:[%s2 + $0xa8] sm:$0xff]
  %v1220 = vld [vmem:[%s2 + $0xb0] sm:$0xff]
  %v1221 = vld [vmem:[%s2 + $0xb8] sm:$0xff]
  %v1222 = vld [vmem:[%s2 + $0xc0] sm:$0xff]
  %v1223 = vld [vmem:[%s2 + $0xc8] sm:$0xff]
  %v1224 = vld [vmem:[%s2 + $0xd0] sm:$0xff]
  %v1225 = vld [vmem:[%s2 + $0xd8] sm:$0xff]
  %v1226 = vld [vmem:[%s2 + $0xe0] sm:$0xff]
  %v1227 = vld [vmem:[%s2 + $0xe8] sm:$0xff]
  %v1228 = vld [vmem:[%s2 + $0xf0] sm:$0xff]
  %v1229 = vld [vmem:[%s2 + $0xf8] sm:$0xff]
  %v1230 = vld [vmem:[%s2 + $0x100] sm:$0xff]
  %v1231 = vld [vmem:[%s2 + $0x108] sm:$0xff]
  %v1232 = vld [vmem:[%s2 + $0x110] sm:$0xff]
  %v1233 = vld [vmem:[%s2 + $0x118] sm:$0xff]
  %v1234 = vld [vmem:[%s2 + $0x120] sm:$0xff]
  %v1235 = vld [vmem:[%s2 + $0x128] sm:$0xff]
  %v1236 = vld [vmem:[%s2 + $0x130] sm:$0xff]
  %v1237 = vld [vmem:[%s2 + $0x138] sm:$0xff]
  %v1238 = vld [vmem:[%s2 + $0x140] sm:$0xff]
  %v1239 = vld [vmem:[%s2 + $0x148] sm:$0xff]
  %v1240 = vld [vmem:[%s2 + $0x150] sm:$0xff]
  %v1241 = vld [vmem:[%s2 + $0x158] sm:$0xff]
  %v1242 = vld [vmem:[%s2 + $0x160] sm:$0xff]
  %v1243 = vld [vmem:[%s2 + $0x168] sm:$0xff]
  %v1244 = vld [vmem:[%s2 + $0x170] sm:$0xff]
  %v1245 = vld [vmem:[%s2 + $0x178] sm:$0xff]
  %v1246 = vld [vmem:[%s2 + $0x180] sm:$0xff]
  %v1248 = vsel %vm83, %v1198, 0
  %v1251 = vsel %vm83, %v1199, 0
  %v1254 = vsel %vm83, %v1200, 0
  %v1257 = vsel %vm83, %v1201, 0
  %v1260 = vsel %vm83, %v1202, 0
  %v1263 = vsel %vm83, %v1203, 0
  %v1266 = vsel %vm83, %v1204, 0
  %v1269 = vsel %vm83, %v1205, 0
  %v1272 = vsel %vm83, %v1206, 0
  %v1275 = vsel %vm83, %v1207, 0
  %v1278 = vsel %vm83, %v1208, 0
  %v1281 = vsel %vm83, %v1209, 0
  %v1284 = vsel %vm83, %v1210, 0
  %v1287 = vsel %vm83, %v1211, 0
  %v1290 = vsel %vm83, %v1212, 0
  %v1293 = vsel %vm83, %v1213, 0
  %v1296 = vsel %vm83, %v1214, 0
  %v1299 = vsel %vm83, %v1215, 0
  %v1302 = vsel %vm83, %v1216, 0
  %v1305 = vsel %vm83, %v1217, 0
  %v1308 = vsel %vm83, %v1218, 0
  %v1311 = vsel %vm83, %v1219, 0
  %v1314 = vsel %vm83, %v1220, 0
  %v1317 = vsel %vm83, %v1221, 0
  %v1320 = vsel %vm83, %v1222, 0
  %v1323 = vsel %vm83, %v1223, 0
  %v1326 = vsel %vm83, %v1224, 0
  %v1329 = vsel %vm83, %v1225, 0
  %v1332 = vsel %vm83, %v1226, 0
  %v1335 = vsel %vm83, %v1227, 0
  %v1338 = vsel %vm83, %v1228, 0
  %v1341 = vsel %vm83, %v1229, 0
  %v1344 = vsel %vm83, %v1230, 0
  %v1347 = vsel %vm83, %v1231, 0
  %v1350 = vsel %vm83, %v1232, 0
  %v1353 = vsel %vm83, %v1233, 0
  %v1356 = vsel %vm83, %v1234, 0
  %v1359 = vsel %vm83, %v1235, 0
  %v1362 = vsel %vm83, %v1236, 0
  %v1365 = vsel %vm83, %v1237, 0
  %v1368 = vsel %vm83, %v1238, 0
  %v1371 = vsel %vm83, %v1239, 0
  %v1374 = vsel %vm83, %v1240, 0
  %v1377 = vsel %vm83, %v1241, 0
  %v1380 = vsel %vm83, %v1242, 0
  %v1383 = vsel %vm83, %v1243, 0
  %v1386 = vsel %vm83, %v1244, 0
  %v1389 = vsel %vm83, %v1245, 0
  %v1392 = vsel %vm83, %v1246, 0
  %1394 = vmatprep.subr.mxu0 0.0
  %1395 = vmatpush1.msra.mxu0 %v23
  %1396 = vmatprep.subr.mxu0 0.0
  %1397 = vmatpush1.msra.mxu0 %v24
  %1398 = vmatprep.subr.mxu0 0.0
  %1399 = vmatpush1.msra.mxu0 %v25
  %1400 = vmatprep.subr.mxu0 0.0
  %1401 = vmatpush1.msra.mxu0 %v233
  %1402 = vmatprep.subr.mxu0 0.0
  %1403 = vmatpush1.msra.mxu0 0.0
  %1404 = vmatprep.subr.mxu0 0.0
  %1405 = vmatpush1.msra.mxu0 0.0
  %1406 = vmatprep.subr.mxu0 0.0
  %1407 = vmatpush1.msra.mxu0 0.0
  %1408 = vmatprep.subr.mxu0 0.0
  %1409 = vmatpush1.msra.mxu0 0.0
  %1410 = vmatprep.subr.mxu0 0.0
  %1411 = vmatpush1.msra.mxu0 0.0
  %1412 = vmatprep.subr.mxu0 0.0
  %1413 = vmatpush1.msra.mxu0 0.0
  %1414 = vmatprep.subr.mxu0 0.0
  %1415 = vmatpush1.msra.mxu0 0.0
  %1416 = vmatprep.subr.mxu0 0.0
  %1417 = vmatpush1.msra.mxu0 0.0
  %1418 = vmatprep.subr.mxu0 0.0
  %1419 = vmatpush1.msra.mxu0 0.0
  %1420 = vmatprep.subr.mxu0 0.0
  %1421 = vmatpush1.msra.mxu0 0.0
  %1422 = vmatprep.subr.mxu0 0.0
  %1423 = vmatpush1.msra.mxu0 0.0
  %1424 = vmatprep.subr.mxu0 0.0
  %1425 = vmatpush1.msra.mxu0 0.0
  %1426 = vmatprep.subr.mxu0 0.0
  %1427 = vmatpush1.msra.mxu0 0.0
  %1428 = vmatprep.subr.mxu0 0.0
  %1429 = vmatpush1.msra.mxu0 0.0
  %1430 = vmatprep.subr.mxu0 0.0
  %1431 = vmatpush1.msra.mxu0 0.0
  %1432 = vmatprep.subr.mxu0 0.0
  %1433 = vmatpush1.msra.mxu0 0.0
  %1434 = vmatprep.subr.mxu0 0.0
  %1435 = vmatpush1.msra.mxu0 0.0
  %1436 = vmatprep.subr.mxu0 0.0
  %1437 = vmatpush1.msra.mxu0 0.0
  %1438 = vmatprep.subr.mxu0 0.0
  %1439 = vmatpush1.msra.mxu0 0.0
  %1440 = vmatprep.subr.mxu0 0.0
  %1441 = vmatpush1.msra.mxu0 0.0
  %1442 = vmatprep.subr.mxu0 0.0
  %1443 = vmatpush1.msra.mxu0 0.0
  %1444 = vmatprep.subr.mxu0 0.0
  %1445 = vmatpush1.msra.mxu0 0.0
  %1446 = vmatprep.subr.mxu0 0.0
  %1447 = vmatpush1.msra.mxu0 0.0
  %1448 = vmatprep.subr.mxu0 0.0
  %1449 = vmatpush1.msra.mxu0 0.0
  %1450 = vmatprep.subr.mxu0 0.0
  %1451 = vmatpush1.msra.mxu0 0.0
  %1452 = vmatprep.subr.mxu0 0.0
  %1453 = vmatpush1.msra.mxu0 0.0
  %1454 = vmatprep.subr.mxu0 0.0
  %1455 = vmatpush1.msra.mxu0 0.0
  %1456 = vmatprep.subr.mxu0 0.0
  %1457 = vmatpush1.msra.mxu0 0.0
  %1458 = vmatprep.mubr.f32.mxu0 0.0
  %1459 = vmatmul.mubr.f32.gmra.mrb[0].mxu0 %v1248
  %v1460 = vpop.f32.mrb[0].mxu0
  %v1461 = vadd.f32 %v81, %v1460
  %v1462 = vpop.f32.mrb[0].mxu0
  %1463 = vmatprep.mubr.f32.mxu0 0.0
  %1464 = vmatmul.mubr.f32.gmra.mrb[0].mxu0 %v1251
  %v1465 = vpop.f32.mrb[0].mxu0
  %v1466 = vadd.f32 %v81, %v1465
  %v1467 = vpop.f32.mrb[0].mxu0
  %1468 = vmatprep.mubr.f32.mxu0 0.0
  %1469 = vmatmul.mubr.f32.gmra.mrb[0].mxu0 %v1254
  %v1470 = vpop.f32.mrb[0].mxu0
  %v1471 = vadd.f32 %v81, %v1470
  %v1472 = vpop.f32.mrb[0].mxu0
  %1473 = vmatprep.mubr.f32.mxu0 0.0
  %1474 = vmatmul.mubr.f32.gmra.mrb[0].mxu0 %v1257
  %v1475 = vpop.f32.mrb[0].mxu0
  %v1476 = vadd.f32 %v81, %v1475
  %v1477 = vpop.f32.mrb[0].mxu0
  %1478 = vmatprep.mubr.f32.mxu0 0.0
  %1479 = vmatmul.mubr.f32.gmra.mrb[0].mxu0 %v1260
  %v1480 = vpop.f32.mrb[0].mxu0
  %v1481 = vadd.f32 %v81, %v1480
  %v1482 = vpop.f32.mrb[0].mxu0
  %1483 = vmatprep.mubr.f32.mxu0 0.0
  %1484 = vmatmul.mubr.f32.gmra.mrb[0].mxu0 %v1263
  %v1485 = vpop.f32.mrb[0].mxu0
  %v1486 = vadd.f32 %v81, %v1485
  %v1487 = vpop.f32.mrb[0].mxu0
  %1488 = vmatprep.mubr.f32.mxu0 0.0
  %1489 = vmatmul.mubr.f32.gmra.mrb[0].mxu0 %v1266
  %v1490 = vpop.f32.mrb[0].mxu0
  %v1491 = vadd.f32 %v81, %v1490
  %v1492 = vpop.f32.mrb[0].mxu0
  %1493 = vmatprep.mubr.f32.mxu0 0.0
  %1494 = vmatmul.mubr.f32.gmra.mrb[0].mxu0 %v1269
  %v1495 = vpop.f32.mrb[0].mxu0
  %v1496 = vadd.f32 %v81, %v1495
  %v1497 = vpop.f32.mrb[0].mxu0
  %1498 = vmatprep.mubr.f32.mxu0 0.0
  %1499 = vmatmul.mubr.f32.gmra.mrb[0].mxu0 %v1272
  %v1500 = vpop.f32.mrb[0].mxu0
  %v1501 = vadd.f32 %v81, %v1500
  %v1502 = vpop.f32.mrb[0].mxu0
  %1503 = vmatprep.mubr.f32.mxu0 0.0
  %1504 = vmatmul.mubr.f32.gmra.mrb[0].mxu0 %v1275
  %v1505 = vpop.f32.mrb[0].mxu0
  %v1506 = vadd.f32 %v81, %v1505
  %v1507 = vpop.f32.mrb[0].mxu0
  %1508 = vmatprep.mubr.f32.mxu0 0.0
  %1509 = vmatmul.mubr.f32.gmra.mrb[0].mxu0 %v1278
  %v1510 = vpop.f32.mrb[0].mxu0
  %v1511 = vadd.f32 %v81, %v1510
  %v1512 = vpop.f32.mrb[0].mxu0
  %1513 = vmatprep.mubr.f32.mxu0 0.0
  %1514 = vmatmul.mubr.f32.gmra.mrb[0].mxu0 %v1281
  %v1515 = vpop.f32.mrb[0].mxu0
  %v1516 = vadd.f32 %v81, %v1515
  %v1517 = vpop.f32.mrb[0].mxu0
  %1518 = vmatprep.mubr.f32.mxu0 0.0
  %1519 = vmatmul.mubr.f32.gmra.mrb[0].mxu0 %v1284
  %v1520 = vpop.f32.mrb[0].mxu0
  %v1521 = vadd.f32 %v81, %v1520
  %v1522 = vpop.f32.mrb[0].mxu0
  %1523 = vmatprep.mubr.f32.mxu0 0.0
  %1524 = vmatmul.mubr.f32.gmra.mrb[0].mxu0 %v1287
  %v1525 = vpop.f32.mrb[0].mxu0
  %v1526 = vadd.f32 %v81, %v1525
  %v1527 = vpop.f32.mrb[0].mxu0
  %1528 = vmatprep.mubr.f32.mxu0 0.0
  %1529 = vmatmul.mubr.f32.gmra.mrb[0].mxu0 %v1290
  %v1530 = vpop.f32.mrb[0].mxu0
  %v1531 = vadd.f32 %v81, %v1530
  %v1532 = vpop.f32.mrb[0].mxu0
  %1533 = vmatprep.mubr.f32.mxu0 0.0
  %1534 = vmatmul.mubr.f32.gmra.mrb[0].mxu0 %v1293
  %v1535 = vpop.f32.mrb[0].mxu0
  %v1536 = vadd.f32 %v81, %v1535
  %v1537 = vpop.f32.mrb[0].mxu0
  %1538 = vmatprep.mubr.f32.mxu0 0.0
  %1539 = vmatmul.mubr.f32.gmra.mrb[0].mxu0 %v1296
  %v1540 = vpop.f32.mrb[0].mxu0
  %v1541 = vadd.f32 %v81, %v1540
  %v1542 = vpop.f32.mrb[0].mxu0
  %1543 = vmatprep.mubr.f32.mxu0 0.0
  %1544 = vmatmul.mubr.f32.gmra.mrb[0].mxu0 %v1299
  %v1545 = vpop.f32.mrb[0].mxu0
  %v1546 = vadd.f32 %v81, %v1545
  %v1547 = vpop.f32.mrb[0].mxu0
  %1548 = vmatprep.mubr.f32.mxu0 0.0
  %1549 = vmatmul.mubr.f32.gmra.mrb[0].mxu0 %v1302
  %v1550 = vpop.f32.mrb[0].mxu0
  %v1551 = vadd.f32 %v81, %v1550
  %v1552 = vpop.f32.mrb[0].mxu0
  %1553 = vmatprep.mubr.f32.mxu0 0.0
  %1554 = vmatmul.mubr.f32.gmra.mrb[0].mxu0 %v1305
  %v1555 = vpop.f32.mrb[0].mxu0
  %v1556 = vadd.f32 %v81, %v1555
  %v1557 = vpop.f32.mrb[0].mxu0
  %1558 = vmatprep.mubr.f32.mxu0 0.0
  %1559 = vmatmul.mubr.f32.gmra.mrb[0].mxu0 %v1308
  %v1560 = vpop.f32.mrb[0].mxu0
  %v1561 = vadd.f32 %v81, %v1560
  %v1562 = vpop.f32.mrb[0].mxu0
  %1563 = vmatprep.mubr.f32.mxu0 0.0
  %1564 = vmatmul.mubr.f32.gmra.mrb[0].mxu0 %v1311
  %v1565 = vpop.f32.mrb[0].mxu0
  %v1566 = vadd.f32 %v81, %v1565
  %v1567 = vpop.f32.mrb[0].mxu0
  %1568 = vmatprep.mubr.f32.mxu0 0.0
  %1569 = vmatmul.mubr.f32.gmra.mrb[0].mxu0 %v1314
  %v1570 = vpop.f32.mrb[0].mxu0
  %v1571 = vadd.f32 %v81, %v1570
  %v1572 = vpop.f32.mrb[0].mxu0
  %1573 = vmatprep.mubr.f32.mxu0 0.0
  %1574 = vmatmul.mubr.f32.gmra.mrb[0].mxu0 %v1317
  %v1575 = vpop.f32.mrb[0].mxu0
  %v1576 = vadd.f32 %v81, %v1575
  %v1577 = vpop.f32.mrb[0].mxu0
  %1578 = vmatprep.mubr.f32.mxu0 0.0
  %1579 = vmatmul.mubr.f32.gmra.mrb[0].mxu0 %v1320
  %v1580 = vpop.f32.mrb[0].mxu0
  %v1581 = vadd.f32 %v81, %v1580
  %v1582 = vpop.f32.mrb[0].mxu0
  %1583 = vmatprep.mubr.f32.mxu0 0.0
  %1584 = vmatmul.mubr.f32.gmra.mrb[0].mxu0 %v1323
  %v1585 = vpop.f32.mrb[0].mxu0
  %v1586 = vadd.f32 %v81, %v1585
  %v1587 = vpop.f32.mrb[0].mxu0
  %1588 = vmatprep.mubr.f32.mxu0 0.0
  %1589 = vmatmul.mubr.f32.gmra.mrb[0].mxu0 %v1326
  %v1590 = vpop.f32.mrb[0].mxu0
  %v1591 = vadd.f32 %v81, %v1590
  %v1592 = vpop.f32.mrb[0].mxu0
  %1593 = vmatprep.mubr.f32.mxu0 0.0
  %1594 = vmatmul.mubr.f32.gmra.mrb[0].mxu0 %v1329
  %v1595 = vpop.f32.mrb[0].mxu0
  %v1596 = vadd.f32 %v81, %v1595
  %v1597 = vpop.f32.mrb[0].mxu0
  %1598 = vmatprep.mubr.f32.mxu0 0.0
  %1599 = vmatmul.mubr.f32.gmra.mrb[0].mxu0 %v1332
  %v1600 = vpop.f32.mrb[0].mxu0
  %v1601 = vadd.f32 %v81, %v1600
  %v1602 = vpop.f32.mrb[0].mxu0
  %1603 = vmatprep.mubr.f32.mxu0 0.0
  %1604 = vmatmul.mubr.f32.gmra.mrb[0].mxu0 %v1335
  %v1605 = vpop.f32.mrb[0].mxu0
  %v1606 = vadd.f32 %v81, %v1605
  %v1607 = vpop.f32.mrb[0].mxu0
  %1608 = vmatprep.mubr.f32.mxu0 0.0
  %1609 = vmatmul.mubr.f32.gmra.mrb[0].mxu0 %v1338
  %v1610 = vpop.f32.mrb[0].mxu0
  %v1611 = vadd.f32 %v81, %v1610
  %v1612 = vpop.f32.mrb[0].mxu0
  %1613 = vmatprep.mubr.f32.mxu0 0.0
  %1614 = vmatmul.mubr.f32.gmra.mrb[0].mxu0 %v1341
  %v1615 = vpop.f32.mrb[0].mxu0
  %v1616 = vadd.f32 %v81, %v1615
  %v1617 = vpop.f32.mrb[0].mxu0
  %1618 = vmatprep.mubr.f32.mxu0 0.0
  %1619 = vmatmul.mubr.f32.gmra.mrb[0].mxu0 %v1344
  %v1620 = vpop.f32.mrb[0].mxu0
  %v1621 = vadd.f32 %v81, %v1620
  %v1622 = vpop.f32.mrb[0].mxu0
  %1623 = vmatprep.mubr.f32.mxu0 0.0
  %1624 = vmatmul.mubr.f32.gmra.mrb[0].mxu0 %v1347
  %v1625 = vpop.f32.mrb[0].mxu0
  %v1626 = vadd.f32 %v81, %v1625
  %v1627 = vpop.f32.mrb[0].mxu0
  %1628 = vmatprep.mubr.f32.mxu0 0.0
  %1629 = vmatmul.mubr.f32.gmra.mrb[0].mxu0 %v1350
  %v1630 = vpop.f32.mrb[0].mxu0
  %v1631 = vadd.f32 %v81, %v1630
  %v1632 = vpop.f32.mrb[0].mxu0
  %1633 = vmatprep.mubr.f32.mxu0 0.0
  %1634 = vmatmul.mubr.f32.gmra.mrb[0].mxu0 %v1353
  %v1635 = vpop.f32.mrb[0].mxu0
  %v1636 = vadd.f32 %v81, %v1635
  %v1637 = vpop.f32.mrb[0].mxu0
  %1638 = vmatprep.mubr.f32.mxu0 0.0
  %1639 = vmatmul.mubr.f32.gmra.mrb[0].mxu0 %v1356
  %v1640 = vpop.f32.mrb[0].mxu0
  %v1641 = vadd.f32 %v81, %v1640
  %v1642 = vpop.f32.mrb[0].mxu0
  %1643 = vmatprep.mubr.f32.mxu0 0.0
  %1644 = vmatmul.mubr.f32.gmra.mrb[0].mxu0 %v1359
  %v1645 = vpop.f32.mrb[0].mxu0
  %v1646 = vadd.f32 %v81, %v1645
  %v1647 = vpop.f32.mrb[0].mxu0
  %1648 = vmatprep.mubr.f32.mxu0 0.0
  %1649 = vmatmul.mubr.f32.gmra.mrb[0].mxu0 %v1362
  %v1650 = vpop.f32.mrb[0].mxu0
  %v1651 = vadd.f32 %v81, %v1650
  %v1652 = vpop.f32.mrb[0].mxu0
  %1653 = vmatprep.mubr.f32.mxu0 0.0
  %1654 = vmatmul.mubr.f32.gmra.mrb[0].mxu0 %v1365
  %v1655 = vpop.f32.mrb[0].mxu0
  %v1656 = vadd.f32 %v81, %v1655
  %v1657 = vpop.f32.mrb[0].mxu0
  %1658 = vmatprep.mubr.f32.mxu0 0.0
  %1659 = vmatmul.mubr.f32.gmra.mrb[0].mxu0 %v1368
  %v1660 = vpop.f32.mrb[0].mxu0
  %v1661 = vadd.f32 %v81, %v1660
  %v1662 = vpop.f32.mrb[0].mxu0
  %1663 = vmatprep.mubr.f32.mxu0 0.0
  %1664 = vmatmul.mubr.f32.gmra.mrb[0].mxu0 %v1371
  %v1665 = vpop.f32.mrb[0].mxu0
  %v1666 = vadd.f32 %v81, %v1665
  %v1667 = vpop.f32.mrb[0].mxu0
  %1668 = vmatprep.mubr.f32.mxu0 0.0
  %1669 = vmatmul.mubr.f32.gmra.mrb[0].mxu0 %v1374
  %v1670 = vpop.f32.mrb[0].mxu0
  %v1671 = vadd.f32 %v81, %v1670
  %v1672 = vpop.f32.mrb[0].mxu0
  %1673 = vmatprep.mubr.f32.mxu0 0.0
  %1674 = vmatmul.mubr.f32.gmra.mrb[0].mxu0 %v1377
  %v1675 = vpop.f32.mrb[0].mxu0
  %v1676 = vadd.f32 %v81, %v1675
  %v1677 = vpop.f32.mrb[0].mxu0
  %1678 = vmatprep.mubr.f32.mxu0 0.0
  %1679 = vmatmul.mubr.f32.gmra.mrb[0].mxu0 %v1380
  %v1680 = vpop.f32.mrb[0].mxu0
  %v1681 = vadd.f32 %v81, %v1680
  %v1682 = vpop.f32.mrb[0].mxu0
  %1683 = vmatprep.mubr.f32.mxu0 0.0
  %1684 = vmatmul.mubr.f32.gmra.mrb[0].mxu0 %v1383
  %v1685 = vpop.f32.mrb[0].mxu0
  %v1686 = vadd.f32 %v81, %v1685
  %v1687 = vpop.f32.mrb[0].mxu0
  %1688 = vmatprep.mubr.f32.mxu0 0.0
  %1689 = vmatmul.mubr.f32.gmra.mrb[0].mxu0 %v1386
  %v1690 = vpop.f32.mrb[0].mxu0
  %v1691 = vadd.f32 %v81, %v1690
  %v1692 = vpop.f32.mrb[0].mxu0
  %1693 = vmatprep.mubr.f32.mxu0 0.0
  %1694 = vmatmul.mubr.f32.gmra.mrb[0].mxu0 %v1389
  %v1695 = vpop.f32.mrb[0].mxu0
  %v1696 = vadd.f32 %v81, %v1695
  %v1697 = vpop.f32.mrb[0].mxu0
  %1698 = vmatprep.mubr.f32.mxu0 0.0
  %1699 = vmatmul.mubr.f32.gmra.mrb[0].mxu0 %v1392
  %v1700 = vpop.f32.mrb[0].mxu0
  %v1701 = vadd.f32 %v81, %v1700
  %v1702 = vpop.f32.mrb[0].mxu0
  %1703 = vdwg.mxu0
  %v1704 = vtanh.pop %v1461
  %v1705 = vtanh.pop %v1466
  %v1706 = vtanh.pop %v1471
  %v1707 = vtanh.pop %v1476
  %v1708 = vtanh.pop %v1481
  %v1709 = vtanh.pop %v1486
  %v1710 = vtanh.pop %v1491
  %v1711 = vtanh.pop %v1496
  %v1712 = vtanh.pop %v1501
  %v1713 = vtanh.pop %v1506
  %v1714 = vtanh.pop %v1511
  %v1715 = vtanh.pop %v1516
  %v1716 = vtanh.pop %v1521
  %v1717 = vtanh.pop %v1526
  %v1718 = vtanh.pop %v1531
  %v1719 = vtanh.pop %v1536
  %v1720 = vtanh.pop %v1541
  %v1721 = vtanh.pop %v1546
  %v1722 = vtanh.pop %v1551
  %v1723 = vtanh.pop %v1556
  %v1724 = vtanh.pop %v1561
  %v1725 = vtanh.pop %v1566
  %v1726 = vtanh.pop %v1571
  %v1727 = vtanh.pop %v1576
  %v1728 = vtanh.pop %v1581
  %v1729 = vtanh.pop %v1586
  %v1730 = vtanh.pop %v1591
  %v1731 = vtanh.pop %v1596
  %v1732 = vtanh.pop %v1601
  %v1733 = vtanh.pop %v1606
  %v1734 = vtanh.pop %v1611
  %v1735 = vtanh.pop %v1616
  %v1736 = vtanh.pop %v1621
  %v1737 = vtanh.pop %v1626
  %v1738 = vtanh.pop %v1631
  %v1739 = vtanh.pop %v1636
  %v1740 = vtanh.pop %v1641
  %v1741 = vtanh.pop %v1646
  %v1742 = vtanh.pop %v1651
  %v1743 = vtanh.pop %v1656
  %v1744 = vtanh.pop %v1661
  %v1745 = vtanh.pop %v1666
  %v1746 = vtanh.pop %v1671
  %v1747 = vtanh.pop %v1676
  %v1748 = vtanh.pop %v1681
  %v1749 = vtanh.pop %v1686
  %v1750 = vtanh.pop %v1691
  %v1751 = vtanh.pop %v1696
  %v1752 = vtanh.pop %v1701
  %v1753 = vadd.f32 %v1149, %v1704
  %v1754 = vadd.f32 %v1150, %v1705
  %v1755 = vadd.f32 %v1151, %v1706
  %v1756 = vadd.f32 %v1152, %v1707
  %v1757 = vadd.f32 %v1153, %v1708
  %v1758 = vadd.f32 %v1154, %v1709
  %v1759 = vadd.f32 %v1155, %v1710
  %v1760 = vadd.f32 %v1156, %v1711
  %v1761 = vadd.f32 %v1157, %v1712
  %v1762 = vadd.f32 %v1158, %v1713
  %v1763 = vadd.f32 %v1159, %v1714
  %v1764 = vadd.f32 %v1160, %v1715
  %v1765 = vadd.f32 %v1161, %v1716
  %v1766 = vadd.f32 %v1162, %v1717
  %v1767 = vadd.f32 %v1163, %v1718
  %v1768 = vadd.f32 %v1164, %v1719
  %v1769 = vadd.f32 %v1165, %v1720
  %v1770 = vadd.f32 %v1166, %v1721
  %v1771 = vadd.f32 %v1167, %v1722
  %v1772 = vadd.f32 %v1168, %v1723
  %v1773 = vadd.f32 %v1169, %v1724
  %v1774 = vadd.f32 %v1170, %v1725
  %v1775 = vadd.f32 %v1171, %v1726
  %v1776 = vadd.f32 %v1172, %v1727
  %v1777 = vadd.f32 %v1173, %v1728
  %v1778 = vadd.f32 %v1174, %v1729
  %v1779 = vadd.f32 %v1175, %v1730
  %v1780 = vadd.f32 %v1176, %v1731
  %v1781 = vadd.f32 %v1177, %v1732
  %v1782 = vadd.f32 %v1178, %v1733
  %v1783 = vadd.f32 %v1179, %v1734
  %v1784 = vadd.f32 %v1180, %v1735
  %v1785 = vadd.f32 %v1181, %v1736
  %v1786 = vadd.f32 %v1182, %v1737
  %v1787 = vadd.f32 %v1183, %v1738
  %v1788 = vadd.f32 %v1184, %v1739
  %v1789 = vadd.f32 %v1185, %v1740
  %v1790 = vadd.f32 %v1186, %v1741
  %v1791 = vadd.f32 %v1187, %v1742
  %v1792 = vadd.f32 %v1188, %v1743
  %v1793 = vadd.f32 %v1189, %v1744
  %v1794 = vadd.f32 %v1190, %v1745
  %v1795 = vadd.f32 %v1191, %v1746
  %v1796 = vadd.f32 %v1192, %v1747
  %v1797 = vadd.f32 %v1193, %v1748
  %v1798 = vadd.f32 %v1194, %v1749
  %v1799 = vadd.f32 %v1195, %v1750
  %v1800 = vadd.f32 %v1196, %v1751
  %v1801 = vadd.f32 %v1197, %v1752
  %v1802 = vld [vmem:[%s3] sm:$0xff]
  %v1803 = vld [vmem:[%s3 + $0x8] sm:$0xff]
  %v1804 = vld [vmem:[%s3 + $0x10] sm:$0xff]
  %v1805 = vld [vmem:[%s3 + $0x18] sm:$0xff]
  %v1806 = vld [vmem:[%s3 + $0x20] sm:$0xff]
  %v1807 = vld [vmem:[%s3 + $0x28] sm:$0xff]
  %v1808 = vld [vmem:[%s3 + $0x30] sm:$0xff]
  %v1809 = vld [vmem:[%s3 + $0x38] sm:$0xff]
  %v1810 = vld [vmem:[%s3 + $0x40] sm:$0xff]
  %v1811 = vld [vmem:[%s3 + $0x48] sm:$0xff]
  %v1812 = vld [vmem:[%s3 + $0x50] sm:$0xff]
  %v1813 = vld [vmem:[%s3 + $0x58] sm:$0xff]
  %v1814 = vld [vmem:[%s3 + $0x60] sm:$0xff]
  %v1815 = vld [vmem:[%s3 + $0x68] sm:$0xff]
  %v1816 = vld [vmem:[%s3 + $0x70] sm:$0xff]
  %v1817 = vld [vmem:[%s3 + $0x78] sm:$0xff]
  %v1818 = vld [vmem:[%s3 + $0x80] sm:$0xff]
  %v1819 = vld [vmem:[%s3 + $0x88] sm:$0xff]
  %v1820 = vld [vmem:[%s3 + $0x90] sm:$0xff]
  %v1821 = vld [vmem:[%s3 + $0x98] sm:$0xff]
  %v1822 = vld [vmem:[%s3 + $0xa0] sm:$0xff]
  %v1823 = vld [vmem:[%s3 + $0xa8] sm:$0xff]
  %v1824 = vld [vmem:[%s3 + $0xb0] sm:$0xff]
  %v1825 = vld [vmem:[%s3 + $0xb8] sm:$0xff]
  %v1826 = vld [vmem:[%s3 + $0xc0] sm:$0xff]
  %v1827 = vld [vmem:[%s3 + $0xc8] sm:$0xff]
  %v1828 = vld [vmem:[%s3 + $0xd0] sm:$0xff]
  %v1829 = vld [vmem:[%s3 + $0xd8] sm:$0xff]
  %v1830 = vld [vmem:[%s3 + $0xe0] sm:$0xff]
  %v1831 = vld [vmem:[%s3 + $0xe8] sm:$0xff]
  %v1832 = vld [vmem:[%s3 + $0xf0] sm:$0xff]
  %v1833 = vld [vmem:[%s3 + $0xf8] sm:$0xff]
  %v1834 = vld [vmem:[%s3 + $0x100] sm:$0xff]
  %v1835 = vld [vmem:[%s3 + $0x108] sm:$0xff]
  %v1836 = vld [vmem:[%s3 + $0x110] sm:$0xff]
  %v1837 = vld [vmem:[%s3 + $0x118] sm:$0xff]
  %v1838 = vld [vmem:[%s3 + $0x120] sm:$0xff]
  %v1839 = vld [vmem:[%s3 + $0x128] sm:$0xff]
  %v1840 = vld [vmem:[%s3 + $0x130] sm:$0xff]
  %v1841 = vld [vmem:[%s3 + $0x138] sm:$0xff]
  %v1842 = vld [vmem:[%s3 + $0x140] sm:$0xff]
  %v1843 = vld [vmem:[%s3 + $0x148] sm:$0xff]
  %v1844 = vld [vmem:[%s3 + $0x150] sm:$0xff]
  %v1845 = vld [vmem:[%s3 + $0x158] sm:$0xff]
  %v1846 = vld [vmem:[%s3 + $0x160] sm:$0xff]
  %v1847 = vld [vmem:[%s3 + $0x168] sm:$0xff]
  %v1848 = vld [vmem:[%s3 + $0x170] sm:$0xff]
  %v1849 = vld [vmem:[%s3 + $0x178] sm:$0xff]
  %v1850 = vld [vmem:[%s3 + $0x180] sm:$0xff]
  %v1852 = vsel %vm83, %v1802, 0
  %v1855 = vsel %vm83, %v1803, 0
  %v1858 = vsel %vm83, %v1804, 0
  %v1861 = vsel %vm83, %v1805, 0
  %v1864 = vsel %vm83, %v1806, 0
  %v1867 = vsel %vm83, %v1807, 0
  %v1870 = vsel %vm83, %v1808, 0
  %v1873 = vsel %vm83, %v1809, 0
  %v1876 = vsel %vm83, %v1810, 0
  %v1879 = vsel %vm83, %v1811, 0
  %v1882 = vsel %vm83, %v1812, 0
  %v1885 = vsel %vm83, %v1813, 0
  %v1888 = vsel %vm83, %v1814, 0
  %v1891 = vsel %vm83, %v1815, 0
  %v1894 = vsel %vm83, %v1816, 0
  %v1897 = vsel %vm83, %v1817, 0
  %v1900 = vsel %vm83, %v1818, 0
  %v1903 = vsel %vm83, %v1819, 0
  %v1906 = vsel %vm83, %v1820, 0
  %v1909 = vsel %vm83, %v1821, 0
  %v1912 = vsel %vm83, %v1822, 0
  %v1915 = vsel %vm83, %v1823, 0
  %v1918 = vsel %vm83, %v1824, 0
  %v1921 = vsel %vm83, %v1825, 0
  %v1924 = vsel %vm83, %v1826, 0
  %v1927 = vsel %vm83, %v1827, 0
  %v1930 = vsel %vm83, %v1828, 0
  %v1933 = vsel %vm83, %v1829, 0
  %v1936 = vsel %vm83, %v1830, 0
  %v1939 = vsel %vm83, %v1831, 0
  %v1942 = vsel %vm83, %v1832, 0
  %v1945 = vsel %vm83, %v1833, 0
  %v1948 = vsel %vm83, %v1834, 0
  %v1951 = vsel %vm83, %v1835, 0
  %v1954 = vsel %vm83, %v1836, 0
  %v1957 = vsel %vm83, %v1837, 0
  %v1960 = vsel %vm83, %v1838, 0
  %v1963 = vsel %vm83, %v1839, 0
  %v1966 = vsel %vm83, %v1840, 0
  %v1969 = vsel %vm83, %v1841, 0
  %v1972 = vsel %vm83, %v1842, 0
  %v1975 = vsel %vm83, %v1843, 0
  %v1978 = vsel %vm83, %v1844, 0
  %v1981 = vsel %vm83, %v1845, 0
  %v1984 = vsel %vm83, %v1846, 0
  %v1987 = vsel %vm83, %v1847, 0
  %v1990 = vsel %vm83, %v1848, 0
  %v1993 = vsel %vm83, %v1849, 0
  %v1996 = vsel %vm83, %v1850, 0
  %1998 = vmatprep.subr.mxu0 0.0
  %1999 = vmatpush1.msra.mxu0 %v23
  %2000 = vmatprep.subr.mxu0 0.0
  %2001 = vmatpush1.msra.mxu0 %v24
  %2002 = vmatprep.subr.mxu0 0.0
  %2003 = vmatpush1.msra.mxu0 %v25
  %2004 = vmatprep.subr.mxu0 0.0
  %2005 = vmatpush1.msra.mxu0 %v233
  %2006 = vmatprep.subr.mxu0 0.0
  %2007 = vmatpush1.msra.mxu0 0.0
  %2008 = vmatprep.subr.mxu0 0.0
  %2009 = vmatpush1.msra.mxu0 0.0
  %2010 = vmatprep.subr.mxu0 0.0
  %2011 = vmatpush1.msra.mxu0 0.0
  %2012 = vmatprep.subr.mxu0 0.0
  %2013 = vmatpush1.msra.mxu0 0.0
  %2014 = vmatprep.subr.mxu0 0.0
  %2015 = vmatpush1.msra.mxu0 0.0
  %2016 = vmatprep.subr.mxu0 0.0
  %2017 = vmatpush1.msra.mxu0 0.0
  %2018 = vmatprep.subr.mxu0 0.0
  %2019 = vmatpush1.msra.mxu0 0.0
  %2020 = vmatprep.subr.mxu0 0.0
  %2021 = vmatpush1.msra.mxu0 0.0
  %2022 = vmatprep.subr.mxu0 0.0
  %2023 = vmatpush1.msra.mxu0 0.0
  %2024 = vmatprep.subr.mxu0 0.0
  %2025 = vmatpush1.msra.mxu0 0.0
  %2026 = vmatprep.subr.mxu0 0.0
  %2027 = vmatpush1.msra.mxu0 0.0
  %2028 = vmatprep.subr.mxu0 0.0
  %2029 = vmatpush1.msra.mxu0 0.0
  %2030 = vmatprep.subr.mxu0 0.0
  %2031 = vmatpush1.msra.mxu0 0.0
  %2032 = vmatprep.subr.mxu0 0.0
  %2033 = vmatpush1.msra.mxu0 0.0
  %2034 = vmatprep.subr.mxu0 0.0
  %2035 = vmatpush1.msra.mxu0 0.0
  %2036 = vmatprep.subr.mxu0 0.0
  %2037 = vmatpush1.msra.mxu0 0.0
  %2038 = vmatprep.subr.mxu0 0.0
  %2039 = vmatpush1.msra.mxu0 0.0
  %2040 = vmatprep.subr.mxu0 0.0
  %2041 = vmatpush1.msra.mxu0 0.0
  %2042 = vmatprep.subr.mxu0 0.0
  %2043 = vmatpush1.msra.mxu0 0.0
  %2044 = vmatprep.subr.mxu0 0.0
  %2045 = vmatpush1.msra.mxu0 0.0
  %2046 = vmatprep.subr.mxu0 0.0
  %2047 = vmatpush1.msra.mxu0 0.0
  %2048 = vmatprep.subr.mxu0 0.0
  %2049 = vmatpush1.msra.mxu0 0.0
  %2050 = vmatprep.subr.mxu0 0.0
  %2051 = vmatpush1.msra.mxu0 0.0
  %2052 = vmatprep.subr.mxu0 0.0
  %2053 = vmatpush1.msra.mxu0 0.0
  %2054 = vmatprep.subr.mxu0 0.0
  %2055 = vmatpush1.msra.mxu0 0.0
  %2056 = vmatprep.subr.mxu0 0.0
  %2057 = vmatpush1.msra.mxu0 0.0
  %2058 = vmatprep.subr.mxu0 0.0
  %2059 = vmatpush1.msra.mxu0 0.0
  %2060 = vmatprep.subr.mxu0 0.0
  %2061 = vmatpush1.msra.mxu0 0.0
  %2062 = vmatprep.mubr.f32.mxu0 0.0
  %2063 = vmatmul.mubr.f32.gmra.mrb[0].mxu0 %v1852
  %v2064 = vpop.f32.mrb[0].mxu0
  %v2065 = vadd.f32 %v81, %v2064
  %v2066 = vpop.f32.mrb[0].mxu0
  %2067 = vmatprep.mubr.f32.mxu0 0.0
  %2068 = vmatmul.mubr.f32.gmra.mrb[0].mxu0 %v1855
  %v2069 = vpop.f32.mrb[0].mxu0
  %v2070 = vadd.f32 %v81, %v2069
  %v2071 = vpop.f32.mrb[0].mxu0
  %2072 = vmatprep.mubr.f32.mxu0 0.0
  %2073 = vmatmul.mubr.f32.gmra.mrb[0].mxu0 %v1858
  %v2074 = vpop.f32.mrb[0].mxu0
  %v2075 = vadd.f32 %v81, %v2074
  %v2076 = vpop.f32.mrb[0].mxu0
  %2077 = vmatprep.mubr.f32.mxu0 0.0
  %2078 = vmatmul.mubr.f32.gmra.mrb[0].mxu0 %v1861
  %v2079 = vpop.f32.mrb[0].mxu0
  %v2080 = vadd.f32 %v81, %v2079
  %v2081 = vpop.f32.mrb[0].mxu0
  %2082 = vmatprep.mubr.f32.mxu0 0.0
  %2083 = vmatmul.mubr.f32.gmra.mrb[0].mxu0 %v1864
  %v2084 = vpop.f32.mrb[0].mxu0
  %v2085 = vadd.f32 %v81, %v2084
  %v2086 = vpop.f32.mrb[0].mxu0
  %2087 = vmatprep.mubr.f32.mxu0 0.0
  %2088 = vmatmul.mubr.f32.gmra.mrb[0].mxu0 %v1867
  %v2089 = vpop.f32.mrb[0].mxu0
  %v2090 = vadd.f32 %v81, %v2089
  %v2091 = vpop.f32.mrb[0].mxu0
  %2092 = vmatprep.mubr.f32.mxu0 0.0
  %2093 = vmatmul.mubr.f32.gmra.mrb[0].mxu0 %v1870
  %v2094 = vpop.f32.mrb[0].mxu0
  %v2095 = vadd.f32 %v81, %v2094
  %v2096 = vpop.f32.mrb[0].mxu0
  %2097 = vmatprep.mubr.f32.mxu0 0.0
  %2098 = vmatmul.mubr.f32.gmra.mrb[0].mxu0 %v1873
  %v2099 = vpop.f32.mrb[0].mxu0
  %v2100 = vadd.f32 %v81, %v2099
  %v2101 = vpop.f32.mrb[0].mxu0
  %2102 = vmatprep.mubr.f32.mxu0 0.0
  %2103 = vmatmul.mubr.f32.gmra.mrb[0].mxu0 %v1876
  %v2104 = vpop.f32.mrb[0].mxu0
  %v2105 = vadd.f32 %v81, %v2104
  %v2106 = vpop.f32.mrb[0].mxu0
  %2107 = vmatprep.mubr.f32.mxu0 0.0
  %2108 = vmatmul.mubr.f32.gmra.mrb[0].mxu0 %v1879
  %v2109 = vpop.f32.mrb[0].mxu0
  %v2110 = vadd.f32 %v81, %v2109
  %v2111 = vpop.f32.mrb[0].mxu0
  %2112 = vmatprep.mubr.f32.mxu0 0.0
  %2113 = vmatmul.mubr.f32.gmra.mrb[0].mxu0 %v1882
  %v2114 = vpop.f32.mrb[0].mxu0
  %v2115 = vadd.f32 %v81, %v2114
  %v2116 = vpop.f32.mrb[0].mxu0
  %2117 = vmatprep.mubr.f32.mxu0 0.0
  %2118 = vmatmul.mubr.f32.gmra.mrb[0].mxu0 %v1885
  %v2119 = vpop.f32.mrb[0].mxu0
  %v2120 = vadd.f32 %v81, %v2119
  %v2121 = vpop.f32.mrb[0].mxu0
  %2122 = vmatprep.mubr.f32.mxu0 0.0
  %2123 = vmatmul.mubr.f32.gmra.mrb[0].mxu0 %v1888
  %v2124 = vpop.f32.mrb[0].mxu0
  %v2125 = vadd.f32 %v81, %v2124
  %v2126 = vpop.f32.mrb[0].mxu0
  %2127 = vmatprep.mubr.f32.mxu0 0.0
  %2128 = vmatmul.mubr.f32.gmra.mrb[0].mxu0 %v1891
  %v2129 = vpop.f32.mrb[0].mxu0
  %v2130 = vadd.f32 %v81, %v2129
  %v2131 = vpop.f32.mrb[0].mxu0
  %2132 = vmatprep.mubr.f32.mxu0 0.0
  %2133 = vmatmul.mubr.f32.gmra.mrb[0].mxu0 %v1894
  %v2134 = vpop.f32.mrb[0].mxu0
  %v2135 = vadd.f32 %v81, %v2134
  %v2136 = vpop.f32.mrb[0].mxu0
  %2137 = vmatprep.mubr.f32.mxu0 0.0
  %2138 = vmatmul.mubr.f32.gmra.mrb[0].mxu0 %v1897
  %v2139 = vpop.f32.mrb[0].mxu0
  %v2140 = vadd.f32 %v81, %v2139
  %v2141 = vpop.f32.mrb[0].mxu0
  %2142 = vmatprep.mubr.f32.mxu0 0.0
  %2143 = vmatmul.mubr.f32.gmra.mrb[0].mxu0 %v1900
  %v2144 = vpop.f32.mrb[0].mxu0
  %v2145 = vadd.f32 %v81, %v2144
  %v2146 = vpop.f32.mrb[0].mxu0
  %2147 = vmatprep.mubr.f32.mxu0 0.0
  %2148 = vmatmul.mubr.f32.gmra.mrb[0].mxu0 %v1903
  %v2149 = vpop.f32.mrb[0].mxu0
  %v2150 = vadd.f32 %v81, %v2149
  %v2151 = vpop.f32.mrb[0].mxu0
  %2152 = vmatprep.mubr.f32.mxu0 0.0
  %2153 = vmatmul.mubr.f32.gmra.mrb[0].mxu0 %v1906
  %v2154 = vpop.f32.mrb[0].mxu0
  %v2155 = vadd.f32 %v81, %v2154
  %v2156 = vpop.f32.mrb[0].mxu0
  %2157 = vmatprep.mubr.f32.mxu0 0.0
  %2158 = vmatmul.mubr.f32.gmra.mrb[0].mxu0 %v1909
  %v2159 = vpop.f32.mrb[0].mxu0
  %v2160 = vadd.f32 %v81, %v2159
  %v2161 = vpop.f32.mrb[0].mxu0
  %2162 = vmatprep.mubr.f32.mxu0 0.0
  %2163 = vmatmul.mubr.f32.gmra.mrb[0].mxu0 %v1912
  %v2164 = vpop.f32.mrb[0].mxu0
  %v2165 = vadd.f32 %v81, %v2164
  %v2166 = vpop.f32.mrb[0].mxu0
  %2167 = vmatprep.mubr.f32.mxu0 0.0
  %2168 = vmatmul.mubr.f32.gmra.mrb[0].mxu0 %v1915
  %v2169 = vpop.f32.mrb[0].mxu0
  %v2170 = vadd.f32 %v81, %v2169
  %v2171 = vpop.f32.mrb[0].mxu0
  %2172 = vmatprep.mubr.f32.mxu0 0.0
  %2173 = vmatmul.mubr.f32.gmra.mrb[0].mxu0 %v1918
  %v2174 = vpop.f32.mrb[0].mxu0
  %v2175 = vadd.f32 %v81, %v2174
  %v2176 = vpop.f32.mrb[0].mxu0
  %2177 = vmatprep.mubr.f32.mxu0 0.0
  %2178 = vmatmul.mubr.f32.gmra.mrb[0].mxu0 %v1921
  %v2179 = vpop.f32.mrb[0].mxu0
  %v2180 = vadd.f32 %v81, %v2179
  %v2181 = vpop.f32.mrb[0].mxu0
  %2182 = vmatprep.mubr.f32.mxu0 0.0
  %2183 = vmatmul.mubr.f32.gmra.mrb[0].mxu0 %v1924
  %v2184 = vpop.f32.mrb[0].mxu0
  %v2185 = vadd.f32 %v81, %v2184
  %v2186 = vpop.f32.mrb[0].mxu0
  %2187 = vmatprep.mubr.f32.mxu0 0.0
  %2188 = vmatmul.mubr.f32.gmra.mrb[0].mxu0 %v1927
  %v2189 = vpop.f32.mrb[0].mxu0
  %v2190 = vadd.f32 %v81, %v2189
  %v2191 = vpop.f32.mrb[0].mxu0
  %2192 = vmatprep.mubr.f32.mxu0 0.0
  %2193 = vmatmul.mubr.f32.gmra.mrb[0].mxu0 %v1930
  %v2194 = vpop.f32.mrb[0].mxu0
  %v2195 = vadd.f32 %v81, %v2194
  %v2196 = vpop.f32.mrb[0].mxu0
  %2197 = vmatprep.mubr.f32.mxu0 0.0
  %2198 = vmatmul.mubr.f32.gmra.mrb[0].mxu0 %v1933
  %v2199 = vpop.f32.mrb[0].mxu0
  %v2200 = vadd.f32 %v81, %v2199
  %v2201 = vpop.f32.mrb[0].mxu0
  %2202 = vmatprep.mubr.f32.mxu0 0.0
  %2203 = vmatmul.mubr.f32.gmra.mrb[0].mxu0 %v1936
  %v2204 = vpop.f32.mrb[0].mxu0
  %v2205 = vadd.f32 %v81, %v2204
  %v2206 = vpop.f32.mrb[0].mxu0
  %2207 = vmatprep.mubr.f32.mxu0 0.0
  %2208 = vmatmul.mubr.f32.gmra.mrb[0].mxu0 %v1939
  %v2209 = vpop.f32.mrb[0].mxu0
  %v2210 = vadd.f32 %v81, %v2209
  %v2211 = vpop.f32.mrb[0].mxu0
  %2212 = vmatprep.mubr.f32.mxu0 0.0
  %2213 = vmatmul.mubr.f32.gmra.mrb[0].mxu0 %v1942
  %v2214 = vpop.f32.mrb[0].mxu0
  %v2215 = vadd.f32 %v81, %v2214
  %v2216 = vpop.f32.mrb[0].mxu0
  %2217 = vmatprep.mubr.f32.mxu0 0.0
  %2218 = vmatmul.mubr.f32.gmra.mrb[0].mxu0 %v1945
  %v2219 = vpop.f32.mrb[0].mxu0
  %v2220 = vadd.f32 %v81, %v2219
  %v2221 = vpop.f32.mrb[0].mxu0
  %2222 = vmatprep.mubr.f32.mxu0 0.0
  %2223 = vmatmul.mubr.f32.gmra.mrb[0].mxu0 %v1948
  %v2224 = vpop.f32.mrb[0].mxu0
  %v2225 = vadd.f32 %v81, %v2224
  %v2226 = vpop.f32.mrb[0].mxu0
  %2227 = vmatprep.mubr.f32.mxu0 0.0
  %2228 = vmatmul.mubr.f32.gmra.mrb[0].mxu0 %v1951
  %v2229 = vpop.f32.mrb[0].mxu0
  %v2230 = vadd.f32 %v81, %v2229
  %v2231 = vpop.f32.mrb[0].mxu0
  %2232 = vmatprep.mubr.f32.mxu0 0.0
  %2233 = vmatmul.mubr.f32.gmra.mrb[0].mxu0 %v1954
  %v2234 = vpop.f32.mrb[0].mxu0
  %v2235 = vadd.f32 %v81, %v2234
  %v2236 = vpop.f32.mrb[0].mxu0
  %2237 = vmatprep.mubr.f32.mxu0 0.0
  %2238 = vmatmul.mubr.f32.gmra.mrb[0].mxu0 %v1957
  %v2239 = vpop.f32.mrb[0].mxu0
  %v2240 = vadd.f32 %v81, %v2239
  %v2241 = vpop.f32.mrb[0].mxu0
  %2242 = vmatprep.mubr.f32.mxu0 0.0
  %2243 = vmatmul.mubr.f32.gmra.mrb[0].mxu0 %v1960
  %v2244 = vpop.f32.mrb[0].mxu0
  %v2245 = vadd.f32 %v81, %v2244
  %v2246 = vpop.f32.mrb[0].mxu0
  %2247 = vmatprep.mubr.f32.mxu0 0.0
  %2248 = vmatmul.mubr.f32.gmra.mrb[0].mxu0 %v1963
  %v2249 = vpop.f32.mrb[0].mxu0
  %v2250 = vadd.f32 %v81, %v2249
  %v2251 = vpop.f32.mrb[0].mxu0
  %2252 = vmatprep.mubr.f32.mxu0 0.0
  %2253 = vmatmul.mubr.f32.gmra.mrb[0].mxu0 %v1966
  %v2254 = vpop.f32.mrb[0].mxu0
  %v2255 = vadd.f32 %v81, %v2254
  %v2256 = vpop.f32.mrb[0].mxu0
  %2257 = vmatprep.mubr.f32.mxu0 0.0
  %2258 = vmatmul.mubr.f32.gmra.mrb[0].mxu0 %v1969
  %v2259 = vpop.f32.mrb[0].mxu0
  %v2260 = vadd.f32 %v81, %v2259
  %v2261 = vpop.f32.mrb[0].mxu0
  %2262 = vmatprep.mubr.f32.mxu0 0.0
  %2263 = vmatmul.mubr.f32.gmra.mrb[0].mxu0 %v1972
  %v2264 = vpop.f32.mrb[0].mxu0
  %v2265 = vadd.f32 %v81, %v2264
  %v2266 = vpop.f32.mrb[0].mxu0
  %2267 = vmatprep.mubr.f32.mxu0 0.0
  %2268 = vmatmul.mubr.f32.gmra.mrb[0].mxu0 %v1975
  %v2269 = vpop.f32.mrb[0].mxu0
  %v2270 = vadd.f32 %v81, %v2269
  %v2271 = vpop.f32.mrb[0].mxu0
  %2272 = vmatprep.mubr.f32.mxu0 0.0
  %2273 = vmatmul.mubr.f32.gmra.mrb[0].mxu0 %v1978
  %v2274 = vpop.f32.mrb[0].mxu0
  %v2275 = vadd.f32 %v81, %v2274
  %v2276 = vpop.f32.mrb[0].mxu0
  %2277 = vmatprep.mubr.f32.mxu0 0.0
  %2278 = vmatmul.mubr.f32.gmra.mrb[0].mxu0 %v1981
  %v2279 = vpop.f32.mrb[0].mxu0
  %v2280 = vadd.f32 %v81, %v2279
  %v2281 = vpop.f32.mrb[0].mxu0
  %2282 = vmatprep.mubr.f32.mxu0 0.0
  %2283 = vmatmul.mubr.f32.gmra.mrb[0].mxu0 %v1984
  %v2284 = vpop.f32.mrb[0].mxu0
  %v2285 = vadd.f32 %v81, %v2284
  %v2286 = vpop.f32.mrb[0].mxu0
  %2287 = vmatprep.mubr.f32.mxu0 0.0
  %2288 = vmatmul.mubr.f32.gmra.mrb[0].mxu0 %v1987
  %v2289 = vpop.f32.mrb[0].mxu0
  %v2290 = vadd.f32 %v81, %v2289
  %v2291 = vpop.f32.mrb[0].mxu0
  %2292 = vmatprep.mubr.f32.mxu0 0.0
  %2293 = vmatmul.mubr.f32.gmra.mrb[0].mxu0 %v1990
  %v2294 = vpop.f32.mrb[0].mxu0
  %v2295 = vadd.f32 %v81, %v2294
  %v2296 = vpop.f32.mrb[0].mxu0
  %2297 = vmatprep.mubr.f32.mxu0 0.0
  %2298 = vmatmul.mubr.f32.gmra.mrb[0].mxu0 %v1993
  %v2299 = vpop.f32.mrb[0].mxu0
  %v2300 = vadd.f32 %v81, %v2299
  %v2301 = vpop.f32.mrb[0].mxu0
  %2302 = vmatprep.mubr.f32.mxu0 0.0
  %2303 = vmatmul.mubr.f32.gmra.mrb[0].mxu0 %v1996
  %v2304 = vpop.f32.mrb[0].mxu0
  %v2305 = vadd.f32 %v81, %v2304
  %v2306 = vpop.f32.mrb[0].mxu0
  %2307 = vdwg.mxu0
  %v2308 = vtanh.pop %v2065
  %v2309 = vtanh.pop %v2070
  %v2310 = vtanh.pop %v2075
  %v2311 = vtanh.pop %v2080
  %v2312 = vtanh.pop %v2085
  %v2313 = vtanh.pop %v2090
  %v2314 = vtanh.pop %v2095
  %v2315 = vtanh.pop %v2100
  %v2316 = vtanh.pop %v2105
  %v2317 = vtanh.pop %v2110
  %v2318 = vtanh.pop %v2115
  %v2319 = vtanh.pop %v2120
  %v2320 = vtanh.pop %v2125
  %v2321 = vtanh.pop %v2130
  %v2322 = vtanh.pop %v2135
  %v2323 = vtanh.pop %v2140
  %v2324 = vtanh.pop %v2145
  %v2325 = vtanh.pop %v2150
  %v2326 = vtanh.pop %v2155
  %v2327 = vtanh.pop %v2160
  %v2328 = vtanh.pop %v2165
  %v2329 = vtanh.pop %v2170
  %v2330 = vtanh.pop %v2175
  %v2331 = vtanh.pop %v2180
  %v2332 = vtanh.pop %v2185
  %v2333 = vtanh.pop %v2190
  %v2334 = vtanh.pop %v2195
  %v2335 = vtanh.pop %v2200
  %v2336 = vtanh.pop %v2205
  %v2337 = vtanh.pop %v2210
  %v2338 = vtanh.pop %v2215
  %v2339 = vtanh.pop %v2220
  %v2340 = vtanh.pop %v2225
  %v2341 = vtanh.pop %v2230
  %v2342 = vtanh.pop %v2235
  %v2343 = vtanh.pop %v2240
  %v2344 = vtanh.pop %v2245
  %v2345 = vtanh.pop %v2250
  %v2346 = vtanh.pop %v2255
  %v2347 = vtanh.pop %v2260
  %v2348 = vtanh.pop %v2265
  %v2349 = vtanh.pop %v2270
  %v2350 = vtanh.pop %v2275
  %v2351 = vtanh.pop %v2280
  %v2352 = vtanh.pop %v2285
  %v2353 = vtanh.pop %v2290
  %v2354 = vtanh.pop %v2295
  %v2355 = vtanh.pop %v2300
  %v2356 = vtanh.pop %v2305
  %v2357 = vadd.f32 %v1753, %v2308
  %v2358 = vadd.f32 %v1754, %v2309
  %v2359 = vadd.f32 %v1755, %v2310
  %v2360 = vadd.f32 %v1756, %v2311
  %v2361 = vadd.f32 %v1757, %v2312
  %v2362 = vadd.f32 %v1758, %v2313
  %v2363 = vadd.f32 %v1759, %v2314
  %v2364 = vadd.f32 %v1760, %v2315
  %v2365 = vadd.f32 %v1761, %v2316
  %v2366 = vadd.f32 %v1762, %v2317
  %v2367 = vadd.f32 %v1763, %v2318
  %v2368 = vadd.f32 %v1764, %v2319
  %v2369 = vadd.f32 %v1765, %v2320
  %v2370 = vadd.f32 %v1766, %v2321
  %v2371 = vadd.f32 %v1767, %v2322
  %v2372 = vadd.f32 %v1768, %v2323
  %v2373 = vadd.f32 %v1769, %v2324
  %v2374 = vadd.f32 %v1770, %v2325
  %v2375 = vadd.f32 %v1771, %v2326
  %v2376 = vadd.f32 %v1772, %v2327
  %v2377 = vadd.f32 %v1773, %v2328
  %v2378 = vadd.f32 %v1774, %v2329
  %v2379 = vadd.f32 %v1775, %v2330
  %v2380 = vadd.f32 %v1776, %v2331
  %v2381 = vadd.f32 %v1777, %v2332
  %v2382 = vadd.f32 %v1778, %v2333
  %v2383 = vadd.f32 %v1779, %v2334
  %v2384 = vadd.f32 %v1780, %v2335
  %v2385 = vadd.f32 %v1781, %v2336
  %v2386 = vadd.f32 %v1782, %v2337
  %v2387 = vadd.f32 %v1783, %v2338
  %v2388 = vadd.f32 %v1784, %v2339
  %v2389 = vadd.f32 %v1785, %v2340
  %v2390 = vadd.f32 %v1786, %v2341
  %v2391 = vadd.f32 %v1787, %v2342
  %v2392 = vadd.f32 %v1788, %v2343
  %v2393 = vadd.f32 %v1789, %v2344
  %v2394 = vadd.f32 %v1790, %v2345
  %v2395 = vadd.f32 %v1791, %v2346
  %v2396 = vadd.f32 %v1792, %v2347
  %v2397 = vadd.f32 %v1793, %v2348
  %v2398 = vadd.f32 %v1794, %v2349
  %v2399 = vadd.f32 %v1795, %v2350
  %v2400 = vadd.f32 %v1796, %v2351
  %v2401 = vadd.f32 %v1797, %v2352
  %v2402 = vadd.f32 %v1798, %v2353
  %v2403 = vadd.f32 %v1799, %v2354
  %v2404 = vadd.f32 %v1800, %v2355
  %v2405 = vadd.f32 %v1801, %v2356
  %v2406 = vmul.f32 %v2357, 0.25
  %v2407 = vmul.f32 %v2358, 0.25
  %v2408 = vmul.f32 %v2359, 0.25
  %v2409 = vmul.f32 %v2360, 0.25
  %v2410 = vmul.f32 %v2361, 0.25
  %v2411 = vmul.f32 %v2362, 0.25
  %v2412 = vmul.f32 %v2363, 0.25
  %v2413 = vmul.f32 %v2364, 0.25
  %v2414 = vmul.f32 %v2365, 0.25
  %v2415 = vmul.f32 %v2366, 0.25
  %v2416 = vmul.f32 %v2367, 0.25
  %v2417 = vmul.f32 %v2368, 0.25
  %v2418 = vmul.f32 %v2369, 0.25
  %v2419 = vmul.f32 %v2370, 0.25
  %v2420 = vmul.f32 %v2371, 0.25
  %v2421 = vmul.f32 %v2372, 0.25
  %v2422 = vmul.f32 %v2373, 0.25
  %v2423 = vmul.f32 %v2374, 0.25
  %v2424 = vmul.f32 %v2375, 0.25
  %v2425 = vmul.f32 %v2376, 0.25
  %v2426 = vmul.f32 %v2377, 0.25
  %v2427 = vmul.f32 %v2378, 0.25
  %v2428 = vmul.f32 %v2379, 0.25
  %v2429 = vmul.f32 %v2380, 0.25
  %v2430 = vmul.f32 %v2381, 0.25
  %v2431 = vmul.f32 %v2382, 0.25
  %v2432 = vmul.f32 %v2383, 0.25
  %v2433 = vmul.f32 %v2384, 0.25
  %v2434 = vmul.f32 %v2385, 0.25
  %v2435 = vmul.f32 %v2386, 0.25
  %v2436 = vmul.f32 %v2387, 0.25
  %v2437 = vmul.f32 %v2388, 0.25
  %v2438 = vmul.f32 %v2389, 0.25
  %v2439 = vmul.f32 %v2390, 0.25
  %v2440 = vmul.f32 %v2391, 0.25
  %v2441 = vmul.f32 %v2392, 0.25
  %v2442 = vmul.f32 %v2393, 0.25
  %v2443 = vmul.f32 %v2394, 0.25
  %v2444 = vmul.f32 %v2395, 0.25
  %v2445 = vmul.f32 %v2396, 0.25
  %v2446 = vmul.f32 %v2397, 0.25
  %v2447 = vmul.f32 %v2398, 0.25
  %v2448 = vmul.f32 %v2399, 0.25
  %v2449 = vmul.f32 %v2400, 0.25
  %v2450 = vmul.f32 %v2401, 0.25
  %v2451 = vmul.f32 %v2402, 0.25
  %v2452 = vmul.f32 %v2403, 0.25
  %v2453 = vmul.f32 %v2404, 0.25
  %v2454 = vmul.f32 %v2405, 0.25
  %vm2455 = vcmask 48128
  %2456 = vst.msk [vmem:[%s6] sm:$0xff] %vm2455, %v2406
  %2457 = vst.msk [vmem:[%s6 + $0x8] sm:$0xff] %vm2455, %v2407
  %2458 = vst.msk [vmem:[%s6 + $0x10] sm:$0xff] %vm2455, %v2408
  %2459 = vst.msk [vmem:[%s6 + $0x18] sm:$0xff] %vm2455, %v2409
  %2460 = vst.msk [vmem:[%s6 + $0x20] sm:$0xff] %vm2455, %v2410
  %2461 = vst.msk [vmem:[%s6 + $0x28] sm:$0xff] %vm2455, %v2411
  %2462 = vst.msk [vmem:[%s6 + $0x30] sm:$0xff] %vm2455, %v2412
  %2463 = vst.msk [vmem:[%s6 + $0x38] sm:$0xff] %vm2455, %v2413
  %2464 = vst.msk [vmem:[%s6 + $0x40] sm:$0xff] %vm2455, %v2414
  %2465 = vst.msk [vmem:[%s6 + $0x48] sm:$0xff] %vm2455, %v2415
  %2466 = vst.msk [vmem:[%s6 + $0x50] sm:$0xff] %vm2455, %v2416
  %2467 = vst.msk [vmem:[%s6 + $0x58] sm:$0xff] %vm2455, %v2417
  %2468 = vst.msk [vmem:[%s6 + $0x60] sm:$0xff] %vm2455, %v2418
  %2469 = vst.msk [vmem:[%s6 + $0x68] sm:$0xff] %vm2455, %v2419
  %2470 = vst.msk [vmem:[%s6 + $0x70] sm:$0xff] %vm2455, %v2420
  %2471 = vst.msk [vmem:[%s6 + $0x78] sm:$0xff] %vm2455, %v2421
  %2472 = vst.msk [vmem:[%s6 + $0x80] sm:$0xff] %vm2455, %v2422
  %2473 = vst.msk [vmem:[%s6 + $0x88] sm:$0xff] %vm2455, %v2423
  %2474 = vst.msk [vmem:[%s6 + $0x90] sm:$0xff] %vm2455, %v2424
  %2475 = vst.msk [vmem:[%s6 + $0x98] sm:$0xff] %vm2455, %v2425
  %2476 = vst.msk [vmem:[%s6 + $0xa0] sm:$0xff] %vm2455, %v2426
  %2477 = vst.msk [vmem:[%s6 + $0xa8] sm:$0xff] %vm2455, %v2427
  %2478 = vst.msk [vmem:[%s6 + $0xb0] sm:$0xff] %vm2455, %v2428
  %2479 = vst.msk [vmem:[%s6 + $0xb8] sm:$0xff] %vm2455, %v2429
  %2480 = vst.msk [vmem:[%s6 + $0xc0] sm:$0xff] %vm2455, %v2430
  %2481 = vst.msk [vmem:[%s6 + $0xc8] sm:$0xff] %vm2455, %v2431
  %2482 = vst.msk [vmem:[%s6 + $0xd0] sm:$0xff] %vm2455, %v2432
  %2483 = vst.msk [vmem:[%s6 + $0xd8] sm:$0xff] %vm2455, %v2433
  %2484 = vst.msk [vmem:[%s6 + $0xe0] sm:$0xff] %vm2455, %v2434
  %2485 = vst.msk [vmem:[%s6 + $0xe8] sm:$0xff] %vm2455, %v2435
  %2486 = vst.msk [vmem:[%s6 + $0xf0] sm:$0xff] %vm2455, %v2436
  %2487 = vst.msk [vmem:[%s6 + $0xf8] sm:$0xff] %vm2455, %v2437
  %2488 = vst.msk [vmem:[%s6 + $0x100] sm:$0xff] %vm2455, %v2438
  %2489 = vst.msk [vmem:[%s6 + $0x108] sm:$0xff] %vm2455, %v2439
  %2490 = vst.msk [vmem:[%s6 + $0x110] sm:$0xff] %vm2455, %v2440
  %2491 = vst.msk [vmem:[%s6 + $0x118] sm:$0xff] %vm2455, %v2441
  %2492 = vst.msk [vmem:[%s6 + $0x120] sm:$0xff] %vm2455, %v2442
  %2493 = vst.msk [vmem:[%s6 + $0x128] sm:$0xff] %vm2455, %v2443
  %2494 = vst.msk [vmem:[%s6 + $0x130] sm:$0xff] %vm2455, %v2444
  %2495 = vst.msk [vmem:[%s6 + $0x138] sm:$0xff] %vm2455, %v2445
  %2496 = vst.msk [vmem:[%s6 + $0x140] sm:$0xff] %vm2455, %v2446
  %2497 = vst.msk [vmem:[%s6 + $0x148] sm:$0xff] %vm2455, %v2447
  %2498 = vst.msk [vmem:[%s6 + $0x150] sm:$0xff] %vm2455, %v2448
  %2499 = vst.msk [vmem:[%s6 + $0x158] sm:$0xff] %vm2455, %v2449
  %2500 = vst.msk [vmem:[%s6 + $0x160] sm:$0xff] %vm2455, %v2450
  %2501 = vst.msk [vmem:[%s6 + $0x168] sm:$0xff] %vm2455, %v2451
  %2502 = vst.msk [vmem:[%s6 + $0x170] sm:$0xff] %vm2455, %v2452
  %2503 = vst.msk [vmem:[%s6 + $0x178] sm:$0xff] %vm2455, %v2453
  %2504 = vst.msk [vmem:[%s6 + $0x180] sm:$0xff] %vm2455, %v2454
  // Predicated region
  $region26: #{lenet5_forward.3} parent=0 // pred_check
    _
  $region27: #{lenet5_forward.3} parent=0 // pred_check_branch
    %2506 = sbr.rel (0) target = $region29
  $region28: #{lenet5_forward.3} parent=0 // pred_region
    _
  $region29: #{lenet5_forward.3} parent=0 // pred_fallthru
    _
  // Predicated region
  $region30: #{lenet5_forward.3} parent=0 // pred_check
    _
  $region31: #{lenet5_forward.3} parent=0 // pred_check_branch
    %2508 = sbr.rel (0) target = $region33
  $region32: #{lenet5_forward.3} parent=0 // pred_region
    _
  $region33: #{lenet5_forward.3} parent=0 // pred_fallthru
    _

// kernel: lenet5_forward.4
$region0: #{lenet5_forward.4}
  #allocation0 [shape = 'u32[]', space=smem, size = 0x4, offset = 0x4, fixed_abs, tag = 'smem constant byte address 0x4 - core index']
  #allocation1 [shape = 'u32[144,128]{1,0:T(1,128)}', space=vmem, size = 0x12000, scoped, tag = 'internal scratch']
  %s0 = inlined_call_operand.vmem [shape: f32[50,150], index: 0, kind: input, shape index: {}]
  %s1 = inlined_call_operand.vmem [shape: f32[50,150], index: 1, kind: input, shape index: {}]
  %s2 = inlined_call_operand.vmem [shape: f32[50,150], index: 2, kind: input, shape index: {}]
  %s3 = inlined_call_operand.vmem [shape: f32[50,150], index: 3, kind: input, shape index: {}]
  %s4 = inlined_call_operand.vmem [shape: f32[150,16], index: 4, kind: input, shape index: {}]
  %s5 = inlined_call_operand.vmem [shape: f32[1,16], index: 5, kind: input, shape index: {}]
  %s6 = inlined_call_operand.vmem [shape: f32[50,16], index: 6, kind: output, shape index: {}]
  %s7 = sld [smem:[#allocation0]]
  $region34: #{lenet5_forward.4} parent=0
    _
  %s9 = ssub.s32 1, %s7
  %s10 = scalar_select 0, %s9, %s7
  // Predicated region
  $region2: #{lenet5_forward.4} parent=0 // pred_check
    _
  $region3: #{lenet5_forward.4} parent=0 // pred_check_branch
    %12 = sbr.rel (0) target = $region5
  $region4: #{lenet5_forward.4} parent=0 // pred_region
    _
  $region5: #{lenet5_forward.4} parent=0 // pred_fallthru
    _
  // Predicated region
  $region6: #{lenet5_forward.4} parent=0 // pred_check
    _
  $region7: #{lenet5_forward.4} parent=0 // pred_check_branch
    %14 = sbr.rel (0) target = $region9
  $region8: #{lenet5_forward.4} parent=0 // pred_region
    _
  $region9: #{lenet5_forward.4} parent=0 // pred_fallthru
    _
  // Predicated region
  $region10: #{lenet5_forward.4} parent=0 // pred_check
    _
  $region11: #{lenet5_forward.4} parent=0 // pred_check_branch
    %16 = sbr.rel (0) target = $region13
  $region12: #{lenet5_forward.4} parent=0 // pred_region
    _
  $region13: #{lenet5_forward.4} parent=0 // pred_fallthru
    _
  // Predicated region
  $region14: #{lenet5_forward.4} parent=0 // pred_check
    _
  $region15: #{lenet5_forward.4} parent=0 // pred_check_branch
    %18 = sbr.rel (0) target = $region17
  $region16: #{lenet5_forward.4} parent=0 // pred_region
    _
  $region17: #{lenet5_forward.4} parent=0 // pred_fallthru
    _
  // Predicated region
  $region18: #{lenet5_forward.4} parent=0 // pred_check
    _
  $region19: #{lenet5_forward.4} parent=0 // pred_check_branch
    %20 = sbr.rel (0) target = $region21
  $region20: #{lenet5_forward.4} parent=0 // pred_region
    _
  $region21: #{lenet5_forward.4} parent=0 // pred_fallthru
    _
  // Predicated region
  $region22: #{lenet5_forward.4} parent=0 // pred_check
    _
  $region23: #{lenet5_forward.4} parent=0 // pred_check_branch
    %22 = sbr.rel (0) target = $region25
  $region24: #{lenet5_forward.4} parent=0 // pred_region
    _
  $region25: #{lenet5_forward.4} parent=0 // pred_fallthru
    _
  %v23 = vld [vmem:[%s4] sm:$0xff]
  %v24 = vld [vmem:[%s4 + $0x8] sm:$0xff]
  %v25 = vld [vmem:[%s4 + $0x10] sm:$0xff]
  %v26 = vld [vmem:[%s4 + $0x18] sm:$0xff]
  %v27 = vld [vmem:[%s4 + $0x20] sm:$0xff]
  %v28 = vld [vmem:[%s4 + $0x28] sm:$0xff]
  %v29 = vld [vmem:[%s4 + $0x30] sm:$0xff]
  %v30 = vld [vmem:[%s4 + $0x38] sm:$0xff]
  %v31 = vld [vmem:[%s4 + $0x40] sm:$0xff]
  %v32 = vld [vmem:[%s4 + $0x48] sm:$0xff]
  %v33 = vld [vmem:[%s4 + $0x50] sm:$0xff]
  %v34 = vld [vmem:[%s4 + $0x58] sm:$0xff]
  %v35 = vld [vmem:[%s4 + $0x60] sm:$0xff]
  %v36 = vld [vmem:[%s4 + $0x68] sm:$0xff]
  %v37 = vld [vmem:[%s4 + $0x70] sm:$0xff]
  %v38 = vld [vmem:[%s4 + $0x78] sm:$0xff]
  %v39 = vld [vmem:[%s4 + $0x80] sm:$0xff]
  %v40 = vld [vmem:[%s4 + $0x88] sm:$0xff]
  %v41 = vld [vmem:[%s4 + $0x90] sm:$0x3f]
  %v42 = vld [vmem:[%s5] sm:$0x1]
  %v43 = vld [vmem:[%s0] sm:$0xff]
  %v44 = vld [vmem:[%s0 + $0x8] sm:$0xff]
  %v45 = vld [vmem:[%s0 + $0x10] sm:$0xff]
  %v46 = vld [vmem:[%s0 + $0x18] sm:$0xff]
  %v47 = vld [vmem:[%s0 + $0x20] sm:$0xff]
  %v48 = vld [vmem:[%s0 + $0x28] sm:$0xff]
  %v49 = vld [vmem:[%s0 + $0x30] sm:$0xff]
  %v50 = vld [vmem:[%s0 + $0x38] sm:$0xff]
  %v51 = vld [vmem:[%s0 + $0x40] sm:$0xff]
  %v52 = vld [vmem:[%s0 + $0x48] sm:$0xff]
  %v53 = vld [vmem:[%s0 + $0x50] sm:$0xff]
  %v54 = vld [vmem:[%s0 + $0x58] sm:$0xff]
  %v55 = vld [vmem:[%s0 + $0x60] sm:$0x3]
  %v56 = vld [vmem:[%s0 + $0x68] sm:$0x3]
  %v58 = vlaneseq
  %v59 = vshrl.u32 %v58, 7
  %v60 = vsub.s32 0, %v59
  %v61 = vrot.slane %v42, %v60
  %vm63 = vcmask 179200
  %v65 = vsel %vm63, %v44, 0
  %v68 = vsel %vm63, %v46, 0
  %v71 = vsel %vm63, %v48, 0
  %v74 = vsel %vm63, %v50, 0
  %v77 = vsel %vm63, %v52, 0
  %v80 = vsel %vm63, %v54, 0
  %v83 = vsel %vm63, %v56, 0
  %vm85 = vcmask 1045504
  %v87 = vsel %vm85, %v41, 0
  %89 = vmatprep.subr.mxu0 0.0
  %90 = vmatpush1.msra.mxu0 %v23
  %91 = vmatprep.subr.mxu0 0.0
  %92 = vmatpush1.msra.mxu0 %v24
  %93 = vmatprep.subr.mxu0 0.0
  %94 = vmatpush1.msra.mxu0 %v25
  %95 = vmatprep.subr.mxu0 0.0
  %96 = vmatpush1.msra.mxu0 %v26
  %97 = vmatprep.subr.mxu0 0.0
  %98 = vmatpush1.msra.mxu0 %v27
  %99 = vmatprep.subr.mxu0 0.0
  %100 = vmatpush1.msra.mxu0 %v28
  %101 = vmatprep.subr.mxu0 0.0
  %102 = vmatpush1.msra.mxu0 %v29
  %103 = vmatprep.subr.mxu0 0.0
  %104 = vmatpush1.msra.mxu0 %v30
  %105 = vmatprep.subr.mxu0 0.0
  %106 = vmatpush1.msra.mxu0 %v31
  %107 = vmatprep.subr.mxu0 0.0
  %108 = vmatpush1.msra.mxu0 %v32
  %109 = vmatprep.subr.mxu0 0.0
  %110 = vmatpush1.msra.mxu0 %v33
  %111 = vmatprep.subr.mxu0 0.0
  %112 = vmatpush1.msra.mxu0 %v34
  %113 = vmatprep.subr.mxu0 0.0
  %114 = vmatpush1.msra.mxu0 %v35
  %115 = vmatprep.subr.mxu0 0.0
  %116 = vmatpush1.msra.mxu0 %v36
  %117 = vmatprep.subr.mxu0 0.0
  %118 = vmatpush1.msra.mxu0 %v37
  %119 = vmatprep.subr.mxu0 0.0
  %120 = vmatpush1.msra.mxu0 %v38
  %121 = vmatprep.subr.mxu0 0.0
  %122 = vmatpush1.msra.mxu0 %v39
  %123 = vmatprep.subr.mxu0 0.0
  %124 = vmatpush1.msra.mxu0 %v40
  %125 = vmatprep.subr.mxu0 0.0
  %126 = vmatpush1.msra.mxu0 %v87
  %127 = vmatprep.subr.mxu0 0.0
  %128 = vmatpush1.msra.mxu0 0.0
  %129 = vmatprep.subr.mxu0 0.0
  %130 = vmatpush1.msra.mxu0 0.0
  %131 = vmatprep.subr.mxu0 0.0
  %132 = vmatpush1.msra.mxu0 0.0
  %133 = vmatprep.subr.mxu0 0.0
  %134 = vmatpush1.msra.mxu0 0.0
  %135 = vmatprep.subr.mxu0 0.0
  %136 = vmatpush1.msra.mxu0 0.0
  %137 = vmatprep.subr.mxu0 0.0
  %138 = vmatpush1.msra.mxu0 0.0
  %139 = vmatprep.subr.mxu0 0.0
  %140 = vmatpush1.msra.mxu0 0.0
  %141 = vmatprep.subr.mxu0 0.0
  %142 = vmatpush1.msra.mxu0 0.0
  %143 = vmatprep.subr.mxu0 0.0
  %144 = vmatpush1.msra.mxu0 0.0
  %145 = vmatprep.subr.mxu0 0.0
  %146 = vmatpush1.msra.mxu0 0.0
  %147 = vmatprep.subr.mxu0 0.0
  %148 = vmatpush1.msra.mxu0 0.0
  %149 = vmatprep.subr.mxu0 0.0
  %150 = vmatpush1.msra.mxu0 0.0
  %151 = vmatprep.subr.mxu0 0.0
  %152 = vmatpush1.msra.mxu0 0.0
  %153 = vmatprep.mubr.f32.mxu0 %v65
  %154 = vmatmul.mubr.f32.gmra.mrb[0].mxu0 %v43
  %v155 = vpop.f32.mrb[0].mxu0
  %v156 = vadd.f32 %v61, %v155
  %v157 = vpop.f32.mrb[0].mxu0
  %158 = vmatprep.mubr.f32.mxu0 %v68
  %159 = vmatmul.mubr.f32.gmra.mrb[0].mxu0 %v45
  %v160 = vpop.f32.mrb[0].mxu0
  %v161 = vadd.f32 %v61, %v160
  %v162 = vpop.f32.mrb[0].mxu0
  %163 = vmatprep.mubr.f32.mxu0 %v71
  %164 = vmatmul.mubr.f32.gmra.mrb[0].mxu0 %v47
  %v165 = vpop.f32.mrb[0].mxu0
  %v166 = vadd.f32 %v61, %v165
  %v167 = vpop.f32.mrb[0].mxu0
  %168 = vmatprep.mubr.f32.mxu0 %v74
  %169 = vmatmul.mubr.f32.gmra.mrb[0].mxu0 %v49
  %v170 = vpop.f32.mrb[0].mxu0
  %v171 = vadd.f32 %v61, %v170
  %v172 = vpop.f32.mrb[0].mxu0
  %173 = vmatprep.mubr.f32.mxu0 %v77
  %174 = vmatmul.mubr.f32.gmra.mrb[0].mxu0 %v51
  %v175 = vpop.f32.mrb[0].mxu0
  %v176 = vadd.f32 %v61, %v175
  %v177 = vpop.f32.mrb[0].mxu0
  %178 = vmatprep.mubr.f32.mxu0 %v80
  %179 = vmatmul.mubr.f32.gmra.mrb[0].mxu0 %v53
  %v180 = vpop.f32.mrb[0].mxu0
  %v181 = vadd.f32 %v61, %v180
  %v182 = vpop.f32.mrb[0].mxu0
  %183 = vmatprep.mubr.f32.mxu0 %v83
  %184 = vmatmul.mubr.f32.gmra.mrb[0].mxu0 %v55
  %v185 = vpop.f32.mrb[0].mxu0
  %v186 = vadd.f32 %v61, %v185
  %v187 = vpop.f32.mrb[0].mxu0
  %188 = vdwg.mxu0
  %v189 = vtanh.pop %v156
  %v190 = vtanh.pop %v161
  %v191 = vtanh.pop %v166
  %v192 = vtanh.pop %v171
  %v193 = vtanh.pop %v176
  %v194 = vtanh.pop %v181
  %v195 = vtanh.pop %v186
  %v196 = vld [vmem:[%s1] sm:$0xff]
  %v197 = vld [vmem:[%s1 + $0x8] sm:$0xff]
  %v198 = vld [vmem:[%s1 + $0x10] sm:$0xff]
  %v199 = vld [vmem:[%s1 + $0x18] sm:$0xff]
  %v200 = vld [vmem:[%s1 + $0x20] sm:$0xff]
  %v201 = vld [vmem:[%s1 + $0x28] sm:$0xff]
  %v202 = vld [vmem:[%s1 + $0x30] sm:$0xff]
  %v203 = vld [vmem:[%s1 + $0x38] sm:$0xff]
  %v204 = vld [vmem:[%s1 + $0x40] sm:$0xff]
  %v205 = vld [vmem:[%s1 + $0x48] sm:$0xff]
  %v206 = vld [vmem:[%s1 + $0x50] sm:$0xff]
  %v207 = vld [vmem:[%s1 + $0x58] sm:$0xff]
  %v208 = vld [vmem:[%s1 + $0x60] sm:$0x3]
  %v209 = vld [vmem:[%s1 + $0x68] sm:$0x3]
  %v211 = vsel %vm63, %v197, 0
  %v214 = vsel %vm63, %v199, 0
  %v217 = vsel %vm63, %v201, 0
  %v220 = vsel %vm63, %v203, 0
  %v223 = vsel %vm63, %v205, 0
  %v226 = vsel %vm63, %v207, 0
  %v229 = vsel %vm63, %v209, 0
  %231 = vmatprep.subr.mxu0 0.0
  %232 = vmatpush1.msra.mxu0 %v23
  %233 = vmatprep.subr.mxu0 0.0
  %234 = vmatpush1.msra.mxu0 %v24
  %235 = vmatprep.subr.mxu0 0.0
  %236 = vmatpush1.msra.mxu0 %v25
  %237 = vmatprep.subr.mxu0 0.0
  %238 = vmatpush1.msra.mxu0 %v26
  %239 = vmatprep.subr.mxu0 0.0
  %240 = vmatpush1.msra.mxu0 %v27
  %241 = vmatprep.subr.mxu0 0.0
  %242 = vmatpush1.msra.mxu0 %v28
  %243 = vmatprep.subr.mxu0 0.0
  %244 = vmatpush1.msra.mxu0 %v29
  %245 = vmatprep.subr.mxu0 0.0
  %246 = vmatpush1.msra.mxu0 %v30
  %247 = vmatprep.subr.mxu0 0.0
  %248 = vmatpush1.msra.mxu0 %v31
  %249 = vmatprep.subr.mxu0 0.0
  %250 = vmatpush1.msra.mxu0 %v32
  %251 = vmatprep.subr.mxu0 0.0
  %252 = vmatpush1.msra.mxu0 %v33
  %253 = vmatprep.subr.mxu0 0.0
  %254 = vmatpush1.msra.mxu0 %v34
  %255 = vmatprep.subr.mxu0 0.0
  %256 = vmatpush1.msra.mxu0 %v35
  %257 = vmatprep.subr.mxu0 0.0
  %258 = vmatpush1.msra.mxu0 %v36
  %259 = vmatprep.subr.mxu0 0.0
  %260 = vmatpush1.msra.mxu0 %v37
  %261 = vmatprep.subr.mxu0 0.0
  %262 = vmatpush1.msra.mxu0 %v38
  %263 = vmatprep.subr.mxu0 0.0
  %264 = vmatpush1.msra.mxu0 %v39
  %265 = vmatprep.subr.mxu0 0.0
  %266 = vmatpush1.msra.mxu0 %v40
  %267 = vmatprep.subr.mxu0 0.0
  %268 = vmatpush1.msra.mxu0 %v87
  %269 = vmatprep.subr.mxu0 0.0
  %270 = vmatpush1.msra.mxu0 0.0
  %271 = vmatprep.subr.mxu0 0.0
  %272 = vmatpush1.msra.mxu0 0.0
  %273 = vmatprep.subr.mxu0 0.0
  %274 = vmatpush1.msra.mxu0 0.0
  %275 = vmatprep.subr.mxu0 0.0
  %276 = vmatpush1.msra.mxu0 0.0
  %277 = vmatprep.subr.mxu0 0.0
  %278 = vmatpush1.msra.mxu0 0.0
  %279 = vmatprep.subr.mxu0 0.0
  %280 = vmatpush1.msra.mxu0 0.0
  %281 = vmatprep.subr.mxu0 0.0
  %282 = vmatpush1.msra.mxu0 0.0
  %283 = vmatprep.subr.mxu0 0.0
  %284 = vmatpush1.msra.mxu0 0.0
  %285 = vmatprep.subr.mxu0 0.0
  %286 = vmatpush1.msra.mxu0 0.0
  %287 = vmatprep.subr.mxu0 0.0
  %288 = vmatpush1.msra.mxu0 0.0
  %289 = vmatprep.subr.mxu0 0.0
  %290 = vmatpush1.msra.mxu0 0.0
  %291 = vmatprep.subr.mxu0 0.0
  %292 = vmatpush1.msra.mxu0 0.0
  %293 = vmatprep.subr.mxu0 0.0
  %294 = vmatpush1.msra.mxu0 0.0
  %295 = vmatprep.mubr.f32.mxu0 %v211
  %296 = vmatmul.mubr.f32.gmra.mrb[0].mxu0 %v196
  %v297 = vpop.f32.mrb[0].mxu0
  %v298 = vadd.f32 %v61, %v297
  %v299 = vpop.f32.mrb[0].mxu0
  %300 = vmatprep.mubr.f32.mxu0 %v214
  %301 = vmatmul.mubr.f32.gmra.mrb[0].mxu0 %v198
  %v302 = vpop.f32.mrb[0].mxu0
  %v303 = vadd.f32 %v61, %v302
  %v304 = vpop.f32.mrb[0].mxu0
  %305 = vmatprep.mubr.f32.mxu0 %v217
  %306 = vmatmul.mubr.f32.gmra.mrb[0].mxu0 %v200
  %v307 = vpop.f32.mrb[0].mxu0
  %v308 = vadd.f32 %v61, %v307
  %v309 = vpop.f32.mrb[0].mxu0
  %310 = vmatprep.mubr.f32.mxu0 %v220
  %311 = vmatmul.mubr.f32.gmra.mrb[0].mxu0 %v202
  %v312 = vpop.f32.mrb[0].mxu0
  %v313 = vadd.f32 %v61, %v312
  %v314 = vpop.f32.mrb[0].mxu0
  %315 = vmatprep.mubr.f32.mxu0 %v223
  %316 = vmatmul.mubr.f32.gmra.mrb[0].mxu0 %v204
  %v317 = vpop.f32.mrb[0].mxu0
  %v318 = vadd.f32 %v61, %v317
  %v319 = vpop.f32.mrb[0].mxu0
  %320 = vmatprep.mubr.f32.mxu0 %v226
  %321 = vmatmul.mubr.f32.gmra.mrb[0].mxu0 %v206
  %v322 = vpop.f32.mrb[0].mxu0
  %v323 = vadd.f32 %v61, %v322
  %v324 = vpop.f32.mrb[0].mxu0
  %325 = vmatprep.mubr.f32.mxu0 %v229
  %326 = vmatmul.mubr.f32.gmra.mrb[0].mxu0 %v208
  %v327 = vpop.f32.mrb[0].mxu0
  %v328 = vadd.f32 %v61, %v327
  %v329 = vpop.f32.mrb[0].mxu0
  %330 = vdwg.mxu0
  %v331 = vtanh.pop %v298
  %v332 = vtanh.pop %v303
  %v333 = vtanh.pop %v308
  %v334 = vtanh.pop %v313
  %v335 = vtanh.pop %v318
  %v336 = vtanh.pop %v323
  %v337 = vtanh.pop %v328
  %v338 = vadd.f32 %v189, %v331
  %v339 = vadd.f32 %v190, %v332
  %v340 = vadd.f32 %v191, %v333
  %v341 = vadd.f32 %v192, %v334
  %v342 = vadd.f32 %v193, %v335
  %v343 = vadd.f32 %v194, %v336
  %v344 = vadd.f32 %v195, %v337
  %v345 = vld [vmem:[%s2] sm:$0xff]
  %v346 = vld [vmem:[%s2 + $0x8] sm:$0xff]
  %v347 = vld [vmem:[%s2 + $0x10] sm:$0xff]
  %v348 = vld [vmem:[%s2 + $0x18] sm:$0xff]
  %v349 = vld [vmem:[%s2 + $0x20] sm:$0xff]
  %v350 = vld [vmem:[%s2 + $0x28] sm:$0xff]
  %v351 = vld [vmem:[%s2 + $0x30] sm:$0xff]
  %v352 = vld [vmem:[%s2 + $0x38] sm:$0xff]
  %v353 = vld [vmem:[%s2 + $0x40] sm:$0xff]
  %v354 = vld [vmem:[%s2 + $0x48] sm:$0xff]
  %v355 = vld [vmem:[%s2 + $0x50] sm:$0xff]
  %v356 = vld [vmem:[%s2 + $0x58] sm:$0xff]
  %v357 = vld [vmem:[%s2 + $0x60] sm:$0x3]
  %v358 = vld [vmem:[%s2 + $0x68] sm:$0x3]
  %v360 = vsel %vm63, %v346, 0
  %v363 = vsel %vm63, %v348, 0
  %v366 = vsel %vm63, %v350, 0
  %v369 = vsel %vm63, %v352, 0
  %v372 = vsel %vm63, %v354, 0
  %v375 = vsel %vm63, %v356, 0
  %v378 = vsel %vm63, %v358, 0
  %380 = vmatprep.subr.mxu0 0.0
  %381 = vmatpush1.msra.mxu0 %v23
  %382 = vmatprep.subr.mxu0 0.0
  %383 = vmatpush1.msra.mxu0 %v24
  %384 = vmatprep.subr.mxu0 0.0
  %385 = vmatpush1.msra.mxu0 %v25
  %386 = vmatprep.subr.mxu0 0.0
  %387 = vmatpush1.msra.mxu0 %v26
  %388 = vmatprep.subr.mxu0 0.0
  %389 = vmatpush1.msra.mxu0 %v27
  %390 = vmatprep.subr.mxu0 0.0
  %391 = vmatpush1.msra.mxu0 %v28
  %392 = vmatprep.subr.mxu0 0.0
  %393 = vmatpush1.msra.mxu0 %v29
  %394 = vmatprep.subr.mxu0 0.0
  %395 = vmatpush1.msra.mxu0 %v30
  %396 = vmatprep.subr.mxu0 0.0
  %397 = vmatpush1.msra.mxu0 %v31
  %398 = vmatprep.subr.mxu0 0.0
  %399 = vmatpush1.msra.mxu0 %v32
  %400 = vmatprep.subr.mxu0 0.0
  %401 = vmatpush1.msra.mxu0 %v33
  %402 = vmatprep.subr.mxu0 0.0
  %403 = vmatpush1.msra.mxu0 %v34
  %404 = vmatprep.subr.mxu0 0.0
  %405 = vmatpush1.msra.mxu0 %v35
  %406 = vmatprep.subr.mxu0 0.0
  %407 = vmatpush1.msra.mxu0 %v36
  %408 = vmatprep.subr.mxu0 0.0
  %409 = vmatpush1.msra.mxu0 %v37
  %410 = vmatprep.subr.mxu0 0.0
  %411 = vmatpush1.msra.mxu0 %v38
  %412 = vmatprep.subr.mxu0 0.0
  %413 = vmatpush1.msra.mxu0 %v39
  %414 = vmatprep.subr.mxu0 0.0
  %415 = vmatpush1.msra.mxu0 %v40
  %416 = vmatprep.subr.mxu0 0.0
  %417 = vmatpush1.msra.mxu0 %v87
  %418 = vmatprep.subr.mxu0 0.0
  %419 = vmatpush1.msra.mxu0 0.0
  %420 = vmatprep.subr.mxu0 0.0
  %421 = vmatpush1.msra.mxu0 0.0
  %422 = vmatprep.subr.mxu0 0.0
  %423 = vmatpush1.msra.mxu0 0.0
  %424 = vmatprep.subr.mxu0 0.0
  %425 = vmatpush1.msra.mxu0 0.0
  %426 = vmatprep.subr.mxu0 0.0
  %427 = vmatpush1.msra.mxu0 0.0
  %428 = vmatprep.subr.mxu0 0.0
  %429 = vmatpush1.msra.mxu0 0.0
  %430 = vmatprep.subr.mxu0 0.0
  %431 = vmatpush1.msra.mxu0 0.0
  %432 = vmatprep.subr.mxu0 0.0
  %433 = vmatpush1.msra.mxu0 0.0
  %434 = vmatprep.subr.mxu0 0.0
  %435 = vmatpush1.msra.mxu0 0.0
  %436 = vmatprep.subr.mxu0 0.0
  %437 = vmatpush1.msra.mxu0 0.0
  %438 = vmatprep.subr.mxu0 0.0
  %439 = vmatpush1.msra.mxu0 0.0
  %440 = vmatprep.subr.mxu0 0.0
  %441 = vmatpush1.msra.mxu0 0.0
  %442 = vmatprep.subr.mxu0 0.0
  %443 = vmatpush1.msra.mxu0 0.0
  %444 = vmatprep.mubr.f32.mxu0 %v360
  %445 = vmatmul.mubr.f32.gmra.mrb[0].mxu0 %v345
  %v446 = vpop.f32.mrb[0].mxu0
  %v447 = vadd.f32 %v61, %v446
  %v448 = vpop.f32.mrb[0].mxu0
  %449 = vmatprep.mubr.f32.mxu0 %v363
  %450 = vmatmul.mubr.f32.gmra.mrb[0].mxu0 %v347
  %v451 = vpop.f32.mrb[0].mxu0
  %v452 = vadd.f32 %v61, %v451
  %v453 = vpop.f32.mrb[0].mxu0
  %454 = vmatprep.mubr.f32.mxu0 %v366
  %455 = vmatmul.mubr.f32.gmra.mrb[0].mxu0 %v349
  %v456 = vpop.f32.mrb[0].mxu0
  %v457 = vadd.f32 %v61, %v456
  %v458 = vpop.f32.mrb[0].mxu0
  %459 = vmatprep.mubr.f32.mxu0 %v369
  %460 = vmatmul.mubr.f32.gmra.mrb[0].mxu0 %v351
  %v461 = vpop.f32.mrb[0].mxu0
  %v462 = vadd.f32 %v61, %v461
  %v463 = vpop.f32.mrb[0].mxu0
  %464 = vmatprep.mubr.f32.mxu0 %v372
  %465 = vmatmul.mubr.f32.gmra.mrb[0].mxu0 %v353
  %v466 = vpop.f32.mrb[0].mxu0
  %v467 = vadd.f32 %v61, %v466
  %v468 = vpop.f32.mrb[0].mxu0
  %469 = vmatprep.mubr.f32.mxu0 %v375
  %470 = vmatmul.mubr.f32.gmra.mrb[0].mxu0 %v355
  %v471 = vpop.f32.mrb[0].mxu0
  %v472 = vadd.f32 %v61, %v471
  %v473 = vpop.f32.mrb[0].mxu0
  %474 = vmatprep.mubr.f32.mxu0 %v378
  %475 = vmatmul.mubr.f32.gmra.mrb[0].mxu0 %v357
  %v476 = vpop.f32.mrb[0].mxu0
  %v477 = vadd.f32 %v61, %v476
  %v478 = vpop.f32.mrb[0].mxu0
  %479 = vdwg.mxu0
  %v480 = vtanh.pop %v447
  %v481 = vtanh.pop %v452
  %v482 = vtanh.pop %v457
  %v483 = vtanh.pop %v462
  %v484 = vtanh.pop %v467
  %v485 = vtanh.pop %v472
  %v486 = vtanh.pop %v477
  %v487 = vadd.f32 %v338, %v480
  %v488 = vadd.f32 %v339, %v481
  %v489 = vadd.f32 %v340, %v482
  %v490 = vadd.f32 %v341, %v483
  %v491 = vadd.f32 %v342, %v484
  %v492 = vadd.f32 %v343, %v485
  %v493 = vadd.f32 %v344, %v486
  %v494 = vld [vmem:[%s3] sm:$0xff]
  %v495 = vld [vmem:[%s3 + $0x8] sm:$0xff]
  %v496 = vld [vmem:[%s3 + $0x10] sm:$0xff]
  %v497 = vld [vmem:[%s3 + $0x18] sm:$0xff]
  %v498 = vld [vmem:[%s3 + $0x20] sm:$0xff]
  %v499 = vld [vmem:[%s3 + $0x28] sm:$0xff]
  %v500 = vld [vmem:[%s3 + $0x30] sm:$0xff]
  %v501 = vld [vmem:[%s3 + $0x38] sm:$0xff]
  %v502 = vld [vmem:[%s3 + $0x40] sm:$0xff]
  %v503 = vld [vmem:[%s3 + $0x48] sm:$0xff]
  %v504 = vld [vmem:[%s3 + $0x50] sm:$0xff]
  %v505 = vld [vmem:[%s3 + $0x58] sm:$0xff]
  %v506 = vld [vmem:[%s3 + $0x60] sm:$0x3]
  %v507 = vld [vmem:[%s3 + $0x68] sm:$0x3]
  %v509 = vsel %vm63, %v495, 0
  %v512 = vsel %vm63, %v497, 0
  %v515 = vsel %vm63, %v499, 0
  %v518 = vsel %vm63, %v501, 0
  %v521 = vsel %vm63, %v503, 0
  %v524 = vsel %vm63, %v505, 0
  %v527 = vsel %vm63, %v507, 0
  %529 = vmatprep.subr.mxu0 0.0
  %530 = vmatpush1.msra.mxu0 %v23
  %531 = vmatprep.subr.mxu0 0.0
  %532 = vmatpush1.msra.mxu0 %v24
  %533 = vmatprep.subr.mxu0 0.0
  %534 = vmatpush1.msra.mxu0 %v25
  %535 = vmatprep.subr.mxu0 0.0
  %536 = vmatpush1.msra.mxu0 %v26
  %537 = vmatprep.subr.mxu0 0.0
  %538 = vmatpush1.msra.mxu0 %v27
  %539 = vmatprep.subr.mxu0 0.0
  %540 = vmatpush1.msra.mxu0 %v28
  %541 = vmatprep.subr.mxu0 0.0
  %542 = vmatpush1.msra.mxu0 %v29
  %543 = vmatprep.subr.mxu0 0.0
  %544 = vmatpush1.msra.mxu0 %v30
  %545 = vmatprep.subr.mxu0 0.0
  %546 = vmatpush1.msra.mxu0 %v31
  %547 = vmatprep.subr.mxu0 0.0
  %548 = vmatpush1.msra.mxu0 %v32
  %549 = vmatprep.subr.mxu0 0.0
  %550 = vmatpush1.msra.mxu0 %v33
  %551 = vmatprep.subr.mxu0 0.0
  %552 = vmatpush1.msra.mxu0 %v34
  %553 = vmatprep.subr.mxu0 0.0
  %554 = vmatpush1.msra.mxu0 %v35
  %555 = vmatprep.subr.mxu0 0.0
  %556 = vmatpush1.msra.mxu0 %v36
  %557 = vmatprep.subr.mxu0 0.0
  %558 = vmatpush1.msra.mxu0 %v37
  %559 = vmatprep.subr.mxu0 0.0
  %560 = vmatpush1.msra.mxu0 %v38
  %561 = vmatprep.subr.mxu0 0.0
  %562 = vmatpush1.msra.mxu0 %v39
  %563 = vmatprep.subr.mxu0 0.0
  %564 = vmatpush1.msra.mxu0 %v40
  %565 = vmatprep.subr.mxu0 0.0
  %566 = vmatpush1.msra.mxu0 %v87
  %567 = vmatprep.subr.mxu0 0.0
  %568 = vmatpush1.msra.mxu0 0.0
  %569 = vmatprep.subr.mxu0 0.0
  %570 = vmatpush1.msra.mxu0 0.0
  %571 = vmatprep.subr.mxu0 0.0
  %572 = vmatpush1.msra.mxu0 0.0
  %573 = vmatprep.subr.mxu0 0.0
  %574 = vmatpush1.msra.mxu0 0.0
  %575 = vmatprep.subr.mxu0 0.0
  %576 = vmatpush1.msra.mxu0 0.0
  %577 = vmatprep.subr.mxu0 0.0
  %578 = vmatpush1.msra.mxu0 0.0
  %579 = vmatprep.subr.mxu0 0.0
  %580 = vmatpush1.msra.mxu0 0.0
  %581 = vmatprep.subr.mxu0 0.0
  %582 = vmatpush1.msra.mxu0 0.0
  %583 = vmatprep.subr.mxu0 0.0
  %584 = vmatpush1.msra.mxu0 0.0
  %585 = vmatprep.subr.mxu0 0.0
  %586 = vmatpush1.msra.mxu0 0.0
  %587 = vmatprep.subr.mxu0 0.0
  %588 = vmatpush1.msra.mxu0 0.0
  %589 = vmatprep.subr.mxu0 0.0
  %590 = vmatpush1.msra.mxu0 0.0
  %591 = vmatprep.subr.mxu0 0.0
  %592 = vmatpush1.msra.mxu0 0.0
  %593 = vmatprep.mubr.f32.mxu0 %v509
  %594 = vmatmul.mubr.f32.gmra.mrb[0].mxu0 %v494
  %v595 = vpop.f32.mrb[0].mxu0
  %v596 = vadd.f32 %v61, %v595
  %v597 = vpop.f32.mrb[0].mxu0
  %598 = vmatprep.mubr.f32.mxu0 %v512
  %599 = vmatmul.mubr.f32.gmra.mrb[0].mxu0 %v496
  %v600 = vpop.f32.mrb[0].mxu0
  %v601 = vadd.f32 %v61, %v600
  %v602 = vpop.f32.mrb[0].mxu0
  %603 = vmatprep.mubr.f32.mxu0 %v515
  %604 = vmatmul.mubr.f32.gmra.mrb[0].mxu0 %v498
  %v605 = vpop.f32.mrb[0].mxu0
  %v606 = vadd.f32 %v61, %v605
  %v607 = vpop.f32.mrb[0].mxu0
  %608 = vmatprep.mubr.f32.mxu0 %v518
  %609 = vmatmul.mubr.f32.gmra.mrb[0].mxu0 %v500
  %v610 = vpop.f32.mrb[0].mxu0
  %v611 = vadd.f32 %v61, %v610
  %v612 = vpop.f32.mrb[0].mxu0
  %613 = vmatprep.mubr.f32.mxu0 %v521
  %614 = vmatmul.mubr.f32.gmra.mrb[0].mxu0 %v502
  %v615 = vpop.f32.mrb[0].mxu0
  %v616 = vadd.f32 %v61, %v615
  %v617 = vpop.f32.mrb[0].mxu0
  %618 = vmatprep.mubr.f32.mxu0 %v524
  %619 = vmatmul.mubr.f32.gmra.mrb[0].mxu0 %v504
  %v620 = vpop.f32.mrb[0].mxu0
  %v621 = vadd.f32 %v61, %v620
  %v622 = vpop.f32.mrb[0].mxu0
  %623 = vmatprep.mubr.f32.mxu0 %v527
  %624 = vmatmul.mubr.f32.gmra.mrb[0].mxu0 %v506
  %v625 = vpop.f32.mrb[0].mxu0
  %v626 = vadd.f32 %v61, %v625
  %v627 = vpop.f32.mrb[0].mxu0
  %628 = vdwg.mxu0
  %v629 = vtanh.pop %v596
  %v630 = vtanh.pop %v601
  %v631 = vtanh.pop %v606
  %v632 = vtanh.pop %v611
  %v633 = vtanh.pop %v616
  %v634 = vtanh.pop %v621
  %v635 = vtanh.pop %v626
  %v636 = vadd.f32 %v487, %v629
  %v637 = vadd.f32 %v488, %v630
  %v638 = vadd.f32 %v489, %v631
  %v639 = vadd.f32 %v490, %v632
  %v640 = vadd.f32 %v491, %v633
  %v641 = vadd.f32 %v492, %v634
  %v642 = vadd.f32 %v493, %v635
  %v643 = vmul.f32 %v636, 0.25
  %v644 = vmul.f32 %v637, 0.25
  %v645 = vmul.f32 %v638, 0.25
  %v646 = vmul.f32 %v639, 0.25
  %v647 = vmul.f32 %v640, 0.25
  %v648 = vmul.f32 %v641, 0.25
  %v649 = vmul.f32 %v642, 0.25
  %vm650 = vcmask 130048
  %651 = vst.msk [vmem:[%s6] sm:$0xff] %vm650, %v643
  %652 = vst.msk [vmem:[%s6 + $0x8] sm:$0xff] %vm650, %v644
  %653 = vst.msk [vmem:[%s6 + $0x10] sm:$0xff] %vm650, %v645
  %654 = vst.msk [vmem:[%s6 + $0x18] sm:$0xff] %vm650, %v646
  %655 = vst.msk [vmem:[%s6 + $0x20] sm:$0xff] %vm650, %v647
  %656 = vst.msk [vmem:[%s6 + $0x28] sm:$0xff] %vm650, %v648
  %vm657 = vcmask 123904
  %658 = vst.msk [vmem:[%s6 + $0x30] sm:$0x3] %vm657, %v649
  // Predicated region
  $region26: #{lenet5_forward.4} parent=0 // pred_check
    _
  $region27: #{lenet5_forward.4} parent=0 // pred_check_branch
    %660 = sbr.rel (0) target = $region29
  $region28: #{lenet5_forward.4} parent=0 // pred_region
    _
  $region29: #{lenet5_forward.4} parent=0 // pred_fallthru
    _
  // Predicated region
  $region30: #{lenet5_forward.4} parent=0 // pred_check
    _
  $region31: #{lenet5_forward.4} parent=0 // pred_check_branch
    %662 = sbr.rel (0) target = $region33
  $region32: #{lenet5_forward.4} parent=0 // pred_region
    _
  $region33: #{lenet5_forward.4} parent=0 // pred_fallthru
    _

// kernel: lenet5_forward.5
$region0: #{lenet5_forward.5}
  #allocation0 [shape = 'u32[]', space=smem, size = 0x4, offset = 0x4, fixed_abs, tag = 'smem constant byte address 0x4 - core index']
  #allocation1 [shape = 'u32[144,128]{1,0:T(1,128)}', space=vmem, size = 0x12000, scoped, tag = 'internal scratch']
  %s0 = inlined_call_operand.vmem [shape: f32[2,400], index: 0, kind: input, shape index: {}]
  %s1 = inlined_call_operand.vmem [shape: f32[400,128], index: 1, kind: input, shape index: {}]
  %s2 = inlined_call_operand.vmem [shape: f32[1,128], index: 2, kind: input, shape index: {}]
  %s3 = inlined_call_operand.vmem [shape: f32[128,128], index: 3, kind: input, shape index: {}]
  %s4 = inlined_call_operand.vmem [shape: f32[1,128], index: 4, kind: input, shape index: {}]
  %s5 = inlined_call_operand.vmem [shape: f32[128,10], index: 5, kind: input, shape index: {}]
  %s6 = inlined_call_operand.vmem [shape: f32[1,10], index: 6, kind: input, shape index: {}]
  %s7 = inlined_call_operand.hbm [shape: f32[2,10], index: 7, kind: output, shape index: {}]
  %s8 = sld [smem:[#allocation0]]
  $region38: #{lenet5_forward.5} parent=0
    _
  %s10 = ssub.s32 1, %s8
  %s11 = scalar_select 0, %s10, %s8
  $region1: #{lenet5_forward.5} parent=0
    #allocation2 [shape = 'u8[1024]{0}', space=vmem, size = 0x400, scoped, tag = 'output window, operand 0, single buffered']
    #allocation3 [shape = 's32[1]{0}', space=sflag, size = 0x4, scoped, tag = 'scoped memory for lenet5_forward.5']
    %12 = vsyncpa [#allocation3], 0
    // Predicated region
    $region2: #{lenet5_forward.5} parent=1 // pred_check
      _
    $region3: #{lenet5_forward.5} parent=1 // pred_check_branch
      %14 = sbr.rel (0) target = $region5
    $region4: #{lenet5_forward.5} parent=1 // pred_region
      _
    $region5: #{lenet5_forward.5} parent=1 // pred_fallthru
      _
    // Predicated region
    $region6: #{lenet5_forward.5} parent=1 // pred_check
      _
    $region7: #{lenet5_forward.5} parent=1 // pred_check_branch
      %16 = sbr.rel (0) target = $region9
    $region8: #{lenet5_forward.5} parent=1 // pred_region
      _
    $region9: #{lenet5_forward.5} parent=1 // pred_fallthru
      _
    // Predicated region
    $region10: #{lenet5_forward.5} parent=1 // pred_check
      _
    $region11: #{lenet5_forward.5} parent=1 // pred_check_branch
      %18 = sbr.rel (0) target = $region13
    $region12: #{lenet5_forward.5} parent=1 // pred_region
      _
    $region13: #{lenet5_forward.5} parent=1 // pred_fallthru
      _
    // Predicated region
    $region14: #{lenet5_forward.5} parent=1 // pred_check
      _
    $region15: #{lenet5_forward.5} parent=1 // pred_check_branch
      %20 = sbr.rel (0) target = $region17
    $region16: #{lenet5_forward.5} parent=1 // pred_region
      _
    $region17: #{lenet5_forward.5} parent=1 // pred_fallthru
      _
    // Predicated region
    $region18: #{lenet5_forward.5} parent=1 // pred_check
      _
    $region19: #{lenet5_forward.5} parent=1 // pred_check_branch
      %22 = sbr.rel (0) target = $region21
    $region20: #{lenet5_forward.5} parent=1 // pred_region
      _
    $region21: #{lenet5_forward.5} parent=1 // pred_fallthru
      _
    // Predicated region
    $region22: #{lenet5_forward.5} parent=1 // pred_check
      _
    $region23: #{lenet5_forward.5} parent=1 // pred_check_branch
      %24 = sbr.rel (0) target = $region25
    $region24: #{lenet5_forward.5} parent=1 // pred_region
      _
    $region25: #{lenet5_forward.5} parent=1 // pred_fallthru
      _
    // Predicated region
    $region26: #{lenet5_forward.5} parent=1 // pred_check
      _
    $region27: #{lenet5_forward.5} parent=1 // pred_check_branch
      %26 = sbr.rel (0) target = $region29
    $region28: #{lenet5_forward.5} parent=1 // pred_region
      _
    $region29: #{lenet5_forward.5} parent=1 // pred_fallthru
      _
    %v27 = vld [vmem:[%s0] sm:$0xff]
    %v28 = vld [vmem:[%s1] sm:$0xff]
    %v29 = vld [vmem:[%s1 + $0x8] sm:$0xff]
    %v30 = vld [vmem:[%s1 + $0x10] sm:$0xff]
    %v31 = vld [vmem:[%s1 + $0x18] sm:$0xff]
    %v32 = vld [vmem:[%s1 + $0x20] sm:$0xff]
    %v33 = vld [vmem:[%s1 + $0x28] sm:$0xff]
    %v34 = vld [vmem:[%s1 + $0x30] sm:$0xff]
    %v35 = vld [vmem:[%s1 + $0x38] sm:$0xff]
    %v36 = vld [vmem:[%s1 + $0x40] sm:$0xff]
    %v37 = vld [vmem:[%s1 + $0x48] sm:$0xff]
    %v38 = vld [vmem:[%s1 + $0x50] sm:$0xff]
    %v39 = vld [vmem:[%s1 + $0x58] sm:$0xff]
    %v40 = vld [vmem:[%s1 + $0x60] sm:$0xff]
    %v41 = vld [vmem:[%s1 + $0x68] sm:$0xff]
    %v42 = vld [vmem:[%s1 + $0x70] sm:$0xff]
    %v43 = vld [vmem:[%s1 + $0x78] sm:$0xff]
    %v44 = vld [vmem:[%s1 + $0x80] sm:$0xff]
    %v45 = vld [vmem:[%s1 + $0x88] sm:$0xff]
    %v46 = vld [vmem:[%s1 + $0x90] sm:$0xff]
    %v47 = vld [vmem:[%s1 + $0x98] sm:$0xff]
    %v48 = vld [vmem:[%s1 + $0xa0] sm:$0xff]
    %v49 = vld [vmem:[%s1 + $0xa8] sm:$0xff]
    %v50 = vld [vmem:[%s1 + $0xb0] sm:$0xff]
    %v51 = vld [vmem:[%s1 + $0xb8] sm:$0xff]
    %v52 = vld [vmem:[%s1 + $0xc0] sm:$0xff]
    %v53 = vld [vmem:[%s1 + $0xc8] sm:$0xff]
    %v54 = vld [vmem:[%s1 + $0xd0] sm:$0xff]
    %v55 = vld [vmem:[%s1 + $0xd8] sm:$0xff]
    %v56 = vld [vmem:[%s1 + $0xe0] sm:$0xff]
    %v57 = vld [vmem:[%s1 + $0xe8] sm:$0xff]
    %v58 = vld [vmem:[%s1 + $0xf0] sm:$0xff]
    %v59 = vld [vmem:[%s1 + $0xf8] sm:$0xff]
    %v60 = vld [vmem:[%s1 + $0x100] sm:$0xff]
    %v61 = vld [vmem:[%s1 + $0x108] sm:$0xff]
    %v62 = vld [vmem:[%s1 + $0x110] sm:$0xff]
    %v63 = vld [vmem:[%s1 + $0x118] sm:$0xff]
    %v64 = vld [vmem:[%s1 + $0x120] sm:$0xff]
    %v65 = vld [vmem:[%s1 + $0x128] sm:$0xff]
    %v66 = vld [vmem:[%s1 + $0x130] sm:$0xff]
    %v67 = vld [vmem:[%s1 + $0x138] sm:$0xff]
    %v68 = vld [vmem:[%s1 + $0x140] sm:$0xff]
    %v69 = vld [vmem:[%s1 + $0x148] sm:$0xff]
    %v70 = vld [vmem:[%s1 + $0x150] sm:$0xff]
    %v71 = vld [vmem:[%s1 + $0x158] sm:$0xff]
    %v72 = vld [vmem:[%s1 + $0x160] sm:$0xff]
    %v73 = vld [vmem:[%s1 + $0x168] sm:$0xff]
    %v74 = vld [vmem:[%s1 + $0x170] sm:$0xff]
    %v75 = vld [vmem:[%s1 + $0x178] sm:$0xff]
    %v76 = vld [vmem:[%s1 + $0x180] sm:$0xff]
    %v77 = vld [vmem:[%s1 + $0x188] sm:$0xff]
    %v78 = vld [vmem:[%s2] sm:$0x1]
    %v80 = vlaneseq
    %v81 = vshrl.u32 %v80, 7
    %v82 = vsub.s32 0, %v81
    %v83 = vrot.slane %v78, %v82
    %v86 = vcombine.high %v27, %v27
    %v88 = vunpack.c.l.s4 1983009808
    %v89 = vunpack.c.0.s8 %v88
    %v90 = vlaneseq
    %v91 = vshrl.u32 %v90, 7
    %v92 = vsub.s32 %v89, %v91
    %v93 = vrot.slane %v27, %v92
    %v95 = vunpack.c.l.s4 1983009808
    %v96 = vunpack.c.0.s8 %v95
    %v97 = vlaneseq
    %v98 = vshrl.u32 %v97, 7
    %v99 = vsub.s32 %v96, %v98
    %v100 = vrot.slane %v86, %v99
    %v101 = vcombine.high %v93, %v93
    %v102 = vcombine.high %v100, %v100
    %vm106 = vcmask 130048
    %v107 = vsel %vm106, %v102, 0
    %109 = vmatprep.subr.mxu0 0.0
    %110 = vmatpush1.msra.mxu0 %v28
    %111 = vmatprep.subr.mxu0 0.0
    %112 = vmatpush1.msra.mxu0 %v29
    %113 = vmatprep.subr.mxu0 0.0
    %114 = vmatpush1.msra.mxu0 %v30
    %115 = vmatprep.subr.mxu0 0.0
    %116 = vmatpush1.msra.mxu0 %v31
    %117 = vmatprep.subr.mxu0 0.0
    %118 = vmatpush1.msra.mxu0 %v32
    %119 = vmatprep.subr.mxu0 0.0
    %120 = vmatpush1.msra.mxu0 %v33
    %121 = vmatprep.subr.mxu0 0.0
    %122 = vmatpush1.msra.mxu0 %v34
    %123 = vmatprep.subr.mxu0 0.0
    %124 = vmatpush1.msra.mxu0 %v35
    %125 = vmatprep.subr.mxu0 0.0
    %126 = vmatpush1.msra.mxu0 %v36
    %127 = vmatprep.subr.mxu0 0.0
    %128 = vmatpush1.msra.mxu0 %v37
    %129 = vmatprep.subr.mxu0 0.0
    %130 = vmatpush1.msra.mxu0 %v38
    %131 = vmatprep.subr.mxu0 0.0
    %132 = vmatpush1.msra.mxu0 %v39
    %133 = vmatprep.subr.mxu0 0.0
    %134 = vmatpush1.msra.mxu0 %v40
    %135 = vmatprep.subr.mxu0 0.0
    %136 = vmatpush1.msra.mxu0 %v41
    %137 = vmatprep.subr.mxu0 0.0
    %138 = vmatpush1.msra.mxu0 %v42
    %139 = vmatprep.subr.mxu0 0.0
    %140 = vmatpush1.msra.mxu0 %v43
    %141 = vmatprep.subr.mxu0 0.0
    %142 = vmatpush1.msra.mxu0 %v44
    %143 = vmatprep.subr.mxu0 0.0
    %144 = vmatpush1.msra.mxu0 %v45
    %145 = vmatprep.subr.mxu0 0.0
    %146 = vmatpush1.msra.mxu0 %v46
    %147 = vmatprep.subr.mxu0 0.0
    %148 = vmatpush1.msra.mxu0 %v47
    %149 = vmatprep.subr.mxu0 0.0
    %150 = vmatpush1.msra.mxu0 %v48
    %151 = vmatprep.subr.mxu0 0.0
    %152 = vmatpush1.msra.mxu0 %v49
    %153 = vmatprep.subr.mxu0 0.0
    %154 = vmatpush1.msra.mxu0 %v50
    %155 = vmatprep.subr.mxu0 0.0
    %156 = vmatpush1.msra.mxu0 %v51
    %157 = vmatprep.subr.mxu0 0.0
    %158 = vmatpush1.msra.mxu0 %v52
    %159 = vmatprep.subr.mxu0 0.0
    %160 = vmatpush1.msra.mxu0 %v53
    %161 = vmatprep.subr.mxu0 0.0
    %162 = vmatpush1.msra.mxu0 %v54
    %163 = vmatprep.subr.mxu0 0.0
    %164 = vmatpush1.msra.mxu0 %v55
    %165 = vmatprep.subr.mxu0 0.0
    %166 = vmatpush1.msra.mxu0 %v56
    %167 = vmatprep.subr.mxu0 0.0
    %168 = vmatpush1.msra.mxu0 %v57
    %169 = vmatprep.subr.mxu0 0.0
    %170 = vmatpush1.msra.mxu0 %v58
    %171 = vmatprep.subr.mxu0 0.0
    %172 = vmatpush1.msra.mxu0 %v59
    %173 = vmatprep.mubr.f32.mxu0 %v101
    %174 = vmatmul.mubr.f32.gmra.mrb[0].mxu0 %v93
    %v175 = vpop.f32.mrb[0].mxu0
    %v176 = vadd.f32 %v83, %v175
    %v177 = vpop.f32.mrb[0].mxu0
    %178 = vdwg.mxu0
    %179 = vmatprep.subr.mxu0 0.0
    %180 = vmatpush1.msra.mxu0 %v60
    %181 = vmatprep.subr.mxu0 0.0
    %182 = vmatpush1.msra.mxu0 %v61
    %183 = vmatprep.subr.mxu0 0.0
    %184 = vmatpush1.msra.mxu0 %v62
    %185 = vmatprep.subr.mxu0 0.0
    %186 = vmatpush1.msra.mxu0 %v63
    %187 = vmatprep.subr.mxu0 0.0
    %188 = vmatpush1.msra.mxu0 %v64
    %189 = vmatprep.subr.mxu0 0.0
    %190 = vmatpush1.msra.mxu0 %v65
    %191 = vmatprep.subr.mxu0 0.0
    %192 = vmatpush1.msra.mxu0 %v66
    %193 = vmatprep.subr.mxu0 0.0
    %194 = vmatpush1.msra.mxu0 %v67
    %195 = vmatprep.subr.mxu0 0.0
    %196 = vmatpush1.msra.mxu0 %v68
    %197 = vmatprep.subr.mxu0 0.0
    %198 = vmatpush1.msra.mxu0 %v69
    %199 = vmatprep.subr.mxu0 0.0
    %200 = vmatpush1.msra.mxu0 %v70
    %201 = vmatprep.subr.mxu0 0.0
    %202 = vmatpush1.msra.mxu0 %v71
    %203 = vmatprep.subr.mxu0 0.0
    %204 = vmatpush1.msra.mxu0 %v72
    %205 = vmatprep.subr.mxu0 0.0
    %206 = vmatpush1.msra.mxu0 %v73
    %207 = vmatprep.subr.mxu0 0.0
    %208 = vmatpush1.msra.mxu0 %v74
    %209 = vmatprep.subr.mxu0 0.0
    %210 = vmatpush1.msra.mxu0 %v75
    %211 = vmatprep.subr.mxu0 0.0
    %212 = vmatpush1.msra.mxu0 %v76
    %213 = vmatprep.subr.mxu0 0.0
    %214 = vmatpush1.msra.mxu0 %v77
    %215 = vmatprep.subr.mxu0 0.0
    %216 = vmatpush1.msra.mxu0 0.0
    %217 = vmatprep.subr.mxu0 0.0
    %218 = vmatpush1.msra.mxu0 0.0
    %219 = vmatprep.subr.mxu0 0.0
    %220 = vmatpush1.msra.mxu0 0.0
    %221 = vmatprep.subr.mxu0 0.0
    %222 = vmatpush1.msra.mxu0 0.0
    %223 = vmatprep.subr.mxu0 0.0
    %224 = vmatpush1.msra.mxu0 0.0
    %225 = vmatprep.subr.mxu0 0.0
    %226 = vmatpush1.msra.mxu0 0.0
    %227 = vmatprep.subr.mxu0 0.0
    %228 = vmatpush1.msra.mxu0 0.0
    %229 = vmatprep.subr.mxu0 0.0
    %230 = vmatpush1.msra.mxu0 0.0
    %231 = vmatprep.subr.mxu0 0.0
    %232 = vmatpush1.msra.mxu0 0.0
    %233 = vmatprep.subr.mxu0 0.0
    %234 = vmatpush1.msra.mxu0 0.0
    %235 = vmatprep.subr.mxu0 0.0
    %236 = vmatpush1.msra.mxu0 0.0
    %237 = vmatprep.subr.mxu0 0.0
    %238 = vmatpush1.msra.mxu0 0.0
    %239 = vmatprep.subr.mxu0 0.0
    %240 = vmatpush1.msra.mxu0 0.0
    %241 = vmatprep.subr.mxu0 0.0
    %242 = vmatpush1.msra.mxu0 0.0
    %243 = vmatprep.mubr.f32.mxu0 %v107
    %244 = vmatmul.mubr.f32.gmra.mrb[0].mxu0 %v100
    %v245 = vpop.f32.mrb[0].mxu0
    %v246 = vadd.f32 %v176, %v245
    %v247 = vpop.f32.mrb[0].mxu0
    %248 = vdwg.mxu0
    %v249 = vtanh.pop %v246
    %v250 = vld [vmem:[%s3] sm:$0xff]
    %v251 = vld [vmem:[%s3 + $0x8] sm:$0xff]
    %v252 = vld [vmem:[%s3 + $0x10] sm:$0xff]
    %v253 = vld [vmem:[%s3 + $0x18] sm:$0xff]
    %v254 = vld [vmem:[%s3 + $0x20] sm:$0xff]
    %v255 = vld [vmem:[%s3 + $0x28] sm:$0xff]
    %v256 = vld [vmem:[%s3 + $0x30] sm:$0xff]
    %v257 = vld [vmem:[%s3 + $0x38] sm:$0xff]
    %v258 = vld [vmem:[%s3 + $0x40] sm:$0xff]
    %v259 = vld [vmem:[%s3 + $0x48] sm:$0xff]
    %v260 = vld [vmem:[%s3 + $0x50] sm:$0xff]
    %v261 = vld [vmem:[%s3 + $0x58] sm:$0xff]
    %v262 = vld [vmem:[%s3 + $0x60] sm:$0xff]
    %v263 = vld [vmem:[%s3 + $0x68] sm:$0xff]
    %v264 = vld [vmem:[%s3 + $0x70] sm:$0xff]
    %v265 = vld [vmem:[%s3 + $0x78] sm:$0xff]
    %v266 = vld [vmem:[%s4] sm:$0x1]
    %v268 = vlaneseq
    %v269 = vshrl.u32 %v268, 7
    %v270 = vsub.s32 0, %v269
    %v271 = vrot.slane %v266, %v270
    %273 = vmatprep.subr.mxu0 0.0
    %274 = vmatpush1.msra.mxu0 %v250
    %275 = vmatprep.subr.mxu0 0.0
    %276 = vmatpush1.msra.mxu0 %v251
    %277 = vmatprep.subr.mxu0 0.0
    %278 = vmatpush1.msra.mxu0 %v252
    %279 = vmatprep.subr.mxu0 0.0
    %280 = vmatpush1.msra.mxu0 %v253
    %281 = vmatprep.subr.mxu0 0.0
    %282 = vmatpush1.msra.mxu0 %v254
    %283 = vmatprep.subr.mxu0 0.0
    %284 = vmatpush1.msra.mxu0 %v255
    %285 = vmatprep.subr.mxu0 0.0
    %286 = vmatpush1.msra.mxu0 %v256
    %287 = vmatprep.subr.mxu0 0.0
    %288 = vmatpush1.msra.mxu0 %v257
    %289 = vmatprep.subr.mxu0 0.0
    %290 = vmatpush1.msra.mxu0 %v258
    %291 = vmatprep.subr.mxu0 0.0
    %292 = vmatpush1.msra.mxu0 %v259
    %293 = vmatprep.subr.mxu0 0.0
    %294 = vmatpush1.msra.mxu0 %v260
    %295 = vmatprep.subr.mxu0 0.0
    %296 = vmatpush1.msra.mxu0 %v261
    %297 = vmatprep.subr.mxu0 0.0
    %298 = vmatpush1.msra.mxu0 %v262
    %299 = vmatprep.subr.mxu0 0.0
    %300 = vmatpush1.msra.mxu0 %v263
    %301 = vmatprep.subr.mxu0 0.0
    %302 = vmatpush1.msra.mxu0 %v264
    %303 = vmatprep.subr.mxu0 0.0
    %304 = vmatpush1.msra.mxu0 %v265
    %305 = vmatprep.subr.mxu0 0.0
    %306 = vmatpush1.msra.mxu0 0.0
    %307 = vmatprep.subr.mxu0 0.0
    %308 = vmatpush1.msra.mxu0 0.0
    %309 = vmatprep.subr.mxu0 0.0
    %310 = vmatpush1.msra.mxu0 0.0
    %311 = vmatprep.subr.mxu0 0.0
    %312 = vmatpush1.msra.mxu0 0.0
    %313 = vmatprep.subr.mxu0 0.0
    %314 = vmatpush1.msra.mxu0 0.0
    %315 = vmatprep.subr.mxu0 0.0
    %316 = vmatpush1.msra.mxu0 0.0
    %317 = vmatprep.subr.mxu0 0.0
    %318 = vmatpush1.msra.mxu0 0.0
    %319 = vmatprep.subr.mxu0 0.0
    %320 = vmatpush1.msra.mxu0 0.0
    %321 = vmatprep.subr.mxu0 0.0
    %322 = vmatpush1.msra.mxu0 0.0
    %323 = vmatprep.subr.mxu0 0.0
    %324 = vmatpush1.msra.mxu0 0.0
    %325 = vmatprep.subr.mxu0 0.0
    %326 = vmatpush1.msra.mxu0 0.0
    %327 = vmatprep.subr.mxu0 0.0
    %328 = vmatpush1.msra.mxu0 0.0
    %329 = vmatprep.subr.mxu0 0.0
    %330 = vmatpush1.msra.mxu0 0.0
    %331 = vmatprep.subr.mxu0 0.0
    %332 = vmatpush1.msra.mxu0 0.0
    %333 = vmatprep.subr.mxu0 0.0
    %334 = vmatpush1.msra.mxu0 0.0
    %335 = vmatprep.subr.mxu0 0.0
    %336 = vmatpush1.msra.mxu0 0.0
    %337 = vmatprep.mubr.f32.mxu0 0.0
    %338 = vmatmul.mubr.f32.gmra.mrb[0].mxu0 %v249
    %v339 = vpop.f32.mrb[0].mxu0
    %v340 = vadd.f32 %v271, %v339
    %v341 = vpop.f32.mrb[0].mxu0
    %342 = vdwg.mxu0
    %v343 = vtanh.pop %v340
    %v344 = vld [vmem:[%s5] sm:$0xff]
    %v345 = vld [vmem:[%s5 + $0x8] sm:$0xff]
    %v346 = vld [vmem:[%s5 + $0x10] sm:$0xff]
    %v347 = vld [vmem:[%s5 + $0x18] sm:$0xff]
    %v348 = vld [vmem:[%s5 + $0x20] sm:$0xff]
    %v349 = vld [vmem:[%s5 + $0x28] sm:$0xff]
    %v350 = vld [vmem:[%s5 + $0x30] sm:$0xff]
    %v351 = vld [vmem:[%s5 + $0x38] sm:$0xff]
    %v352 = vld [vmem:[%s5 + $0x40] sm:$0xff]
    %v353 = vld [vmem:[%s5 + $0x48] sm:$0xff]
    %v354 = vld [vmem:[%s5 + $0x50] sm:$0xff]
    %v355 = vld [vmem:[%s5 + $0x58] sm:$0xff]
    %v356 = vld [vmem:[%s5 + $0x60] sm:$0xff]
    %v357 = vld [vmem:[%s5 + $0x68] sm:$0xff]
    %v358 = vld [vmem:[%s5 + $0x70] sm:$0xff]
    %v359 = vld [vmem:[%s5 + $0x78] sm:$0xff]
    %v360 = vld [vmem:[%s6] sm:$0x1]
    %v362 = vlaneseq
    %v363 = vshrl.u32 %v362, 7
    %v364 = vsub.s32 0, %v363
    %v365 = vrot.slane %v360, %v364
    %367 = vmatprep.subr.mxu0 0.0
    %368 = vmatpush1.msra.mxu0 %v344
    %369 = vmatprep.subr.mxu0 0.0
    %370 = vmatpush1.msra.mxu0 %v345
    %371 = vmatprep.subr.mxu0 0.0
    %372 = vmatpush1.msra.mxu0 %v346
    %373 = vmatprep.subr.mxu0 0.0
    %374 = vmatpush1.msra.mxu0 %v347
    %375 = vmatprep.subr.mxu0 0.0
    %376 = vmatpush1.msra.mxu0 %v348
    %377 = vmatprep.subr.mxu0 0.0
    %378 = vmatpush1.msra.mxu0 %v349
    %379 = vmatprep.subr.mxu0 0.0
    %380 = vmatpush1.msra.mxu0 %v350
    %381 = vmatprep.subr.mxu0 0.0
    %382 = vmatpush1.msra.mxu0 %v351
    %383 = vmatprep.subr.mxu0 0.0
    %384 = vmatpush1.msra.mxu0 %v352
    %385 = vmatprep.subr.mxu0 0.0
    %386 = vmatpush1.msra.mxu0 %v353
    %387 = vmatprep.subr.mxu0 0.0
    %388 = vmatpush1.msra.mxu0 %v354
    %389 = vmatprep.subr.mxu0 0.0
    %390 = vmatpush1.msra.mxu0 %v355
    %391 = vmatprep.subr.mxu0 0.0
    %392 = vmatpush1.msra.mxu0 %v356
    %393 = vmatprep.subr.mxu0 0.0
    %394 = vmatpush1.msra.mxu0 %v357
    %395 = vmatprep.subr.mxu0 0.0
    %396 = vmatpush1.msra.mxu0 %v358
    %397 = vmatprep.subr.mxu0 0.0
    %398 = vmatpush1.msra.mxu0 %v359
    %399 = vmatprep.subr.mxu0 0.0
    %400 = vmatpush1.msra.mxu0 0.0
    %401 = vmatprep.subr.mxu0 0.0
    %402 = vmatpush1.msra.mxu0 0.0
    %403 = vmatprep.subr.mxu0 0.0
    %404 = vmatpush1.msra.mxu0 0.0
    %405 = vmatprep.subr.mxu0 0.0
    %406 = vmatpush1.msra.mxu0 0.0
    %407 = vmatprep.subr.mxu0 0.0
    %408 = vmatpush1.msra.mxu0 0.0
    %409 = vmatprep.subr.mxu0 0.0
    %410 = vmatpush1.msra.mxu0 0.0
    %411 = vmatprep.subr.mxu0 0.0
    %412 = vmatpush1.msra.mxu0 0.0
    %413 = vmatprep.subr.mxu0 0.0
    %414 = vmatpush1.msra.mxu0 0.0
    %415 = vmatprep.subr.mxu0 0.0
    %416 = vmatpush1.msra.mxu0 0.0
    %417 = vmatprep.subr.mxu0 0.0
    %418 = vmatpush1.msra.mxu0 0.0
    %419 = vmatprep.subr.mxu0 0.0
    %420 = vmatpush1.msra.mxu0 0.0
    %421 = vmatprep.subr.mxu0 0.0
    %422 = vmatpush1.msra.mxu0 0.0
    %423 = vmatprep.subr.mxu0 0.0
    %424 = vmatpush1.msra.mxu0 0.0
    %425 = vmatprep.subr.mxu0 0.0
    %426 = vmatpush1.msra.mxu0 0.0
    %427 = vmatprep.subr.mxu0 0.0
    %428 = vmatpush1.msra.mxu0 0.0
    %429 = vmatprep.subr.mxu0 0.0
    %430 = vmatpush1.msra.mxu0 0.0
    %431 = vmatprep.mubr.f32.mxu0 0.0
    %432 = vmatmul.mubr.f32.gmra.mrb[0].mxu0 %v343
    %v433 = vpop.f32.mrb[0].mxu0
    %v434 = vadd.f32 %v365, %v433
    %v435 = vpop.f32.mrb[0].mxu0
    %436 = vdwg.mxu0
    %vm437 = vcmask 74752
    %v438 = vsel %vm437, %v434, -inf
    %439 = vmax.xlane.f32.xlu0 %v438
    %v440 = vpop.xlane.xlu0 %439
    %v441 = vsub.f32 %v434, %v440
    %v442 = vmul.f32 %v441, 1.442695
    %v443 = vpow.pop %v442
    %v444 = vsel %vm437, %v443, 0.0
    %445 = vadd.xlane.f32.xlu0 %v444
    %v446 = vpop.xlane.xlu0 %445
    %v447 = vrcp.pop %v446
    %v448 = vmul.f32 %v443, %v447
    %449 = vst.msk [vmem:[#allocation2] sm:$0x3] %vm437, %v448
    // Predicated region
    $region30: #{lenet5_forward.5} parent=1 // pred_check
      _
    $region31: #{lenet5_forward.5} parent=1 // pred_check_branch
      %451 = sbr.rel (0) target = $region33
    $region32: #{lenet5_forward.5} parent=1 // pred_region
      %s453 = ssub.s32 32, 32
      %454 = vsyncadd [#allocation3], %s453
      %s456 = sshll.u32 [#allocation2], 4
      %s457 = int_to_ptr.vmem [resolvable:$true] %s456
      %459 = dma.vmem_to_hbm [thread:$0]  %s457, 32, %s7, [#allocation3]
    $region33: #{lenet5_forward.5} parent=1 // pred_fallthru
      _
    // Predicated region
    $region34: #{lenet5_forward.5} parent=1 // pred_check
      _
    $region35: #{lenet5_forward.5} parent=1 // pred_check_branch
      %461 = sbr.rel (0) target = $region37
    $region36: #{lenet5_forward.5} parent=1 // pred_region
      %462 = dma.done [#allocation3], 32
    $region37: #{lenet5_forward.5} parent=1 // pred_fallthru
      _
    %463 = vsyncpa [#allocation3], 1

</llo_original>
